<compile_context>
chip_gen: v7x
topology: tpu7x:2x2x1
jax: 0.10.0
libtpu: 0.0.40
codegen_flags: <defaults>
</compile_context>

<pallas_src>
import functools

import jax
import jax.numpy as jnp
from jax import lax
from jax.experimental import pallas as pl
from jax.experimental.pallas import tpu as pltpu


def _round_up(x, m):
    return ((x + m - 1) // m) * m


def _sigmoid(x):
    # exp on the EUP, divide as approx reciprocal on the EUP -> VALU stays free
    return pl.reciprocal(1.0 + jnp.exp(-x), approx=True)


def _lstm_kernel(len_ref, gx_ref, whh_ref, out_ref, ht_ref, ct_ref, *, tc, hp):
    """One grid step == one chunk of `tc` time steps for one batch block.

    len_ref : [BB, 1]  int32   (VMEM, constant block per batch block)
    gx_ref  : [TC, BB, 4Hp] f32  precomputed x @ W_ih^T + (b_ih + b_hh)
    whh_ref : [Hp, 4Hp] bf16    W_hh^T (per-gate zero-padded to Hp)
    out_ref : [TC, BB, Hp] f32  (time-chunk sliced)
    ht_ref  : [BB, Hp] f32      resident across time chunks == recurrent h
    ct_ref  : [BB, Hp] f32      resident across time chunks == recurrent c
    """
    cidx = pl.program_id(1)          # time-chunk index (reduction axis, last)

    @pl.when(cidx == 0)
    def _():
        ht_ref[...] = jnp.zeros_like(ht_ref)
        ct_ref[...] = jnp.zeros_like(ct_ref)

    lens = len_ref[...]              # [BB, 1], hoisted: loaded once per chunk
    t0 = cidx * tc

    def step(i, carry):
        h, c = carry                                        # f32 [BB, Hp]
        gx = gx_ref[i]                                      # [BB, 4Hp] f32
        # serial part only: h_prev @ W_hh^T  (bf16 operands, f32 accumulate)
        gates = gx + jnp.dot(h.astype(jnp.bfloat16), whh_ref[...],
                             preferred_element_type=jnp.float32)

        # PyTorch gate ordering: i, f, g, o (each lane-aligned slice of Hp)
        i_g = _sigmoid(gates[:, 0 * hp:1 * hp])
        f_g = _sigmoid(gates[:, 1 * hp:2 * hp])
        g_g = jnp.tanh(gates[:, 2 * hp:3 * hp])
        o_g = _sigmoid(gates[:, 3 * hp:4 * hp])

        c_new = f_g * c + i_g * g_g
        h_new = o_g * jnp.tanh(c_new)

        valid = lens > (t0 + i)                             # [BB, 1]
        h = jnp.where(valid, h_new, h)
        c = jnp.where(valid, c_new, c)
        out_ref[i] = jnp.where(valid, h_new, 0.0)           # padded steps -> 0
        return h, c

    h_fin, c_fin = lax.fori_loop(0, tc, step, (ht_ref[...], ct_ref[...]),
                                 unroll=True)
    ht_ref[...] = h_fin
    ct_ref[...] = c_fin


def dynamic_lstm(x, x_len, w_ih, w_hh, b_ih, b_hh, *,
                 time_chunk=8, batch_block=None):
    """Forward pass of DynamicLSTM (LSTM, 1 layer, unidirectional, batch_first).

    x     : [B, T, I] float32
    x_len : [B]       int32
    w_ih  : [4H, I], w_hh: [4H, H], b_ih/b_hh: [4H]   (PyTorch layout)

    Returns (out [B, T, H], (ht [1, B, H], ct [1, B, H])).
    """
    B, T, I = x.shape
    H = w_hh.shape[1]
    f32 = jnp.float32

    Hp = _round_up(H, 128)              # lane-dense output / lane-aligned gates
    Bp = _round_up(B, 8)                # sublane alignment
    TC = min(time_chunk, _round_up(T, 1))
    Tp = _round_up(T, TC)
    BB = Bp if batch_block is None else batch_block
    assert Bp % BB == 0 and BB % 8 == 0

    # --- per-gate zero-padding of the hidden dim so gate slices stay aligned
    w_ih_p = jnp.pad(w_ih.astype(f32).reshape(4, H, I),
                     ((0, 0), (0, Hp - H), (0, 0)))             # [4, Hp, I]
    w_hh_p = jnp.pad(w_hh.astype(f32).reshape(4, H, H),
                     ((0, 0), (0, Hp - H), (0, Hp - H)))        # [4, Hp, Hp]
    bias_p = jnp.pad((b_ih + b_hh).astype(f32).reshape(4, H),
                     ((0, 0), (0, Hp - H))).reshape(4 * Hp)     # [4Hp]

    whh_t = jnp.transpose(w_hh_p.reshape(4 * Hp, Hp)).astype(jnp.bfloat16)

    x_p = jnp.pad(x.astype(f32), ((0, Bp - B), (0, Tp - T), (0, 0)))
    lens_p = jnp.pad(x_len.astype(jnp.int32), (0, Bp - B)).reshape(Bp, 1)

    # --- hoisted, fully-parallel input projection, produced time-major
    gates_x = (jnp.einsum('bti,gi->tbg', x_p, w_ih_p.reshape(4 * Hp, I))
               + bias_p)                                        # [Tp, Bp, 4Hp]

    nb = Bp // BB
    nc = Tp // TC

    kernel = functools.partial(_lstm_kernel, tc=TC, hp=Hp)

    out_tm, ht, ct = pl.pallas_call(
        kernel,
        out_shape=(
            jax.ShapeDtypeStruct((Tp, Bp, Hp), f32),
            jax.ShapeDtypeStruct((Bp, Hp), f32),
            jax.ShapeDtypeStruct((Bp, Hp), f32),
        ),
        grid_spec=pltpu.PrefetchScalarGridSpec(
            num_scalar_prefetch=0,
            grid=(nb, nc),                                   # (batch, time)
            in_specs=[
                pl.BlockSpec((BB, 1), lambda b, c: (b, 0)),          # lens
                pl.BlockSpec((TC, BB, 4 * Hp), lambda b, c: (c, b, 0)),  # g_x
                pl.BlockSpec((Hp, 4 * Hp), lambda b, c: (0, 0)),     # W_hh^T
            ],
            out_specs=[
                pl.BlockSpec((TC, BB, Hp), lambda b, c: (c, b, 0)),  # out
                pl.BlockSpec((BB, Hp), lambda b, c: (b, 0)),         # ht (res.)
                pl.BlockSpec((BB, Hp), lambda b, c: (b, 0)),         # ct (res.)
            ],
        ),
        compiler_params=pltpu.CompilerParams(
            dimension_semantics=("parallel", "arbitrary"),   # recurrence last
        ),
    )(lens_p, gates_x, whh_t)

    out = jnp.transpose(out_tm, (1, 0, 2))[:B, :T, :H]       # [B, T, H]
    return out, (ht[:B, :H][None, ...], ct[:B, :H][None, ...])


def _reference_lstm(x, x_len, w_ih, w_hh, b_ih, b_hh):
    """Pure-JAX f32 reference (lax.scan) for a correctness check."""
    B, T, I = x.shape
    H = w_hh.shape[1]
    wih_t = jnp.transpose(w_ih)
    whh_t = jnp.transpose(w_hh)
    bias = b_ih + b_hh

    def step(carry, inp):
        h, c = carry
        x_t, t = inp
        gates = x_t @ wih_t + h @ whh_t + bias
        i = jax.nn.sigmoid(gates[:, 0 * H:1 * H])
        f = jax.nn.sigmoid(gates[:, 1 * H:2 * H])
        g = jnp.tanh(gates[:, 2 * H:3 * H])
        o = jax.nn.sigmoid(gates[:, 3 * H:4 * H])
        c_new = f * c + i * g
        h_new = o * jnp.tanh(c_new)
        valid = (x_len > t)[:, None]
        h = jnp.where(valid, h_new, h)
        c = jnp.where(valid, c_new, c)
        out_t = jnp.where(valid, h_new, 0.0)
        return (h, c), out_t

    (h_f, c_f), outs = lax.scan(
        step, (jnp.zeros((B, H)), jnp.zeros((B, H))),
        (jnp.transpose(x, (1, 0, 2)), jnp.arange(T)))
    return jnp.transpose(outs, (1, 0, 2)), (h_f[None], c_f[None])


if __name__ == "__main__":
    B, T, I, H = 2, 8, 16, 32

    key = jax.random.PRNGKey(0)
    k_x, k_wih, k_whh, k_bih, k_bhh = jax.random.split(key, 5)

    scale = 1.0 / jnp.sqrt(H)
    x = jax.random.normal(k_x, (B, T, I), dtype=jnp.float32)
    x_len = jnp.array([5, 8], dtype=jnp.int32)
    w_ih = jax.random.uniform(k_wih, (4 * H, I), minval=-scale, maxval=scale)
    w_hh = jax.random.uniform(k_whh, (4 * H, H), minval=-scale, maxval=scale)
    b_ih = jax.random.uniform(k_bih, (4 * H,), minval=-scale, maxval=scale)
    b_hh = jax.random.uniform(k_bhh, (4 * H,), minval=-scale, maxval=scale)

    out, (ht, ct) = dynamic_lstm(x, x_len, w_ih, w_hh, b_ih, b_hh)
    jax.block_until_ready((out, ht, ct))

    out_r, (ht_r, ct_r) = _reference_lstm(x, x_len, w_ih, w_hh, b_ih, b_hh)
    assert out.shape == (B, T, H) and ht.shape == (1, B, H) and ct.shape == (1, B, H)
    # tolerance loosened vs. pure-f32: W_hh matmul operands are bf16 and
    # sigmoid uses the approximate EUP reciprocal.
    assert jnp.allclose(out, out_r, atol=2e-2), "out mismatch"
    assert jnp.allclose(ht, ht_r, atol=2e-2), "ht mismatch"
    assert jnp.allclose(ct, ct_r, atol=2e-2), "ct mismatch"

    print("KERNEL_OK")
</pallas_src>

<mosaic_0001>
module attributes {stable_mosaic.version = 11 : i64} {
  func.func @_lstm_kernel(%arg0: i32, %arg1: i32, %arg2: memref<8x1xi32, #tpu.memory_space<vmem>>, %arg3: memref<8x8x512xf32, #tpu.memory_space<vmem>>, %arg4: memref<128x512xbf16, #tpu.memory_space<vmem>>, %arg5: memref<8x8x128xf32, #tpu.memory_space<vmem>>, %arg6: memref<8x128xf32, #tpu.memory_space<vmem>>, %arg7: memref<8x128xf32, #tpu.memory_space<vmem>>) attributes {dimension_semantics = [#tpu.dimension_semantics<parallel>, #tpu.dimension_semantics<arbitrary>], iteration_bounds = array<i64: 1, 1>, scalar_prefetch = 0 : i64, scratch_operands = 0 : i64, tpu.core_type = #tpu.core_type<tc>, window_params = [{transform_indices = @transform_0, window_bounds = array<i64: 8, 1>}, {transform_indices = @transform_1, window_bounds = array<i64: 8, 8, 512>}, {pipeline_mode = #tpu.pipeline_mode<synchronous>, transform_indices = @transform_2, window_bounds = array<i64: 128, 512>}, {transform_indices = @transform_3, window_bounds = array<i64: 8, 8, 128>}, {transform_indices = @transform_4, window_bounds = array<i64: 8, 128>}, {transform_indices = @transform_5, window_bounds = array<i64: 8, 128>}]} {
    %c0_i32 = arith.constant 0 : i32
    %0 = arith.cmpi eq, %arg1, %c0_i32 : i32
    %1 = arith.extui %0 : i1 to i32
    %c0_i32_0 = arith.constant 0 : i32
    %2 = arith.cmpi ne, %1, %c0_i32_0 : i32
    scf.if %2 {
      %cst_123 = arith.constant 0.000000e+00 : f32
      %425 = vector.broadcast %cst_123 : f32 to vector<8x128xf32>
      %c0_124 = arith.constant 0 : index
      %c0_125 = arith.constant 0 : index
      %426 = vector.load %arg6[%c0_124, %c0_125] : memref<8x128xf32, #tpu.memory_space<vmem>>, vector<8x128xf32>
      tpu.vector_store %arg6[%c0_124, %c0_125], %425 {strides = array<i32>} : memref<8x128xf32, #tpu.memory_space<vmem>>, vector<8x128xf32>,
      %cst_126 = arith.constant 0.000000e+00 : f32
      %427 = vector.broadcast %cst_126 : f32 to vector<8x128xf32>
      %c0_127 = arith.constant 0 : index
      %c0_128 = arith.constant 0 : index
      %428 = vector.load %arg7[%c0_127, %c0_128] : memref<8x128xf32, #tpu.memory_space<vmem>>, vector<8x128xf32>
      tpu.vector_store %arg7[%c0_127, %c0_128], %427 {strides = array<i32>} : memref<8x128xf32, #tpu.memory_space<vmem>>, vector<8x128xf32>,
    } else {
    }
    %c0 = arith.constant 0 : index
    %c0_1 = arith.constant 0 : index
    %3 = vector.load %arg2[%c0, %c0_1] : memref<8x1xi32, #tpu.memory_space<vmem>>, vector<8x1xi32>
    %c8_i32 = arith.constant 8 : i32
    %4 = arith.muli %arg1, %c8_i32 : i32
    %c0_2 = arith.constant 0 : index
    %c0_3 = arith.constant 0 : index
    %5 = vector.load %arg6[%c0_2, %c0_3] : memref<8x128xf32, #tpu.memory_space<vmem>>, vector<8x128xf32>
    %c0_4 = arith.constant 0 : index
    %c0_5 = arith.constant 0 : index
    %6 = vector.load %arg7[%c0_4, %c0_5] : memref<8x128xf32, #tpu.memory_space<vmem>>, vector<8x128xf32>
    %c0_i32_6 = arith.constant 0 : i32
    %7 = arith.index_cast %c0_i32_6 : i32 to index
    %c0_7 = arith.constant 0 : index
    %c0_8 = arith.constant 0 : index
    %8 = vector.load %arg3[%7, %c0_7, %c0_8] : memref<8x8x512xf32, #tpu.memory_space<vmem>>, vector<1x8x512xf32>
    %9 = vector.shape_cast %8 : vector<1x8x512xf32> to vector<8x512xf32>
    %10 = arith.truncf %5 : vector<8x128xf32> to vector<8x128xbf16>
    %c0_9 = arith.constant 0 : index
    %c0_10 = arith.constant 0 : index
    %11 = vector.load %arg4[%c0_9, %c0_10] : memref<128x512xbf16, #tpu.memory_space<vmem>>, vector<128x512xbf16>
    %cst = arith.constant dense<0.000000e+00> : vector<8x512xf32>
    %12 = tpu.matmul %10, %11, %cst {dimension_numbers = #tpu.dot_dimension_numbers<[1], [0], [0], [1], [0, 0, 1, 1], [], []>} : vector<8x128xbf16>, vector<128x512xbf16>, vector<8x512xf32> -> vector<8x512xf32>
    %13 = arith.addf %9, %12 : vector<8x512xf32>
    %14 = vector.extract_strided_slice %13 {offsets = [0, 0], sizes = [8, 128], strides = [1, 1]} : vector<8x512xf32> to vector<8x128xf32>
    %cst_11 = arith.constant 0.000000e+00 : f32
    %15 = vector.broadcast %cst_11 : f32 to vector<8x128xf32>
    %16 = arith.subf %15, %14 : vector<8x128xf32>
    %17 = math.exp %16 : vector<8x128xf32>
    %cst_12 = arith.constant 1.000000e+00 : f32
    %18 = vector.broadcast %cst_12 : f32 to vector<8x128xf32>
    %19 = arith.addf %18, %17 : vector<8x128xf32>
    %20 = tpu.reciprocal %19 {approx = true} : vector<8x128xf32> -> vector<8x128xf32>
    %21 = vector.extract_strided_slice %13 {offsets = [0, 128], sizes = [8, 128], strides = [1, 1]} : vector<8x512xf32> to vector<8x128xf32>
    %cst_13 = arith.constant 0.000000e+00 : f32
    %22 = vector.broadcast %cst_13 : f32 to vector<8x128xf32>
    %23 = arith.subf %22, %21 : vector<8x128xf32>
    %24 = math.exp %23 : vector<8x128xf32>
    %cst_14 = arith.constant 1.000000e+00 : f32
    %25 = vector.broadcast %cst_14 : f32 to vector<8x128xf32>
    %26 = arith.addf %25, %24 : vector<8x128xf32>
    %27 = tpu.reciprocal %26 {approx = true} : vector<8x128xf32> -> vector<8x128xf32>
    %28 = vector.extract_strided_slice %13 {offsets = [0, 256], sizes = [8, 128], strides = [1, 1]} : vector<8x512xf32> to vector<8x128xf32>
    %29 = math.tanh %28 : vector<8x128xf32>
    %30 = vector.extract_strided_slice %13 {offsets = [0, 384], sizes = [8, 128], strides = [1, 1]} : vector<8x512xf32> to vector<8x128xf32>
    %cst_15 = arith.constant 0.000000e+00 : f32
    %31 = vector.broadcast %cst_15 : f32 to vector<8x128xf32>
    %32 = arith.subf %31, %30 : vector<8x128xf32>
    %33 = math.exp %32 : vector<8x128xf32>
    %cst_16 = arith.constant 1.000000e+00 : f32
    %34 = vector.broadcast %cst_16 : f32 to vector<8x128xf32>
    %35 = arith.addf %34, %33 : vector<8x128xf32>
    %36 = tpu.reciprocal %35 {approx = true} : vector<8x128xf32> -> vector<8x128xf32>
    %37 = arith.mulf %27, %6 : vector<8x128xf32>
    %38 = arith.mulf %20, %29 : vector<8x128xf32>
    %39 = arith.addf %37, %38 : vector<8x128xf32>
    %40 = math.tanh %39 : vector<8x128xf32>
    %41 = arith.mulf %36, %40 : vector<8x128xf32>
    %42 = arith.addi %4, %c0_i32_6 : i32
    %43 = vector.broadcast %42 : i32 to vector<8x1xi32>
    %44 = arith.cmpi sgt, %3, %43 : vector<8x1xi32>
    %45 = vector.shape_cast %44 : vector<8x1xi1> to vector<8x1xi1>
    %46 = vector.broadcast %45 : vector<8x1xi1> to vector<8x128xi1>
    %47 = arith.select %46, %41, %5 : vector<8x128xi1>, vector<8x128xf32>
    %48 = vector.shape_cast %44 : vector<8x1xi1> to vector<8x1xi1>
    %49 = vector.broadcast %48 : vector<8x1xi1> to vector<8x128xi1>
    %50 = arith.select %49, %39, %6 : vector<8x128xi1>, vector<8x128xf32>
    %cst_17 = arith.constant 0.000000e+00 : f32
    %51 = vector.shape_cast %44 : vector<8x1xi1> to vector<8x1xi1>
    %52 = vector.broadcast %51 : vector<8x1xi1> to vector<8x128xi1>
    %53 = vector.broadcast %cst_17 : f32 to vector<8x128xf32>
    %54 = arith.select %52, %41, %53 : vector<8x128xi1>, vector<8x128xf32>
    %55 = arith.index_cast %c0_i32_6 : i32 to index
    %c0_18 = arith.constant 0 : index
    %c0_19 = arith.constant 0 : index
    %56 = vector.load %arg5[%55, %c0_18, %c0_19] : memref<8x8x128xf32, #tpu.memory_space<vmem>>, vector<1x8x128xf32>
    %57 = vector.shape_cast %56 : vector<1x8x128xf32> to vector<8x128xf32>
    %58 = vector.shape_cast %54 : vector<8x128xf32> to vector<1x8x128xf32>
    tpu.vector_store %arg5[%55, %c0_18, %c0_19], %58 {strides = array<i32>} : memref<8x8x128xf32, #tpu.memory_space<vmem>>, vector<1x8x128xf32>,
    %c1_i32 = arith.constant 1 : i32
    %59 = arith.index_cast %c1_i32 : i32 to index
    %c0_20 = arith.constant 0 : index
    %c0_21 = arith.constant 0 : index
    %60 = vector.load %arg3[%59, %c0_20, %c0_21] : memref<8x8x512xf32, #tpu.memory_space<vmem>>, vector<1x8x512xf32>
    %61 = vector.shape_cast %60 : vector<1x8x512xf32> to vector<8x512xf32>
    %62 = arith.truncf %47 : vector<8x128xf32> to vector<8x128xbf16>
    %c0_22 = arith.constant 0 : index
    %c0_23 = arith.constant 0 : index
    %63 = vector.load %arg4[%c0_22, %c0_23] : memref<128x512xbf16, #tpu.memory_space<vmem>>, vector<128x512xbf16>
    %cst_24 = arith.constant dense<0.000000e+00> : vector<8x512xf32>
    %64 = tpu.matmul %62, %63, %cst_24 {dimension_numbers = #tpu.dot_dimension_numbers<[1], [0], [0], [1], [0, 0, 1, 1], [], []>} : vector<8x128xbf16>, vector<128x512xbf16>, vector<8x512xf32> -> vector<8x512xf32>
    %65 = arith.addf %61, %64 : vector<8x512xf32>
    %66 = vector.extract_strided_slice %65 {offsets = [0, 0], sizes = [8, 128], strides = [1, 1]} : vector<8x512xf32> to vector<8x128xf32>
    %cst_25 = arith.constant 0.000000e+00 : f32
    %67 = vector.broadcast %cst_25 : f32 to vector<8x128xf32>
    %68 = arith.subf %67, %66 : vector<8x128xf32>
    %69 = math.exp %68 : vector<8x128xf32>
    %cst_26 = arith.constant 1.000000e+00 : f32
    %70 = vector.broadcast %cst_26 : f32 to vector<8x128xf32>
    %71 = arith.addf %70, %69 : vector<8x128xf32>
    %72 = tpu.reciprocal %71 {approx = true} : vector<8x128xf32> -> vector<8x128xf32>
    %73 = vector.extract_strided_slice %65 {offsets = [0, 128], sizes = [8, 128], strides = [1, 1]} : vector<8x512xf32> to vector<8x128xf32>
    %cst_27 = arith.constant 0.000000e+00 : f32
    %74 = vector.broadcast %cst_27 : f32 to vector<8x128xf32>
    %75 = arith.subf %74, %73 : vector<8x128xf32>
    %76 = math.exp %75 : vector<8x128xf32>
    %cst_28 = arith.constant 1.000000e+00 : f32
    %77 = vector.broadcast %cst_28 : f32 to vector<8x128xf32>
    %78 = arith.addf %77, %76 : vector<8x128xf32>
    %79 = tpu.reciprocal %78 {approx = true} : vector<8x128xf32> -> vector<8x128xf32>
    %80 = vector.extract_strided_slice %65 {offsets = [0, 256], sizes = [8, 128], strides = [1, 1]} : vector<8x512xf32> to vector<8x128xf32>
    %81 = math.tanh %80 : vector<8x128xf32>
    %82 = vector.extract_strided_slice %65 {offsets = [0, 384], sizes = [8, 128], strides = [1, 1]} : vector<8x512xf32> to vector<8x128xf32>
    %cst_29 = arith.constant 0.000000e+00 : f32
    %83 = vector.broadcast %cst_29 : f32 to vector<8x128xf32>
    %84 = arith.subf %83, %82 : vector<8x128xf32>
    %85 = math.exp %84 : vector<8x128xf32>
    %cst_30 = arith.constant 1.000000e+00 : f32
    %86 = vector.broadcast %cst_30 : f32 to vector<8x128xf32>
    %87 = arith.addf %86, %85 : vector<8x128xf32>
    %88 = tpu.reciprocal %87 {approx = true} : vector<8x128xf32> -> vector<8x128xf32>
    %89 = arith.mulf %79, %50 : vector<8x128xf32>
    %90 = arith.mulf %72, %81 : vector<8x128xf32>
    %91 = arith.addf %89, %90 : vector<8x128xf32>
    %92 = math.tanh %91 : vector<8x128xf32>
    %93 = arith.mulf %88, %92 : vector<8x128xf32>
    %94 = arith.addi %4, %c1_i32 : i32
    %95 = vector.broadcast %94 : i32 to vector<8x1xi32>
    %96 = arith.cmpi sgt, %3, %95 : vector<8x1xi32>
    %97 = vector.shape_cast %96 : vector<8x1xi1> to vector<8x1xi1>
    %98 = vector.broadcast %97 : vector<8x1xi1> to vector<8x128xi1>
    %99 = arith.select %98, %93, %47 : vector<8x128xi1>, vector<8x128xf32>
    %100 = vector.shape_cast %96 : vector<8x1xi1> to vector<8x1xi1>
    %101 = vector.broadcast %100 : vector<8x1xi1> to vector<8x128xi1>
    %102 = arith.select %101, %91, %50 : vector<8x128xi1>, vector<8x128xf32>
    %cst_31 = arith.constant 0.000000e+00 : f32
    %103 = vector.shape_cast %96 : vector<8x1xi1> to vector<8x1xi1>
    %104 = vector.broadcast %103 : vector<8x1xi1> to vector<8x128xi1>
    %105 = vector.broadcast %cst_31 : f32 to vector<8x128xf32>
    %106 = arith.select %104, %93, %105 : vector<8x128xi1>, vector<8x128xf32>
    %107 = arith.index_cast %c1_i32 : i32 to index
    %c0_32 = arith.constant 0 : index
    %c0_33 = arith.constant 0 : index
    %108 = vector.load %arg5[%107, %c0_32, %c0_33] : memref<8x8x128xf32, #tpu.memory_space<vmem>>, vector<1x8x128xf32>
    %109 = vector.shape_cast %108 : vector<1x8x128xf32> to vector<8x128xf32>
    %110 = vector.shape_cast %106 : vector<8x128xf32> to vector<1x8x128xf32>
    tpu.vector_store %arg5[%107, %c0_32, %c0_33], %110 {strides = array<i32>} : memref<8x8x128xf32, #tpu.memory_space<vmem>>, vector<1x8x128xf32>,
    %c2_i32 = arith.constant 2 : i32
    %111 = arith.index_cast %c2_i32 : i32 to index
    %c0_34 = arith.constant 0 : index
    %c0_35 = arith.constant 0 : index
    %112 = vector.load %arg3[%111, %c0_34, %c0_35] : memref<8x8x512xf32, #tpu.memory_space<vmem>>, vector<1x8x512xf32>
    %113 = vector.shape_cast %112 : vector<1x8x512xf32> to vector<8x512xf32>
    %114 = arith.truncf %99 : vector<8x128xf32> to vector<8x128xbf16>
    %c0_36 = arith.constant 0 : index
    %c0_37 = arith.constant 0 : index
    %115 = vector.load %arg4[%c0_36, %c0_37] : memref<128x512xbf16, #tpu.memory_space<vmem>>, vector<128x512xbf16>
    %cst_38 = arith.constant dense<0.000000e+00> : vector<8x512xf32>
    %116 = tpu.matmul %114, %115, %cst_38 {dimension_numbers = #tpu.dot_dimension_numbers<[1], [0], [0], [1], [0, 0, 1, 1], [], []>} : vector<8x128xbf16>, vector<128x512xbf16>, vector<8x512xf32> -> vector<8x512xf32>
    %117 = arith.addf %113, %116 : vector<8x512xf32>
    %118 = vector.extract_strided_slice %117 {offsets = [0, 0], sizes = [8, 128], strides = [1, 1]} : vector<8x512xf32> to vector<8x128xf32>
    %cst_39 = arith.constant 0.000000e+00 : f32
    %119 = vector.broadcast %cst_39 : f32 to vector<8x128xf32>
    %120 = arith.subf %119, %118 : vector<8x128xf32>
    %121 = math.exp %120 : vector<8x128xf32>
    %cst_40 = arith.constant 1.000000e+00 : f32
    %122 = vector.broadcast %cst_40 : f32 to vector<8x128xf32>
    %123 = arith.addf %122, %121 : vector<8x128xf32>
    %124 = tpu.reciprocal %123 {approx = true} : vector<8x128xf32> -> vector<8x128xf32>
    %125 = vector.extract_strided_slice %117 {offsets = [0, 128], sizes = [8, 128], strides = [1, 1]} : vector<8x512xf32> to vector<8x128xf32>
    %cst_41 = arith.constant 0.000000e+00 : f32
    %126 = vector.broadcast %cst_41 : f32 to vector<8x128xf32>
    %127 = arith.subf %126, %125 : vector<8x128xf32>
    %128 = math.exp %127 : vector<8x128xf32>
    %cst_42 = arith.constant 1.000000e+00 : f32
    %129 = vector.broadcast %cst_42 : f32 to vector<8x128xf32>
    %130 = arith.addf %129, %128 : vector<8x128xf32>
    %131 = tpu.reciprocal %130 {approx = true} : vector<8x128xf32> -> vector<8x128xf32>
    %132 = vector.extract_strided_slice %117 {offsets = [0, 256], sizes = [8, 128], strides = [1, 1]} : vector<8x512xf32> to vector<8x128xf32>
    %133 = math.tanh %132 : vector<8x128xf32>
    %134 = vector.extract_strided_slice %117 {offsets = [0, 384], sizes = [8, 128], strides = [1, 1]} : vector<8x512xf32> to vector<8x128xf32>
    %cst_43 = arith.constant 0.000000e+00 : f32
    %135 = vector.broadcast %cst_43 : f32 to vector<8x128xf32>
    %136 = arith.subf %135, %134 : vector<8x128xf32>
    %137 = math.exp %136 : vector<8x128xf32>
    %cst_44 = arith.constant 1.000000e+00 : f32
    %138 = vector.broadcast %cst_44 : f32 to vector<8x128xf32>
    %139 = arith.addf %138, %137 : vector<8x128xf32>
    %140 = tpu.reciprocal %139 {approx = true} : vector<8x128xf32> -> vector<8x128xf32>
    %141 = arith.mulf %131, %102 : vector<8x128xf32>
    %142 = arith.mulf %124, %133 : vector<8x128xf32>
    %143 = arith.addf %141, %142 : vector<8x128xf32>
    %144 = math.tanh %143 : vector<8x128xf32>
    %145 = arith.mulf %140, %144 : vector<8x128xf32>
    %146 = arith.addi %4, %c2_i32 : i32
    %147 = vector.broadcast %146 : i32 to vector<8x1xi32>
    %148 = arith.cmpi sgt, %3, %147 : vector<8x1xi32>
    %149 = vector.shape_cast %148 : vector<8x1xi1> to vector<8x1xi1>
    %150 = vector.broadcast %149 : vector<8x1xi1> to vector<8x128xi1>
    %151 = arith.select %150, %145, %99 : vector<8x128xi1>, vector<8x128xf32>
    %152 = vector.shape_cast %148 : vector<8x1xi1> to vector<8x1xi1>
    %153 = vector.broadcast %152 : vector<8x1xi1> to vector<8x128xi1>
    %154 = arith.select %153, %143, %102 : vector<8x128xi1>, vector<8x128xf32>
    %cst_45 = arith.constant 0.000000e+00 : f32
    %155 = vector.shape_cast %148 : vector<8x1xi1> to vector<8x1xi1>
    %156 = vector.broadcast %155 : vector<8x1xi1> to vector<8x128xi1>
    %157 = vector.broadcast %cst_45 : f32 to vector<8x128xf32>
    %158 = arith.select %156, %145, %157 : vector<8x128xi1>, vector<8x128xf32>
    %159 = arith.index_cast %c2_i32 : i32 to index
    %c0_46 = arith.constant 0 : index
    %c0_47 = arith.constant 0 : index
    %160 = vector.load %arg5[%159, %c0_46, %c0_47] : memref<8x8x128xf32, #tpu.memory_space<vmem>>, vector<1x8x128xf32>
    %161 = vector.shape_cast %160 : vector<1x8x128xf32> to vector<8x128xf32>
    %162 = vector.shape_cast %158 : vector<8x128xf32> to vector<1x8x128xf32>
    tpu.vector_store %arg5[%159, %c0_46, %c0_47], %162 {strides = array<i32>} : memref<8x8x128xf32, #tpu.memory_space<vmem>>, vector<1x8x128xf32>,
    %c3_i32 = arith.constant 3 : i32
    %163 = arith.index_cast %c3_i32 : i32 to index
    %c0_48 = arith.constant 0 : index
    %c0_49 = arith.constant 0 : index
    %164 = vector.load %arg3[%163, %c0_48, %c0_49] : memref<8x8x512xf32, #tpu.memory_space<vmem>>, vector<1x8x512xf32>
    %165 = vector.shape_cast %164 : vector<1x8x512xf32> to vector<8x512xf32>
    %166 = arith.truncf %151 : vector<8x128xf32> to vector<8x128xbf16>
    %c0_50 = arith.constant 0 : index
    %c0_51 = arith.constant 0 : index
    %167 = vector.load %arg4[%c0_50, %c0_51] : memref<128x512xbf16, #tpu.memory_space<vmem>>, vector<128x512xbf16>
    %cst_52 = arith.constant dense<0.000000e+00> : vector<8x512xf32>
    %168 = tpu.matmul %166, %167, %cst_52 {dimension_numbers = #tpu.dot_dimension_numbers<[1], [0], [0], [1], [0, 0, 1, 1], [], []>} : vector<8x128xbf16>, vector<128x512xbf16>, vector<8x512xf32> -> vector<8x512xf32>
    %169 = arith.addf %165, %168 : vector<8x512xf32>
    %170 = vector.extract_strided_slice %169 {offsets = [0, 0], sizes = [8, 128], strides = [1, 1]} : vector<8x512xf32> to vector<8x128xf32>
    %cst_53 = arith.constant 0.000000e+00 : f32
    %171 = vector.broadcast %cst_53 : f32 to vector<8x128xf32>
    %172 = arith.subf %171, %170 : vector<8x128xf32>
    %173 = math.exp %172 : vector<8x128xf32>
    %cst_54 = arith.constant 1.000000e+00 : f32
    %174 = vector.broadcast %cst_54 : f32 to vector<8x128xf32>
    %175 = arith.addf %174, %173 : vector<8x128xf32>
    %176 = tpu.reciprocal %175 {approx = true} : vector<8x128xf32> -> vector<8x128xf32>
    %177 = vector.extract_strided_slice %169 {offsets = [0, 128], sizes = [8, 128], strides = [1, 1]} : vector<8x512xf32> to vector<8x128xf32>
    %cst_55 = arith.constant 0.000000e+00 : f32
    %178 = vector.broadcast %cst_55 : f32 to vector<8x128xf32>
    %179 = arith.subf %178, %177 : vector<8x128xf32>
    %180 = math.exp %179 : vector<8x128xf32>
    %cst_56 = arith.constant 1.000000e+00 : f32
    %181 = vector.broadcast %cst_56 : f32 to vector<8x128xf32>
    %182 = arith.addf %181, %180 : vector<8x128xf32>
    %183 = tpu.reciprocal %182 {approx = true} : vector<8x128xf32> -> vector<8x128xf32>
    %184 = vector.extract_strided_slice %169 {offsets = [0, 256], sizes = [8, 128], strides = [1, 1]} : vector<8x512xf32> to vector<8x128xf32>
    %185 = math.tanh %184 : vector<8x128xf32>
    %186 = vector.extract_strided_slice %169 {offsets = [0, 384], sizes = [8, 128], strides = [1, 1]} : vector<8x512xf32> to vector<8x128xf32>
    %cst_57 = arith.constant 0.000000e+00 : f32
    %187 = vector.broadcast %cst_57 : f32 to vector<8x128xf32>
    %188 = arith.subf %187, %186 : vector<8x128xf32>
    %189 = math.exp %188 : vector<8x128xf32>
    %cst_58 = arith.constant 1.000000e+00 : f32
    %190 = vector.broadcast %cst_58 : f32 to vector<8x128xf32>
    %191 = arith.addf %190, %189 : vector<8x128xf32>
    %192 = tpu.reciprocal %191 {approx = true} : vector<8x128xf32> -> vector<8x128xf32>
    %193 = arith.mulf %183, %154 : vector<8x128xf32>
    %194 = arith.mulf %176, %185 : vector<8x128xf32>
    %195 = arith.addf %193, %194 : vector<8x128xf32>
    %196 = math.tanh %195 : vector<8x128xf32>
    %197 = arith.mulf %192, %196 : vector<8x128xf32>
    %198 = arith.addi %4, %c3_i32 : i32
    %199 = vector.broadcast %198 : i32 to vector<8x1xi32>
    %200 = arith.cmpi sgt, %3, %199 : vector<8x1xi32>
    %201 = vector.shape_cast %200 : vector<8x1xi1> to vector<8x1xi1>
    %202 = vector.broadcast %201 : vector<8x1xi1> to vector<8x128xi1>
    %203 = arith.select %202, %197, %151 : vector<8x128xi1>, vector<8x128xf32>
    %204 = vector.shape_cast %200 : vector<8x1xi1> to vector<8x1xi1>
    %205 = vector.broadcast %204 : vector<8x1xi1> to vector<8x128xi1>
    %206 = arith.select %205, %195, %154 : vector<8x128xi1>, vector<8x128xf32>
    %cst_59 = arith.constant 0.000000e+00 : f32
    %207 = vector.shape_cast %200 : vector<8x1xi1> to vector<8x1xi1>
    %208 = vector.broadcast %207 : vector<8x1xi1> to vector<8x128xi1>
    %209 = vector.broadcast %cst_59 : f32 to vector<8x128xf32>
    %210 = arith.select %208, %197, %209 : vector<8x128xi1>, vector<8x128xf32>
    %211 = arith.index_cast %c3_i32 : i32 to index
    %c0_60 = arith.constant 0 : index
    %c0_61 = arith.constant 0 : index
    %212 = vector.load %arg5[%211, %c0_60, %c0_61] : memref<8x8x128xf32, #tpu.memory_space<vmem>>, vector<1x8x128xf32>
    %213 = vector.shape_cast %212 : vector<1x8x128xf32> to vector<8x128xf32>
    %214 = vector.shape_cast %210 : vector<8x128xf32> to vector<1x8x128xf32>
    tpu.vector_store %arg5[%211, %c0_60, %c0_61], %214 {strides = array<i32>} : memref<8x8x128xf32, #tpu.memory_space<vmem>>, vector<1x8x128xf32>,
    %c4_i32 = arith.constant 4 : i32
    %215 = arith.index_cast %c4_i32 : i32 to index
    %c0_62 = arith.constant 0 : index
    %c0_63 = arith.constant 0 : index
    %216 = vector.load %arg3[%215, %c0_62, %c0_63] : memref<8x8x512xf32, #tpu.memory_space<vmem>>, vector<1x8x512xf32>
    %217 = vector.shape_cast %216 : vector<1x8x512xf32> to vector<8x512xf32>
    %218 = arith.truncf %203 : vector<8x128xf32> to vector<8x128xbf16>
    %c0_64 = arith.constant 0 : index
    %c0_65 = arith.constant 0 : index
    %219 = vector.load %arg4[%c0_64, %c0_65] : memref<128x512xbf16, #tpu.memory_space<vmem>>, vector<128x512xbf16>
    %cst_66 = arith.constant dense<0.000000e+00> : vector<8x512xf32>
    %220 = tpu.matmul %218, %219, %cst_66 {dimension_numbers = #tpu.dot_dimension_numbers<[1], [0], [0], [1], [0, 0, 1, 1], [], []>} : vector<8x128xbf16>, vector<128x512xbf16>, vector<8x512xf32> -> vector<8x512xf32>
    %221 = arith.addf %217, %220 : vector<8x512xf32>
    %222 = vector.extract_strided_slice %221 {offsets = [0, 0], sizes = [8, 128], strides = [1, 1]} : vector<8x512xf32> to vector<8x128xf32>
    %cst_67 = arith.constant 0.000000e+00 : f32
    %223 = vector.broadcast %cst_67 : f32 to vector<8x128xf32>
    %224 = arith.subf %223, %222 : vector<8x128xf32>
    %225 = math.exp %224 : vector<8x128xf32>
    %cst_68 = arith.constant 1.000000e+00 : f32
    %226 = vector.broadcast %cst_68 : f32 to vector<8x128xf32>
    %227 = arith.addf %226, %225 : vector<8x128xf32>
    %228 = tpu.reciprocal %227 {approx = true} : vector<8x128xf32> -> vector<8x128xf32>
    %229 = vector.extract_strided_slice %221 {offsets = [0, 128], sizes = [8, 128], strides = [1, 1]} : vector<8x512xf32> to vector<8x128xf32>
    %cst_69 = arith.constant 0.000000e+00 : f32
    %230 = vector.broadcast %cst_69 : f32 to vector<8x128xf32>
    %231 = arith.subf %230, %229 : vector<8x128xf32>
    %232 = math.exp %231 : vector<8x128xf32>
    %cst_70 = arith.constant 1.000000e+00 : f32
    %233 = vector.broadcast %cst_70 : f32 to vector<8x128xf32>
    %234 = arith.addf %233, %232 : vector<8x128xf32>
    %235 = tpu.reciprocal %234 {approx = true} : vector<8x128xf32> -> vector<8x128xf32>
    %236 = vector.extract_strided_slice %221 {offsets = [0, 256], sizes = [8, 128], strides = [1, 1]} : vector<8x512xf32> to vector<8x128xf32>
    %237 = math.tanh %236 : vector<8x128xf32>
    %238 = vector.extract_strided_slice %221 {offsets = [0, 384], sizes = [8, 128], strides = [1, 1]} : vector<8x512xf32> to vector<8x128xf32>
    %cst_71 = arith.constant 0.000000e+00 : f32
    %239 = vector.broadcast %cst_71 : f32 to vector<8x128xf32>
    %240 = arith.subf %239, %238 : vector<8x128xf32>
    %241 = math.exp %240 : vector<8x128xf32>
    %cst_72 = arith.constant 1.000000e+00 : f32
    %242 = vector.broadcast %cst_72 : f32 to vector<8x128xf32>
    %243 = arith.addf %242, %241 : vector<8x128xf32>
    %244 = tpu.reciprocal %243 {approx = true} : vector<8x128xf32> -> vector<8x128xf32>
    %245 = arith.mulf %235, %206 : vector<8x128xf32>
    %246 = arith.mulf %228, %237 : vector<8x128xf32>
    %247 = arith.addf %245, %246 : vector<8x128xf32>
    %248 = math.tanh %247 : vector<8x128xf32>
    %249 = arith.mulf %244, %248 : vector<8x128xf32>
    %250 = arith.addi %4, %c4_i32 : i32
    %251 = vector.broadcast %250 : i32 to vector<8x1xi32>
    %252 = arith.cmpi sgt, %3, %251 : vector<8x1xi32>
    %253 = vector.shape_cast %252 : vector<8x1xi1> to vector<8x1xi1>
    %254 = vector.broadcast %253 : vector<8x1xi1> to vector<8x128xi1>
    %255 = arith.select %254, %249, %203 : vector<8x128xi1>, vector<8x128xf32>
    %256 = vector.shape_cast %252 : vector<8x1xi1> to vector<8x1xi1>
    %257 = vector.broadcast %256 : vector<8x1xi1> to vector<8x128xi1>
    %258 = arith.select %257, %247, %206 : vector<8x128xi1>, vector<8x128xf32>
    %cst_73 = arith.constant 0.000000e+00 : f32
    %259 = vector.shape_cast %252 : vector<8x1xi1> to vector<8x1xi1>
    %260 = vector.broadcast %259 : vector<8x1xi1> to vector<8x128xi1>
    %261 = vector.broadcast %cst_73 : f32 to vector<8x128xf32>
    %262 = arith.select %260, %249, %261 : vector<8x128xi1>, vector<8x128xf32>
    %263 = arith.index_cast %c4_i32 : i32 to index
    %c0_74 = arith.constant 0 : index
    %c0_75 = arith.constant 0 : index
    %264 = vector.load %arg5[%263, %c0_74, %c0_75] : memref<8x8x128xf32, #tpu.memory_space<vmem>>, vector<1x8x128xf32>
    %265 = vector.shape_cast %264 : vector<1x8x128xf32> to vector<8x128xf32>
    %266 = vector.shape_cast %262 : vector<8x128xf32> to vector<1x8x128xf32>
    tpu.vector_store %arg5[%263, %c0_74, %c0_75], %266 {strides = array<i32>} : memref<8x8x128xf32, #tpu.memory_space<vmem>>, vector<1x8x128xf32>,
    %c5_i32 = arith.constant 5 : i32
    %267 = arith.index_cast %c5_i32 : i32 to index
    %c0_76 = arith.constant 0 : index
    %c0_77 = arith.constant 0 : index
    %268 = vector.load %arg3[%267, %c0_76, %c0_77] : memref<8x8x512xf32, #tpu.memory_space<vmem>>, vector<1x8x512xf32>
    %269 = vector.shape_cast %268 : vector<1x8x512xf32> to vector<8x512xf32>
    %270 = arith.truncf %255 : vector<8x128xf32> to vector<8x128xbf16>
    %c0_78 = arith.constant 0 : index
    %c0_79 = arith.constant 0 : index
    %271 = vector.load %arg4[%c0_78, %c0_79] : memref<128x512xbf16, #tpu.memory_space<vmem>>, vector<128x512xbf16>
    %cst_80 = arith.constant dense<0.000000e+00> : vector<8x512xf32>
    %272 = tpu.matmul %270, %271, %cst_80 {dimension_numbers = #tpu.dot_dimension_numbers<[1], [0], [0], [1], [0, 0, 1, 1], [], []>} : vector<8x128xbf16>, vector<128x512xbf16>, vector<8x512xf32> -> vector<8x512xf32>
    %273 = arith.addf %269, %272 : vector<8x512xf32>
    %274 = vector.extract_strided_slice %273 {offsets = [0, 0], sizes = [8, 128], strides = [1, 1]} : vector<8x512xf32> to vector<8x128xf32>
    %cst_81 = arith.constant 0.000000e+00 : f32
    %275 = vector.broadcast %cst_81 : f32 to vector<8x128xf32>
    %276 = arith.subf %275, %274 : vector<8x128xf32>
    %277 = math.exp %276 : vector<8x128xf32>
    %cst_82 = arith.constant 1.000000e+00 : f32
    %278 = vector.broadcast %cst_82 : f32 to vector<8x128xf32>
    %279 = arith.addf %278, %277 : vector<8x128xf32>
    %280 = tpu.reciprocal %279 {approx = true} : vector<8x128xf32> -> vector<8x128xf32>
    %281 = vector.extract_strided_slice %273 {offsets = [0, 128], sizes = [8, 128], strides = [1, 1]} : vector<8x512xf32> to vector<8x128xf32>
    %cst_83 = arith.constant 0.000000e+00 : f32
    %282 = vector.broadcast %cst_83 : f32 to vector<8x128xf32>
    %283 = arith.subf %282, %281 : vector<8x128xf32>
    %284 = math.exp %283 : vector<8x128xf32>
    %cst_84 = arith.constant 1.000000e+00 : f32
    %285 = vector.broadcast %cst_84 : f32 to vector<8x128xf32>
    %286 = arith.addf %285, %284 : vector<8x128xf32>
    %287 = tpu.reciprocal %286 {approx = true} : vector<8x128xf32> -> vector<8x128xf32>
    %288 = vector.extract_strided_slice %273 {offsets = [0, 256], sizes = [8, 128], strides = [1, 1]} : vector<8x512xf32> to vector<8x128xf32>
    %289 = math.tanh %288 : vector<8x128xf32>
    %290 = vector.extract_strided_slice %273 {offsets = [0, 384], sizes = [8, 128], strides = [1, 1]} : vector<8x512xf32> to vector<8x128xf32>
    %cst_85 = arith.constant 0.000000e+00 : f32
    %291 = vector.broadcast %cst_85 : f32 to vector<8x128xf32>
    %292 = arith.subf %291, %290 : vector<8x128xf32>
    %293 = math.exp %292 : vector<8x128xf32>
    %cst_86 = arith.constant 1.000000e+00 : f32
    %294 = vector.broadcast %cst_86 : f32 to vector<8x128xf32>
    %295 = arith.addf %294, %293 : vector<8x128xf32>
    %296 = tpu.reciprocal %295 {approx = true} : vector<8x128xf32> -> vector<8x128xf32>
    %297 = arith.mulf %287, %258 : vector<8x128xf32>
    %298 = arith.mulf %280, %289 : vector<8x128xf32>
    %299 = arith.addf %297, %298 : vector<8x128xf32>
    %300 = math.tanh %299 : vector<8x128xf32>
    %301 = arith.mulf %296, %300 : vector<8x128xf32>
    %302 = arith.addi %4, %c5_i32 : i32
    %303 = vector.broadcast %302 : i32 to vector<8x1xi32>
    %304 = arith.cmpi sgt, %3, %303 : vector<8x1xi32>
    %305 = vector.shape_cast %304 : vector<8x1xi1> to vector<8x1xi1>
    %306 = vector.broadcast %305 : vector<8x1xi1> to vector<8x128xi1>
    %307 = arith.select %306, %301, %255 : vector<8x128xi1>, vector<8x128xf32>
    %308 = vector.shape_cast %304 : vector<8x1xi1> to vector<8x1xi1>
    %309 = vector.broadcast %308 : vector<8x1xi1> to vector<8x128xi1>
    %310 = arith.select %309, %299, %258 : vector<8x128xi1>, vector<8x128xf32>
    %cst_87 = arith.constant 0.000000e+00 : f32
    %311 = vector.shape_cast %304 : vector<8x1xi1> to vector<8x1xi1>
    %312 = vector.broadcast %311 : vector<8x1xi1> to vector<8x128xi1>
    %313 = vector.broadcast %cst_87 : f32 to vector<8x128xf32>
    %314 = arith.select %312, %301, %313 : vector<8x128xi1>, vector<8x128xf32>
    %315 = arith.index_cast %c5_i32 : i32 to index
    %c0_88 = arith.constant 0 : index
    %c0_89 = arith.constant 0 : index
    %316 = vector.load %arg5[%315, %c0_88, %c0_89] : memref<8x8x128xf32, #tpu.memory_space<vmem>>, vector<1x8x128xf32>
    %317 = vector.shape_cast %316 : vector<1x8x128xf32> to vector<8x128xf32>
    %318 = vector.shape_cast %314 : vector<8x128xf32> to vector<1x8x128xf32>
    tpu.vector_store %arg5[%315, %c0_88, %c0_89], %318 {strides = array<i32>} : memref<8x8x128xf32, #tpu.memory_space<vmem>>, vector<1x8x128xf32>,
    %c6_i32 = arith.constant 6 : i32
    %319 = arith.index_cast %c6_i32 : i32 to index
    %c0_90 = arith.constant 0 : index
    %c0_91 = arith.constant 0 : index
    %320 = vector.load %arg3[%319, %c0_90, %c0_91] : memref<8x8x512xf32, #tpu.memory_space<vmem>>, vector<1x8x512xf32>
    %321 = vector.shape_cast %320 : vector<1x8x512xf32> to vector<8x512xf32>
    %322 = arith.truncf %307 : vector<8x128xf32> to vector<8x128xbf16>
    %c0_92 = arith.constant 0 : index
    %c0_93 = arith.constant 0 : index
    %323 = vector.load %arg4[%c0_92, %c0_93] : memref<128x512xbf16, #tpu.memory_space<vmem>>, vector<128x512xbf16>
    %cst_94 = arith.constant dense<0.000000e+00> : vector<8x512xf32>
    %324 = tpu.matmul %322, %323, %cst_94 {dimension_numbers = #tpu.dot_dimension_numbers<[1], [0], [0], [1], [0, 0, 1, 1], [], []>} : vector<8x128xbf16>, vector<128x512xbf16>, vector<8x512xf32> -> vector<8x512xf32>
    %325 = arith.addf %321, %324 : vector<8x512xf32>
    %326 = vector.extract_strided_slice %325 {offsets = [0, 0], sizes = [8, 128], strides = [1, 1]} : vector<8x512xf32> to vector<8x128xf32>
    %cst_95 = arith.constant 0.000000e+00 : f32
    %327 = vector.broadcast %cst_95 : f32 to vector<8x128xf32>
    %328 = arith.subf %327, %326 : vector<8x128xf32>
    %329 = math.exp %328 : vector<8x128xf32>
    %cst_96 = arith.constant 1.000000e+00 : f32
    %330 = vector.broadcast %cst_96 : f32 to vector<8x128xf32>
    %331 = arith.addf %330, %329 : vector<8x128xf32>
    %332 = tpu.reciprocal %331 {approx = true} : vector<8x128xf32> -> vector<8x128xf32>
    %333 = vector.extract_strided_slice %325 {offsets = [0, 128], sizes = [8, 128], strides = [1, 1]} : vector<8x512xf32> to vector<8x128xf32>
    %cst_97 = arith.constant 0.000000e+00 : f32
    %334 = vector.broadcast %cst_97 : f32 to vector<8x128xf32>
    %335 = arith.subf %334, %333 : vector<8x128xf32>
    %336 = math.exp %335 : vector<8x128xf32>
    %cst_98 = arith.constant 1.000000e+00 : f32
    %337 = vector.broadcast %cst_98 : f32 to vector<8x128xf32>
    %338 = arith.addf %337, %336 : vector<8x128xf32>
    %339 = tpu.reciprocal %338 {approx = true} : vector<8x128xf32> -> vector<8x128xf32>
    %340 = vector.extract_strided_slice %325 {offsets = [0, 256], sizes = [8, 128], strides = [1, 1]} : vector<8x512xf32> to vector<8x128xf32>
    %341 = math.tanh %340 : vector<8x128xf32>
    %342 = vector.extract_strided_slice %325 {offsets = [0, 384], sizes = [8, 128], strides = [1, 1]} : vector<8x512xf32> to vector<8x128xf32>
    %cst_99 = arith.constant 0.000000e+00 : f32
    %343 = vector.broadcast %cst_99 : f32 to vector<8x128xf32>
    %344 = arith.subf %343, %342 : vector<8x128xf32>
    %345 = math.exp %344 : vector<8x128xf32>
    %cst_100 = arith.constant 1.000000e+00 : f32
    %346 = vector.broadcast %cst_100 : f32 to vector<8x128xf32>
    %347 = arith.addf %346, %345 : vector<8x128xf32>
    %348 = tpu.reciprocal %347 {approx = true} : vector<8x128xf32> -> vector<8x128xf32>
    %349 = arith.mulf %339, %310 : vector<8x128xf32>
    %350 = arith.mulf %332, %341 : vector<8x128xf32>
    %351 = arith.addf %349, %350 : vector<8x128xf32>
    %352 = math.tanh %351 : vector<8x128xf32>
    %353 = arith.mulf %348, %352 : vector<8x128xf32>
    %354 = arith.addi %4, %c6_i32 : i32
    %355 = vector.broadcast %354 : i32 to vector<8x1xi32>
    %356 = arith.cmpi sgt, %3, %355 : vector<8x1xi32>
    %357 = vector.shape_cast %356 : vector<8x1xi1> to vector<8x1xi1>
    %358 = vector.broadcast %357 : vector<8x1xi1> to vector<8x128xi1>
    %359 = arith.select %358, %353, %307 : vector<8x128xi1>, vector<8x128xf32>
    %360 = vector.shape_cast %356 : vector<8x1xi1> to vector<8x1xi1>
    %361 = vector.broadcast %360 : vector<8x1xi1> to vector<8x128xi1>
    %362 = arith.select %361, %351, %310 : vector<8x128xi1>, vector<8x128xf32>
    %cst_101 = arith.constant 0.000000e+00 : f32
    %363 = vector.shape_cast %356 : vector<8x1xi1> to vector<8x1xi1>
    %364 = vector.broadcast %363 : vector<8x1xi1> to vector<8x128xi1>
    %365 = vector.broadcast %cst_101 : f32 to vector<8x128xf32>
    %366 = arith.select %364, %353, %365 : vector<8x128xi1>, vector<8x128xf32>
    %367 = arith.index_cast %c6_i32 : i32 to index
    %c0_102 = arith.constant 0 : index
    %c0_103 = arith.constant 0 : index
    %368 = vector.load %arg5[%367, %c0_102, %c0_103] : memref<8x8x128xf32, #tpu.memory_space<vmem>>, vector<1x8x128xf32>
    %369 = vector.shape_cast %368 : vector<1x8x128xf32> to vector<8x128xf32>
    %370 = vector.shape_cast %366 : vector<8x128xf32> to vector<1x8x128xf32>
    tpu.vector_store %arg5[%367, %c0_102, %c0_103], %370 {strides = array<i32>} : memref<8x8x128xf32, #tpu.memory_space<vmem>>, vector<1x8x128xf32>,
    %c7_i32 = arith.constant 7 : i32
    %371 = arith.index_cast %c7_i32 : i32 to index
    %c0_104 = arith.constant 0 : index
    %c0_105 = arith.constant 0 : index
    %372 = vector.load %arg3[%371, %c0_104, %c0_105] : memref<8x8x512xf32, #tpu.memory_space<vmem>>, vector<1x8x512xf32>
    %373 = vector.shape_cast %372 : vector<1x8x512xf32> to vector<8x512xf32>
    %374 = arith.truncf %359 : vector<8x128xf32> to vector<8x128xbf16>
    %c0_106 = arith.constant 0 : index
    %c0_107 = arith.constant 0 : index
    %375 = vector.load %arg4[%c0_106, %c0_107] : memref<128x512xbf16, #tpu.memory_space<vmem>>, vector<128x512xbf16>
    %cst_108 = arith.constant dense<0.000000e+00> : vector<8x512xf32>
    %376 = tpu.matmul %374, %375, %cst_108 {dimension_numbers = #tpu.dot_dimension_numbers<[1], [0], [0], [1], [0, 0, 1, 1], [], []>} : vector<8x128xbf16>, vector<128x512xbf16>, vector<8x512xf32> -> vector<8x512xf32>
    %377 = arith.addf %373, %376 : vector<8x512xf32>
    %378 = vector.extract_strided_slice %377 {offsets = [0, 0], sizes = [8, 128], strides = [1, 1]} : vector<8x512xf32> to vector<8x128xf32>
    %cst_109 = arith.constant 0.000000e+00 : f32
    %379 = vector.broadcast %cst_109 : f32 to vector<8x128xf32>
    %380 = arith.subf %379, %378 : vector<8x128xf32>
    %381 = math.exp %380 : vector<8x128xf32>
    %cst_110 = arith.constant 1.000000e+00 : f32
    %382 = vector.broadcast %cst_110 : f32 to vector<8x128xf32>
    %383 = arith.addf %382, %381 : vector<8x128xf32>
    %384 = tpu.reciprocal %383 {approx = true} : vector<8x128xf32> -> vector<8x128xf32>
    %385 = vector.extract_strided_slice %377 {offsets = [0, 128], sizes = [8, 128], strides = [1, 1]} : vector<8x512xf32> to vector<8x128xf32>
    %cst_111 = arith.constant 0.000000e+00 : f32
    %386 = vector.broadcast %cst_111 : f32 to vector<8x128xf32>
    %387 = arith.subf %386, %385 : vector<8x128xf32>
    %388 = math.exp %387 : vector<8x128xf32>
    %cst_112 = arith.constant 1.000000e+00 : f32
    %389 = vector.broadcast %cst_112 : f32 to vector<8x128xf32>
    %390 = arith.addf %389, %388 : vector<8x128xf32>
    %391 = tpu.reciprocal %390 {approx = true} : vector<8x128xf32> -> vector<8x128xf32>
    %392 = vector.extract_strided_slice %377 {offsets = [0, 256], sizes = [8, 128], strides = [1, 1]} : vector<8x512xf32> to vector<8x128xf32>
    %393 = math.tanh %392 : vector<8x128xf32>
    %394 = vector.extract_strided_slice %377 {offsets = [0, 384], sizes = [8, 128], strides = [1, 1]} : vector<8x512xf32> to vector<8x128xf32>
    %cst_113 = arith.constant 0.000000e+00 : f32
    %395 = vector.broadcast %cst_113 : f32 to vector<8x128xf32>
    %396 = arith.subf %395, %394 : vector<8x128xf32>
    %397 = math.exp %396 : vector<8x128xf32>
    %cst_114 = arith.constant 1.000000e+00 : f32
    %398 = vector.broadcast %cst_114 : f32 to vector<8x128xf32>
    %399 = arith.addf %398, %397 : vector<8x128xf32>
    %400 = tpu.reciprocal %399 {approx = true} : vector<8x128xf32> -> vector<8x128xf32>
    %401 = arith.mulf %391, %362 : vector<8x128xf32>
    %402 = arith.mulf %384, %393 : vector<8x128xf32>
    %403 = arith.addf %401, %402 : vector<8x128xf32>
    %404 = math.tanh %403 : vector<8x128xf32>
    %405 = arith.mulf %400, %404 : vector<8x128xf32>
    %406 = arith.addi %4, %c7_i32 : i32
    %407 = vector.broadcast %406 : i32 to vector<8x1xi32>
    %408 = arith.cmpi sgt, %3, %407 : vector<8x1xi32>
    %409 = vector.shape_cast %408 : vector<8x1xi1> to vector<8x1xi1>
    %410 = vector.broadcast %409 : vector<8x1xi1> to vector<8x128xi1>
    %411 = arith.select %410, %405, %359 : vector<8x128xi1>, vector<8x128xf32>
    %412 = vector.shape_cast %408 : vector<8x1xi1> to vector<8x1xi1>
    %413 = vector.broadcast %412 : vector<8x1xi1> to vector<8x128xi1>
    %414 = arith.select %413, %403, %362 : vector<8x128xi1>, vector<8x128xf32>
    %cst_115 = arith.constant 0.000000e+00 : f32
    %415 = vector.shape_cast %408 : vector<8x1xi1> to vector<8x1xi1>
    %416 = vector.broadcast %415 : vector<8x1xi1> to vector<8x128xi1>
    %417 = vector.broadcast %cst_115 : f32 to vector<8x128xf32>
    %418 = arith.select %416, %405, %417 : vector<8x128xi1>, vector<8x128xf32>
    %419 = arith.index_cast %c7_i32 : i32 to index
    %c0_116 = arith.constant 0 : index
    %c0_117 = arith.constant 0 : index
    %420 = vector.load %arg5[%419, %c0_116, %c0_117] : memref<8x8x128xf32, #tpu.memory_space<vmem>>, vector<1x8x128xf32>
    %421 = vector.shape_cast %420 : vector<1x8x128xf32> to vector<8x128xf32>
    %422 = vector.shape_cast %418 : vector<8x128xf32> to vector<1x8x128xf32>
    tpu.vector_store %arg5[%419, %c0_116, %c0_117], %422 {strides = array<i32>} : memref<8x8x128xf32, #tpu.memory_space<vmem>>, vector<1x8x128xf32>,
    %c8_i32_118 = arith.constant 8 : i32
    %c0_119 = arith.constant 0 : index
    %c0_120 = arith.constant 0 : index
    %423 = vector.load %arg6[%c0_119, %c0_120] : memref<8x128xf32, #tpu.memory_space<vmem>>, vector<8x128xf32>
    tpu.vector_store %arg6[%c0_119, %c0_120], %411 {strides = array<i32>} : memref<8x128xf32, #tpu.memory_space<vmem>>, vector<8x128xf32>,
    %c0_121 = arith.constant 0 : index
    %c0_122 = arith.constant 0 : index
    %424 = vector.load %arg7[%c0_121, %c0_122] : memref<8x128xf32, #tpu.memory_space<vmem>>, vector<8x128xf32>
    tpu.vector_store %arg7[%c0_121, %c0_122], %414 {strides = array<i32>} : memref<8x128xf32, #tpu.memory_space<vmem>>, vector<8x128xf32>,
    return
  }
  func.func @transform_0(%arg0: i32, %arg1: i32) -> (i32, i32) {
    %c0_i32 = arith.constant 0 : i32
    %c0_i32_0 = arith.constant 0 : i32
    return %arg0, %c0_i32 : i32, i32
  }
  func.func @transform_1(%arg0: i32, %arg1: i32) -> (i32, i32, i32) {
    %c0_i32 = arith.constant 0 : i32
    %c0_i32_0 = arith.constant 0 : i32
    return %arg1, %arg0, %c0_i32 : i32, i32, i32
  }
  func.func @transform_2(%arg0: i32, %arg1: i32) -> (i32, i32) {
    %c0_i32 = arith.constant 0 : i32
    %c0_i32_0 = arith.constant 0 : i32
    %c0_i32_1 = arith.constant 0 : i32
    return %c0_i32, %c0_i32_0 : i32, i32
  }
  func.func @transform_3(%arg0: i32, %arg1: i32) -> (i32, i32, i32) {
    %c0_i32 = arith.constant 0 : i32
    %c0_i32_0 = arith.constant 0 : i32
    return %arg1, %arg0, %c0_i32 : i32, i32, i32
  }
  func.func @transform_4(%arg0: i32, %arg1: i32) -> (i32, i32) {
    %c0_i32 = arith.constant 0 : i32
    %c0_i32_0 = arith.constant 0 : i32
    return %arg0, %c0_i32 : i32, i32
  }
  func.func @transform_5(%arg0: i32, %arg1: i32) -> (i32, i32) {
    %c0_i32 = arith.constant 0 : i32
    %c0_i32_0 = arith.constant 0 : i32
    return %arg0, %c0_i32 : i32, i32
  }
}

</mosaic_0001>

<llo_original>
// kernel: tpu_custom_call.1
$region0: #{tpu_custom_call.1}
  #allocation0 [shape = 'u32[]', space=smem, size = 0x4, offset = 0x4, fixed_abs, tag = 'smem constant byte address 0x4 - core index']
  #allocation1 [shape = 'u32[144,128]{1,0:T(1,128)}', space=vmem, size = 0x12000, scoped, tag = 'internal scratch']
  %s0 = inlined_call_operand.vmem [shape: s32[8,1], index: 0, kind: input, shape index: {}]
  %s1 = inlined_call_operand.hbm [shape: f32[8,8,512], index: 1, kind: input, shape index: {}]
  %s2 = inlined_call_operand.hbm [shape: bf16[128,512], index: 2, kind: input, shape index: {}]
  %s3 = inlined_call_operand.hbm [shape: f32[8,8,128], index: 3, kind: output, shape index: {0}]
  %s4 = inlined_call_operand.hbm [shape: f32[8,128], index: 4, kind: output, shape index: {1}]
  %s5 = inlined_call_operand.hbm [shape: f32[8,128], index: 5, kind: output, shape index: {2}]
  %6 = xla_tuple %s3, %s4, %s5
  %s7 = sld [smem:[#allocation0]]
  $region50: #{tpu_custom_call.1} parent=0
    _
  %s9 = ssub.s32 1, %s7
  %s10 = scalar_select 0, %s9, %s7
  $region1: #{tpu_custom_call.1} parent=0
    #allocation2 [shape = 'u8[131072]{0}', space=vmem, size = 0x20000, scoped, tag = 'input window, operand 1, single buffered']
    #allocation3 [shape = 's32[1]{0}', space=sflag, size = 0x4, scoped, tag = 'scoped memory for tpu_custom_call.1']
    #allocation4 [shape = 's32[1]{0}', space=sflag, size = 0x4, scoped, tag = 'scoped memory for tpu_custom_call.1']
    #allocation5 [shape = 'u8[131072]{0}', space=vmem, size = 0x20000, scoped, tag = 'input window, operand 2, single buffered']
    #allocation6 [shape = 's32[1]{0}', space=sflag, size = 0x4, scoped, tag = 'scoped memory for tpu_custom_call.1']
    #allocation7 [shape = 'u8[32768]{0}', space=vmem, size = 0x8000, scoped, tag = 'output window, operand 0, single buffered']
    #allocation8 [shape = 'u8[4096]{0}', space=vmem, size = 0x1000, scoped, tag = 'output window, operand 1, single buffered']
    #allocation9 [shape = 's32[1]{0}', space=sflag, size = 0x4, scoped, tag = 'scoped memory for tpu_custom_call.1']
    #allocation10 [shape = 'u8[4096]{0}', space=vmem, size = 0x1000, scoped, tag = 'output window, operand 2, single buffered']
    %11 = vsyncpa [#allocation3], 0
    %12 = vsyncpa [#allocation6], 0
    %13 = vsyncpa [#allocation4], 0
    %14 = vsyncpa [#allocation9], 0
    // Predicated region
    $region2: #{tpu_custom_call.1} parent=1 // pred_check
      _
    $region3: #{tpu_custom_call.1} parent=1 // pred_check_branch
      %16 = sbr.rel (0) target = $region5
    $region4: #{tpu_custom_call.1} parent=1 // pred_region
      _
    $region5: #{tpu_custom_call.1} parent=1 // pred_fallthru
      _
    // Predicated region
    $region6: #{tpu_custom_call.1} parent=1 // pred_check
      _
    $region7: #{tpu_custom_call.1} parent=1 // pred_check_branch
      %18 = sbr.rel (0) target = $region9
    $region8: #{tpu_custom_call.1} parent=1 // pred_region
      %s20 = ssub.s32 4096, 4096
      %21 = vsyncadd [#allocation3], %s20
      %s22 = sshll.u32 [#allocation2], 4
      %s23 = int_to_ptr.vmem [resolvable:$true] %s22
      %28 = dma.hbm_to_vmem [thread:$0]  %s1, 4096, %s23, [#allocation3], 512, 512, 32
    $region9: #{tpu_custom_call.1} parent=1 // pred_fallthru
      _
    // Predicated region
    $region10: #{tpu_custom_call.1} parent=1 // pred_check
      _
    $region11: #{tpu_custom_call.1} parent=1 // pred_check_branch
      %30 = sbr.rel (0) target = $region13
    $region12: #{tpu_custom_call.1} parent=1 // pred_region
      %s32 = ssub.s32 4096, 4096
      %33 = vsyncadd [#allocation6], %s32
      %s34 = sshll.u32 [#allocation5], 4
      %s35 = int_to_ptr.vmem [resolvable:$true] %s34
      %40 = dma.hbm_to_vmem [thread:$0]  %s2, 4096, %s35, [#allocation6], 256, 256, 16
    $region13: #{tpu_custom_call.1} parent=1 // pred_fallthru
      _
    // Predicated region
    $region14: #{tpu_custom_call.1} parent=1 // pred_check
      _
    $region15: #{tpu_custom_call.1} parent=1 // pred_check_branch
      %42 = sbr.rel (0) target = $region17
    $region16: #{tpu_custom_call.1} parent=1 // pred_region
      %43 = dma.done [#allocation3], 4096
    $region17: #{tpu_custom_call.1} parent=1 // pred_fallthru
      _
    // Predicated region
    $region18: #{tpu_custom_call.1} parent=1 // pred_check
      _
    $region19: #{tpu_custom_call.1} parent=1 // pred_check_branch
      %45 = sbr.rel (0) target = $region21
    $region20: #{tpu_custom_call.1} parent=1 // pred_region
      %46 = dma.done [#allocation6], 4096
    $region21: #{tpu_custom_call.1} parent=1 // pred_fallthru
      _
    %p48 = scmp.eq.s32.totalorder 0, 0
    // Predicated region
    $region22: #{tpu_custom_call.1} parent=1 // pred_check
      %p49 = pneg %p48
    $region23: #{tpu_custom_call.1} parent=1 // pred_check_branch
      %51 = sbr.rel (%p49) target = $region25
    $region24: #{tpu_custom_call.1} parent=1 // pred_region
      %52 = vst [vmem:[#allocation8] sm:$0xff] 0.0
      %53 = vst [vmem:[#allocation10] sm:$0xff] 0.0
    $region25: #{tpu_custom_call.1} parent=1 // pred_fallthru
      _
    %v54 = vld [vmem:[%s0] sm:$0xff]
    %s55 = smul.u32 0, 8
    %v56 = vld [vmem:[#allocation8] sm:$0xff]
    %v57 = vld [vmem:[#allocation10] sm:$0xff]
    %v58 = vld [vmem:[#allocation2] sm:$0xff]
    %v59 = vld [vmem:[#allocation2 + $0x8] sm:$0xff]
    %v60 = vld [vmem:[#allocation2 + $0x10] sm:$0xff]
    %v61 = vld [vmem:[#allocation2 + $0x18] sm:$0xff]
    %v62 = vpack.c.bf16 %v56, %v56
    %v63 = vld [vmem:[#allocation5] sm:$0xff]
    %v64 = vld [vmem:[#allocation5 + $0x8] sm:$0xff]
    %v65 = vld [vmem:[#allocation5 + $0x10] sm:$0xff]
    %v66 = vld [vmem:[#allocation5 + $0x18] sm:$0xff]
    %v67 = vld [vmem:[#allocation5 + $0x20] sm:$0xff]
    %v68 = vld [vmem:[#allocation5 + $0x28] sm:$0xff]
    %v69 = vld [vmem:[#allocation5 + $0x30] sm:$0xff]
    %v70 = vld [vmem:[#allocation5 + $0x38] sm:$0xff]
    %v71 = vld [vmem:[#allocation5 + $0x40] sm:$0xff]
    %v72 = vld [vmem:[#allocation5 + $0x48] sm:$0xff]
    %v73 = vld [vmem:[#allocation5 + $0x50] sm:$0xff]
    %v74 = vld [vmem:[#allocation5 + $0x58] sm:$0xff]
    %v75 = vld [vmem:[#allocation5 + $0x60] sm:$0xff]
    %v76 = vld [vmem:[#allocation5 + $0x68] sm:$0xff]
    %v77 = vld [vmem:[#allocation5 + $0x70] sm:$0xff]
    %v78 = vld [vmem:[#allocation5 + $0x78] sm:$0xff]
    %v79 = vld [vmem:[#allocation5 + $0x80] sm:$0xff]
    %v80 = vld [vmem:[#allocation5 + $0x88] sm:$0xff]
    %v81 = vld [vmem:[#allocation5 + $0x90] sm:$0xff]
    %v82 = vld [vmem:[#allocation5 + $0x98] sm:$0xff]
    %v83 = vld [vmem:[#allocation5 + $0xa0] sm:$0xff]
    %v84 = vld [vmem:[#allocation5 + $0xa8] sm:$0xff]
    %v85 = vld [vmem:[#allocation5 + $0xb0] sm:$0xff]
    %v86 = vld [vmem:[#allocation5 + $0xb8] sm:$0xff]
    %v87 = vld [vmem:[#allocation5 + $0xc0] sm:$0xff]
    %v88 = vld [vmem:[#allocation5 + $0xc8] sm:$0xff]
    %v89 = vld [vmem:[#allocation5 + $0xd0] sm:$0xff]
    %v90 = vld [vmem:[#allocation5 + $0xd8] sm:$0xff]
    %v91 = vld [vmem:[#allocation5 + $0xe0] sm:$0xff]
    %v92 = vld [vmem:[#allocation5 + $0xe8] sm:$0xff]
    %v93 = vld [vmem:[#allocation5 + $0xf0] sm:$0xff]
    %v94 = vld [vmem:[#allocation5 + $0xf8] sm:$0xff]
    %v127 = vunpack.c.l.b16 %v63
    %v128 = vunpack.c.h.b16 %v63
    %v129 = vunpack.c.l.b16 %v64
    %v130 = vunpack.c.h.b16 %v64
    %v131 = vunpack.c.l.b16 %v65
    %v132 = vunpack.c.h.b16 %v65
    %v133 = vunpack.c.l.b16 %v66
    %v134 = vunpack.c.h.b16 %v66
    %v135 = vunpack.c.l.b16 %v67
    %v136 = vunpack.c.h.b16 %v67
    %v137 = vunpack.c.l.b16 %v68
    %v138 = vunpack.c.h.b16 %v68
    %v139 = vunpack.c.l.b16 %v69
    %v140 = vunpack.c.h.b16 %v69
    %v141 = vunpack.c.l.b16 %v70
    %v142 = vunpack.c.h.b16 %v70
    %v143 = vunpack.c.l.b16 %v71
    %v144 = vunpack.c.h.b16 %v71
    %v145 = vunpack.c.l.b16 %v72
    %v146 = vunpack.c.h.b16 %v72
    %v147 = vunpack.c.l.b16 %v73
    %v148 = vunpack.c.h.b16 %v73
    %v149 = vunpack.c.l.b16 %v74
    %v150 = vunpack.c.h.b16 %v74
    %v151 = vunpack.c.l.b16 %v75
    %v152 = vunpack.c.h.b16 %v75
    %v153 = vunpack.c.l.b16 %v76
    %v154 = vunpack.c.h.b16 %v76
    %v155 = vunpack.c.l.b16 %v77
    %v156 = vunpack.c.h.b16 %v77
    %v157 = vunpack.c.l.b16 %v78
    %v158 = vunpack.c.h.b16 %v78
    %v159 = vunpack.c.l.b16 %v79
    %v160 = vunpack.c.h.b16 %v79
    %v161 = vunpack.c.l.b16 %v80
    %v162 = vunpack.c.h.b16 %v80
    %v163 = vunpack.c.l.b16 %v81
    %v164 = vunpack.c.h.b16 %v81
    %v165 = vunpack.c.l.b16 %v82
    %v166 = vunpack.c.h.b16 %v82
    %v167 = vunpack.c.l.b16 %v83
    %v168 = vunpack.c.h.b16 %v83
    %v169 = vunpack.c.l.b16 %v84
    %v170 = vunpack.c.h.b16 %v84
    %v171 = vunpack.c.l.b16 %v85
    %v172 = vunpack.c.h.b16 %v85
    %v173 = vunpack.c.l.b16 %v86
    %v174 = vunpack.c.h.b16 %v86
    %v175 = vunpack.c.l.b16 %v87
    %v176 = vunpack.c.h.b16 %v87
    %v177 = vunpack.c.l.b16 %v88
    %v178 = vunpack.c.h.b16 %v88
    %v179 = vunpack.c.l.b16 %v89
    %v180 = vunpack.c.h.b16 %v89
    %v181 = vunpack.c.l.b16 %v90
    %v182 = vunpack.c.h.b16 %v90
    %v183 = vunpack.c.l.b16 %v91
    %v184 = vunpack.c.h.b16 %v91
    %v185 = vunpack.c.l.b16 %v92
    %v186 = vunpack.c.h.b16 %v92
    %v187 = vunpack.c.l.b16 %v93
    %v188 = vunpack.c.h.b16 %v93
    %v189 = vunpack.c.l.b16 %v94
    %v190 = vunpack.c.h.b16 %v94
    %v191 = vpack.c.b16 %v131, %v127
    %v192 = vpack.c.b16 %v132, %v128
    %v193 = vpack.c.b16 %v133, %v129
    %v194 = vpack.c.b16 %v134, %v130
    %v195 = vpack.c.b16 %v139, %v135
    %v196 = vpack.c.b16 %v140, %v136
    %v197 = vpack.c.b16 %v141, %v137
    %v198 = vpack.c.b16 %v142, %v138
    %v199 = vpack.c.b16 %v147, %v143
    %v200 = vpack.c.b16 %v148, %v144
    %v201 = vpack.c.b16 %v149, %v145
    %v202 = vpack.c.b16 %v150, %v146
    %v203 = vpack.c.b16 %v155, %v151
    %v204 = vpack.c.b16 %v156, %v152
    %v205 = vpack.c.b16 %v157, %v153
    %v206 = vpack.c.b16 %v158, %v154
    %v207 = vpack.c.b16 %v163, %v159
    %v208 = vpack.c.b16 %v164, %v160
    %v209 = vpack.c.b16 %v165, %v161
    %v210 = vpack.c.b16 %v166, %v162
    %v211 = vpack.c.b16 %v171, %v167
    %v212 = vpack.c.b16 %v172, %v168
    %v213 = vpack.c.b16 %v173, %v169
    %v214 = vpack.c.b16 %v174, %v170
    %v215 = vpack.c.b16 %v179, %v175
    %v216 = vpack.c.b16 %v180, %v176
    %v217 = vpack.c.b16 %v181, %v177
    %v218 = vpack.c.b16 %v182, %v178
    %v219 = vpack.c.b16 %v187, %v183
    %v220 = vpack.c.b16 %v188, %v184
    %v221 = vpack.c.b16 %v189, %v185
    %v222 = vpack.c.b16 %v190, %v186
    %255 = vmatprep.subr.bf16.mxu0 %v192
    %256 = vmatpush1.bf16.msra.mxu0 %v191
    %257 = vmatprep.subr.bf16.mxu0 %v196
    %258 = vmatpush1.bf16.msra.mxu0 %v195
    %259 = vmatprep.subr.bf16.mxu0 %v200
    %260 = vmatpush1.bf16.msra.mxu0 %v199
    %261 = vmatprep.subr.bf16.mxu0 %v204
    %262 = vmatpush1.bf16.msra.mxu0 %v203
    %263 = vmatprep.subr.bf16.mxu0 %v208
    %264 = vmatpush1.bf16.msra.mxu0 %v207
    %265 = vmatprep.subr.bf16.mxu0 %v212
    %266 = vmatpush1.bf16.msra.mxu0 %v211
    %267 = vmatprep.subr.bf16.mxu0 %v216
    %268 = vmatpush1.bf16.msra.mxu0 %v215
    %269 = vmatprep.subr.bf16.mxu0 %v220
    %270 = vmatpush1.bf16.msra.mxu0 %v219
    %271 = vmatprep.subr.bf16.mxu0 0
    %272 = vmatpush1.bf16.msra.mxu0 0
    %273 = vmatprep.subr.bf16.mxu0 0
    %274 = vmatpush1.bf16.msra.mxu0 0
    %275 = vmatprep.subr.bf16.mxu0 0
    %276 = vmatpush1.bf16.msra.mxu0 0
    %277 = vmatprep.subr.bf16.mxu0 0
    %278 = vmatpush1.bf16.msra.mxu0 0
    %279 = vmatprep.subr.bf16.mxu0 0
    %280 = vmatpush1.bf16.msra.mxu0 0
    %281 = vmatprep.subr.bf16.mxu0 0
    %282 = vmatpush1.bf16.msra.mxu0 0
    %283 = vmatprep.subr.bf16.mxu0 0
    %284 = vmatpush1.bf16.msra.mxu0 0
    %285 = vmatprep.subr.bf16.mxu0 0
    %286 = vmatpush1.bf16.msra.mxu0 0
    %287 = vmatprep.mubr.bf16.mxu0 0
    %288 = vmatmul.mubr.bf16.gmra.mrb[0].mxu0 %v62
    %v289 = vpop.f32.mrb[0].mxu0
    %v290 = vadd.f32 0.0, %v289
    %v291 = vpop.f32.mrb[0].mxu0
    %v292 = vadd.f32 0.0, %v291
    %v293 = vpop.f32.mrb[0].mxu0
    %v294 = vpop.f32.mrb[0].mxu0
    %295 = vdwg.mxu0
    %296 = vmatprep.subr.bf16.mxu0 %v194
    %297 = vmatpush1.bf16.msra.mxu0 %v193
    %298 = vmatprep.subr.bf16.mxu0 %v198
    %299 = vmatpush1.bf16.msra.mxu0 %v197
    %300 = vmatprep.subr.bf16.mxu0 %v202
    %301 = vmatpush1.bf16.msra.mxu0 %v201
    %302 = vmatprep.subr.bf16.mxu0 %v206
    %303 = vmatpush1.bf16.msra.mxu0 %v205
    %304 = vmatprep.subr.bf16.mxu0 %v210
    %305 = vmatpush1.bf16.msra.mxu0 %v209
    %306 = vmatprep.subr.bf16.mxu0 %v214
    %307 = vmatpush1.bf16.msra.mxu0 %v213
    %308 = vmatprep.subr.bf16.mxu0 %v218
    %309 = vmatpush1.bf16.msra.mxu0 %v217
    %310 = vmatprep.subr.bf16.mxu0 %v222
    %311 = vmatpush1.bf16.msra.mxu0 %v221
    %312 = vmatprep.subr.bf16.mxu0 0
    %313 = vmatpush1.bf16.msra.mxu0 0
    %314 = vmatprep.subr.bf16.mxu0 0
    %315 = vmatpush1.bf16.msra.mxu0 0
    %316 = vmatprep.subr.bf16.mxu0 0
    %317 = vmatpush1.bf16.msra.mxu0 0
    %318 = vmatprep.subr.bf16.mxu0 0
    %319 = vmatpush1.bf16.msra.mxu0 0
    %320 = vmatprep.subr.bf16.mxu0 0
    %321 = vmatpush1.bf16.msra.mxu0 0
    %322 = vmatprep.subr.bf16.mxu0 0
    %323 = vmatpush1.bf16.msra.mxu0 0
    %324 = vmatprep.subr.bf16.mxu0 0
    %325 = vmatpush1.bf16.msra.mxu0 0
    %326 = vmatprep.subr.bf16.mxu0 0
    %327 = vmatpush1.bf16.msra.mxu0 0
    %328 = vmatprep.mubr.bf16.mxu0 0
    %329 = vmatmul.mubr.bf16.gmra.mrb[0].mxu0 %v62
    %v330 = vpop.f32.mrb[0].mxu0
    %v331 = vadd.f32 0.0, %v330
    %v332 = vpop.f32.mrb[0].mxu0
    %v333 = vadd.f32 0.0, %v332
    %v334 = vpop.f32.mrb[0].mxu0
    %v335 = vpop.f32.mrb[0].mxu0
    %336 = vdwg.mxu0
    %v337 = vadd.f32 %v58, %v290
    %v338 = vadd.f32 %v59, %v292
    %v339 = vadd.f32 %v60, %v331
    %v340 = vadd.f32 %v61, %v333
    %v341 = vsub.f32 0.0, %v337
    %v342 = vmul.f32 %v341, 1.442695
    %v343 = vpow.pop %v342
    %v344 = vadd.f32 %v343, 1.0
    %v345 = vrcp.pop %v344
    %v346 = vsub.f32 0.0, %v338
    %v347 = vmul.f32 %v346, 1.442695
    %v348 = vpow.pop %v347
    %v349 = vadd.f32 %v348, 1.0
    %v350 = vrcp.pop %v349
    %v351 = vtanh.pop %v339
    %v352 = vsub.f32 0.0, %v340
    %v353 = vmul.f32 %v352, 1.442695
    %v354 = vpow.pop %v353
    %v355 = vadd.f32 %v354, 1.0
    %v356 = vrcp.pop %v355
    %v357 = vmul.f32 %v350, %v57
    %v358 = vmul.f32 %v345, %v351
    %v359 = vadd.f32 %v357, %v358
    %v360 = vtanh.pop %v359
    %v361 = vmul.f32 %v356, %v360
    %v362 = vstv %s55
    %vm363 = vcmp.gt.s32.totalorder %v54, %v362
    %v364 = vsel %vm363, 1, 0
    %365 = vset.pattern.permute.xlu0 0
    %366 = vperm.xlu0 %365, %v364
    %v367 = vpop.permute.xlu0 %366
    %vm368 = vcmp.eq.s32.totalorder %v367, 1
    %v369 = vsel %vm368, %v361, %v56
    %v370 = vsel %vm368, %v359, %v57
    %v371 = vsel %vm368, %v361, 0.0
    %372 = vst [vmem:[#allocation7] sm:$0xff] %v371
    %s373 = scalar_lea.vmem [#allocation2], 32
    %v374 = vld [vmem:[%s373] sm:$0xff]
    %v375 = vld [vmem:[%s373 + $0x8] sm:$0xff]
    %v376 = vld [vmem:[%s373 + $0x10] sm:$0xff]
    %v377 = vld [vmem:[%s373 + $0x18] sm:$0xff]
    %v378 = vpack.c.bf16 %v369, %v369
    %v379 = vld [vmem:[#allocation5] sm:$0xff]
    %v380 = vld [vmem:[#allocation5 + $0x8] sm:$0xff]
    %v381 = vld [vmem:[#allocation5 + $0x10] sm:$0xff]
    %v382 = vld [vmem:[#allocation5 + $0x18] sm:$0xff]
    %v383 = vld [vmem:[#allocation5 + $0x20] sm:$0xff]
    %v384 = vld [vmem:[#allocation5 + $0x28] sm:$0xff]
    %v385 = vld [vmem:[#allocation5 + $0x30] sm:$0xff]
    %v386 = vld [vmem:[#allocation5 + $0x38] sm:$0xff]
    %v387 = vld [vmem:[#allocation5 + $0x40] sm:$0xff]
    %v388 = vld [vmem:[#allocation5 + $0x48] sm:$0xff]
    %v389 = vld [vmem:[#allocation5 + $0x50] sm:$0xff]
    %v390 = vld [vmem:[#allocation5 + $0x58] sm:$0xff]
    %v391 = vld [vmem:[#allocation5 + $0x60] sm:$0xff]
    %v392 = vld [vmem:[#allocation5 + $0x68] sm:$0xff]
    %v393 = vld [vmem:[#allocation5 + $0x70] sm:$0xff]
    %v394 = vld [vmem:[#allocation5 + $0x78] sm:$0xff]
    %v395 = vld [vmem:[#allocation5 + $0x80] sm:$0xff]
    %v396 = vld [vmem:[#allocation5 + $0x88] sm:$0xff]
    %v397 = vld [vmem:[#allocation5 + $0x90] sm:$0xff]
    %v398 = vld [vmem:[#allocation5 + $0x98] sm:$0xff]
    %v399 = vld [vmem:[#allocation5 + $0xa0] sm:$0xff]
    %v400 = vld [vmem:[#allocation5 + $0xa8] sm:$0xff]
    %v401 = vld [vmem:[#allocation5 + $0xb0] sm:$0xff]
    %v402 = vld [vmem:[#allocation5 + $0xb8] sm:$0xff]
    %v403 = vld [vmem:[#allocation5 + $0xc0] sm:$0xff]
    %v404 = vld [vmem:[#allocation5 + $0xc8] sm:$0xff]
    %v405 = vld [vmem:[#allocation5 + $0xd0] sm:$0xff]
    %v406 = vld [vmem:[#allocation5 + $0xd8] sm:$0xff]
    %v407 = vld [vmem:[#allocation5 + $0xe0] sm:$0xff]
    %v408 = vld [vmem:[#allocation5 + $0xe8] sm:$0xff]
    %v409 = vld [vmem:[#allocation5 + $0xf0] sm:$0xff]
    %v410 = vld [vmem:[#allocation5 + $0xf8] sm:$0xff]
    %v443 = vunpack.c.l.b16 %v379
    %v444 = vunpack.c.h.b16 %v379
    %v445 = vunpack.c.l.b16 %v380
    %v446 = vunpack.c.h.b16 %v380
    %v447 = vunpack.c.l.b16 %v381
    %v448 = vunpack.c.h.b16 %v381
    %v449 = vunpack.c.l.b16 %v382
    %v450 = vunpack.c.h.b16 %v382
    %v451 = vunpack.c.l.b16 %v383
    %v452 = vunpack.c.h.b16 %v383
    %v453 = vunpack.c.l.b16 %v384
    %v454 = vunpack.c.h.b16 %v384
    %v455 = vunpack.c.l.b16 %v385
    %v456 = vunpack.c.h.b16 %v385
    %v457 = vunpack.c.l.b16 %v386
    %v458 = vunpack.c.h.b16 %v386
    %v459 = vunpack.c.l.b16 %v387
    %v460 = vunpack.c.h.b16 %v387
    %v461 = vunpack.c.l.b16 %v388
    %v462 = vunpack.c.h.b16 %v388
    %v463 = vunpack.c.l.b16 %v389
    %v464 = vunpack.c.h.b16 %v389
    %v465 = vunpack.c.l.b16 %v390
    %v466 = vunpack.c.h.b16 %v390
    %v467 = vunpack.c.l.b16 %v391
    %v468 = vunpack.c.h.b16 %v391
    %v469 = vunpack.c.l.b16 %v392
    %v470 = vunpack.c.h.b16 %v392
    %v471 = vunpack.c.l.b16 %v393
    %v472 = vunpack.c.h.b16 %v393
    %v473 = vunpack.c.l.b16 %v394
    %v474 = vunpack.c.h.b16 %v394
    %v475 = vunpack.c.l.b16 %v395
    %v476 = vunpack.c.h.b16 %v395
    %v477 = vunpack.c.l.b16 %v396
    %v478 = vunpack.c.h.b16 %v396
    %v479 = vunpack.c.l.b16 %v397
    %v480 = vunpack.c.h.b16 %v397
    %v481 = vunpack.c.l.b16 %v398
    %v482 = vunpack.c.h.b16 %v398
    %v483 = vunpack.c.l.b16 %v399
    %v484 = vunpack.c.h.b16 %v399
    %v485 = vunpack.c.l.b16 %v400
    %v486 = vunpack.c.h.b16 %v400
    %v487 = vunpack.c.l.b16 %v401
    %v488 = vunpack.c.h.b16 %v401
    %v489 = vunpack.c.l.b16 %v402
    %v490 = vunpack.c.h.b16 %v402
    %v491 = vunpack.c.l.b16 %v403
    %v492 = vunpack.c.h.b16 %v403
    %v493 = vunpack.c.l.b16 %v404
    %v494 = vunpack.c.h.b16 %v404
    %v495 = vunpack.c.l.b16 %v405
    %v496 = vunpack.c.h.b16 %v405
    %v497 = vunpack.c.l.b16 %v406
    %v498 = vunpack.c.h.b16 %v406
    %v499 = vunpack.c.l.b16 %v407
    %v500 = vunpack.c.h.b16 %v407
    %v501 = vunpack.c.l.b16 %v408
    %v502 = vunpack.c.h.b16 %v408
    %v503 = vunpack.c.l.b16 %v409
    %v504 = vunpack.c.h.b16 %v409
    %v505 = vunpack.c.l.b16 %v410
    %v506 = vunpack.c.h.b16 %v410
    %v507 = vpack.c.b16 %v447, %v443
    %v508 = vpack.c.b16 %v448, %v444
    %v509 = vpack.c.b16 %v449, %v445
    %v510 = vpack.c.b16 %v450, %v446
    %v511 = vpack.c.b16 %v455, %v451
    %v512 = vpack.c.b16 %v456, %v452
    %v513 = vpack.c.b16 %v457, %v453
    %v514 = vpack.c.b16 %v458, %v454
    %v515 = vpack.c.b16 %v463, %v459
    %v516 = vpack.c.b16 %v464, %v460
    %v517 = vpack.c.b16 %v465, %v461
    %v518 = vpack.c.b16 %v466, %v462
    %v519 = vpack.c.b16 %v471, %v467
    %v520 = vpack.c.b16 %v472, %v468
    %v521 = vpack.c.b16 %v473, %v469
    %v522 = vpack.c.b16 %v474, %v470
    %v523 = vpack.c.b16 %v479, %v475
    %v524 = vpack.c.b16 %v480, %v476
    %v525 = vpack.c.b16 %v481, %v477
    %v526 = vpack.c.b16 %v482, %v478
    %v527 = vpack.c.b16 %v487, %v483
    %v528 = vpack.c.b16 %v488, %v484
    %v529 = vpack.c.b16 %v489, %v485
    %v530 = vpack.c.b16 %v490, %v486
    %v531 = vpack.c.b16 %v495, %v491
    %v532 = vpack.c.b16 %v496, %v492
    %v533 = vpack.c.b16 %v497, %v493
    %v534 = vpack.c.b16 %v498, %v494
    %v535 = vpack.c.b16 %v503, %v499
    %v536 = vpack.c.b16 %v504, %v500
    %v537 = vpack.c.b16 %v505, %v501
    %v538 = vpack.c.b16 %v506, %v502
    %571 = vmatprep.subr.bf16.mxu0 %v508
    %572 = vmatpush1.bf16.msra.mxu0 %v507
    %573 = vmatprep.subr.bf16.mxu0 %v512
    %574 = vmatpush1.bf16.msra.mxu0 %v511
    %575 = vmatprep.subr.bf16.mxu0 %v516
    %576 = vmatpush1.bf16.msra.mxu0 %v515
    %577 = vmatprep.subr.bf16.mxu0 %v520
    %578 = vmatpush1.bf16.msra.mxu0 %v519
    %579 = vmatprep.subr.bf16.mxu0 %v524
    %580 = vmatpush1.bf16.msra.mxu0 %v523
    %581 = vmatprep.subr.bf16.mxu0 %v528
    %582 = vmatpush1.bf16.msra.mxu0 %v527
    %583 = vmatprep.subr.bf16.mxu0 %v532
    %584 = vmatpush1.bf16.msra.mxu0 %v531
    %585 = vmatprep.subr.bf16.mxu0 %v536
    %586 = vmatpush1.bf16.msra.mxu0 %v535
    %587 = vmatprep.subr.bf16.mxu0 0
    %588 = vmatpush1.bf16.msra.mxu0 0
    %589 = vmatprep.subr.bf16.mxu0 0
    %590 = vmatpush1.bf16.msra.mxu0 0
    %591 = vmatprep.subr.bf16.mxu0 0
    %592 = vmatpush1.bf16.msra.mxu0 0
    %593 = vmatprep.subr.bf16.mxu0 0
    %594 = vmatpush1.bf16.msra.mxu0 0
    %595 = vmatprep.subr.bf16.mxu0 0
    %596 = vmatpush1.bf16.msra.mxu0 0
    %597 = vmatprep.subr.bf16.mxu0 0
    %598 = vmatpush1.bf16.msra.mxu0 0
    %599 = vmatprep.subr.bf16.mxu0 0
    %600 = vmatpush1.bf16.msra.mxu0 0
    %601 = vmatprep.subr.bf16.mxu0 0
    %602 = vmatpush1.bf16.msra.mxu0 0
    %603 = vmatprep.mubr.bf16.mxu0 0
    %604 = vmatmul.mubr.bf16.gmra.mrb[0].mxu0 %v378
    %v605 = vpop.f32.mrb[0].mxu0
    %v606 = vadd.f32 0.0, %v605
    %v607 = vpop.f32.mrb[0].mxu0
    %v608 = vadd.f32 0.0, %v607
    %v609 = vpop.f32.mrb[0].mxu0
    %v610 = vpop.f32.mrb[0].mxu0
    %611 = vdwg.mxu0
    %612 = vmatprep.subr.bf16.mxu0 %v510
    %613 = vmatpush1.bf16.msra.mxu0 %v509
    %614 = vmatprep.subr.bf16.mxu0 %v514
    %615 = vmatpush1.bf16.msra.mxu0 %v513
    %616 = vmatprep.subr.bf16.mxu0 %v518
    %617 = vmatpush1.bf16.msra.mxu0 %v517
    %618 = vmatprep.subr.bf16.mxu0 %v522
    %619 = vmatpush1.bf16.msra.mxu0 %v521
    %620 = vmatprep.subr.bf16.mxu0 %v526
    %621 = vmatpush1.bf16.msra.mxu0 %v525
    %622 = vmatprep.subr.bf16.mxu0 %v530
    %623 = vmatpush1.bf16.msra.mxu0 %v529
    %624 = vmatprep.subr.bf16.mxu0 %v534
    %625 = vmatpush1.bf16.msra.mxu0 %v533
    %626 = vmatprep.subr.bf16.mxu0 %v538
    %627 = vmatpush1.bf16.msra.mxu0 %v537
    %628 = vmatprep.subr.bf16.mxu0 0
    %629 = vmatpush1.bf16.msra.mxu0 0
    %630 = vmatprep.subr.bf16.mxu0 0
    %631 = vmatpush1.bf16.msra.mxu0 0
    %632 = vmatprep.subr.bf16.mxu0 0
    %633 = vmatpush1.bf16.msra.mxu0 0
    %634 = vmatprep.subr.bf16.mxu0 0
    %635 = vmatpush1.bf16.msra.mxu0 0
    %636 = vmatprep.subr.bf16.mxu0 0
    %637 = vmatpush1.bf16.msra.mxu0 0
    %638 = vmatprep.subr.bf16.mxu0 0
    %639 = vmatpush1.bf16.msra.mxu0 0
    %640 = vmatprep.subr.bf16.mxu0 0
    %641 = vmatpush1.bf16.msra.mxu0 0
    %642 = vmatprep.subr.bf16.mxu0 0
    %643 = vmatpush1.bf16.msra.mxu0 0
    %644 = vmatprep.mubr.bf16.mxu0 0
    %645 = vmatmul.mubr.bf16.gmra.mrb[0].mxu0 %v378
    %v646 = vpop.f32.mrb[0].mxu0
    %v647 = vadd.f32 0.0, %v646
    %v648 = vpop.f32.mrb[0].mxu0
    %v649 = vadd.f32 0.0, %v648
    %v650 = vpop.f32.mrb[0].mxu0
    %v651 = vpop.f32.mrb[0].mxu0
    %652 = vdwg.mxu0
    %v653 = vadd.f32 %v374, %v606
    %v654 = vadd.f32 %v375, %v608
    %v655 = vadd.f32 %v376, %v647
    %v656 = vadd.f32 %v377, %v649
    %v657 = vsub.f32 0.0, %v653
    %v658 = vmul.f32 %v657, 1.442695
    %v659 = vpow.pop %v658
    %v660 = vadd.f32 %v659, 1.0
    %v661 = vrcp.pop %v660
    %v662 = vsub.f32 0.0, %v654
    %v663 = vmul.f32 %v662, 1.442695
    %v664 = vpow.pop %v663
    %v665 = vadd.f32 %v664, 1.0
    %v666 = vrcp.pop %v665
    %v667 = vtanh.pop %v655
    %v668 = vsub.f32 0.0, %v656
    %v669 = vmul.f32 %v668, 1.442695
    %v670 = vpow.pop %v669
    %v671 = vadd.f32 %v670, 1.0
    %v672 = vrcp.pop %v671
    %v673 = vmul.f32 %v666, %v370
    %v674 = vmul.f32 %v661, %v667
    %v675 = vadd.f32 %v673, %v674
    %v676 = vtanh.pop %v675
    %v677 = vmul.f32 %v672, %v676
    %s678 = sadd.s32 %s55, 1
    %v679 = vstv %s678
    %vm680 = vcmp.gt.s32.totalorder %v54, %v679
    %v681 = vsel %vm680, 1, 0
    %682 = vset.pattern.permute.xlu0 0
    %683 = vperm.xlu0 %682, %v681
    %v684 = vpop.permute.xlu0 %683
    %vm685 = vcmp.eq.s32.totalorder %v684, 1
    %v686 = vsel %vm685, %v677, %v369
    %v687 = vsel %vm685, %v675, %v370
    %v688 = vsel %vm685, %v677, 0.0
    %s689 = scalar_lea.vmem [#allocation7], 8
    %690 = vst [vmem:[%s689] sm:$0xff] %v688
    %s691 = scalar_lea.vmem [#allocation2], 64
    %v692 = vld [vmem:[%s691] sm:$0xff]
    %v693 = vld [vmem:[%s691 + $0x8] sm:$0xff]
    %v694 = vld [vmem:[%s691 + $0x10] sm:$0xff]
    %v695 = vld [vmem:[%s691 + $0x18] sm:$0xff]
    %v696 = vpack.c.bf16 %v686, %v686
    %v697 = vld [vmem:[#allocation5] sm:$0xff]
    %v698 = vld [vmem:[#allocation5 + $0x8] sm:$0xff]
    %v699 = vld [vmem:[#allocation5 + $0x10] sm:$0xff]
    %v700 = vld [vmem:[#allocation5 + $0x18] sm:$0xff]
    %v701 = vld [vmem:[#allocation5 + $0x20] sm:$0xff]
    %v702 = vld [vmem:[#allocation5 + $0x28] sm:$0xff]
    %v703 = vld [vmem:[#allocation5 + $0x30] sm:$0xff]
    %v704 = vld [vmem:[#allocation5 + $0x38] sm:$0xff]
    %v705 = vld [vmem:[#allocation5 + $0x40] sm:$0xff]
    %v706 = vld [vmem:[#allocation5 + $0x48] sm:$0xff]
    %v707 = vld [vmem:[#allocation5 + $0x50] sm:$0xff]
    %v708 = vld [vmem:[#allocation5 + $0x58] sm:$0xff]
    %v709 = vld [vmem:[#allocation5 + $0x60] sm:$0xff]
    %v710 = vld [vmem:[#allocation5 + $0x68] sm:$0xff]
    %v711 = vld [vmem:[#allocation5 + $0x70] sm:$0xff]
    %v712 = vld [vmem:[#allocation5 + $0x78] sm:$0xff]
    %v713 = vld [vmem:[#allocation5 + $0x80] sm:$0xff]
    %v714 = vld [vmem:[#allocation5 + $0x88] sm:$0xff]
    %v715 = vld [vmem:[#allocation5 + $0x90] sm:$0xff]
    %v716 = vld [vmem:[#allocation5 + $0x98] sm:$0xff]
    %v717 = vld [vmem:[#allocation5 + $0xa0] sm:$0xff]
    %v718 = vld [vmem:[#allocation5 + $0xa8] sm:$0xff]
    %v719 = vld [vmem:[#allocation5 + $0xb0] sm:$0xff]
    %v720 = vld [vmem:[#allocation5 + $0xb8] sm:$0xff]
    %v721 = vld [vmem:[#allocation5 + $0xc0] sm:$0xff]
    %v722 = vld [vmem:[#allocation5 + $0xc8] sm:$0xff]
    %v723 = vld [vmem:[#allocation5 + $0xd0] sm:$0xff]
    %v724 = vld [vmem:[#allocation5 + $0xd8] sm:$0xff]
    %v725 = vld [vmem:[#allocation5 + $0xe0] sm:$0xff]
    %v726 = vld [vmem:[#allocation5 + $0xe8] sm:$0xff]
    %v727 = vld [vmem:[#allocation5 + $0xf0] sm:$0xff]
    %v728 = vld [vmem:[#allocation5 + $0xf8] sm:$0xff]
    %v761 = vunpack.c.l.b16 %v697
    %v762 = vunpack.c.h.b16 %v697
    %v763 = vunpack.c.l.b16 %v698
    %v764 = vunpack.c.h.b16 %v698
    %v765 = vunpack.c.l.b16 %v699
    %v766 = vunpack.c.h.b16 %v699
    %v767 = vunpack.c.l.b16 %v700
    %v768 = vunpack.c.h.b16 %v700
    %v769 = vunpack.c.l.b16 %v701
    %v770 = vunpack.c.h.b16 %v701
    %v771 = vunpack.c.l.b16 %v702
    %v772 = vunpack.c.h.b16 %v702
    %v773 = vunpack.c.l.b16 %v703
    %v774 = vunpack.c.h.b16 %v703
    %v775 = vunpack.c.l.b16 %v704
    %v776 = vunpack.c.h.b16 %v704
    %v777 = vunpack.c.l.b16 %v705
    %v778 = vunpack.c.h.b16 %v705
    %v779 = vunpack.c.l.b16 %v706
    %v780 = vunpack.c.h.b16 %v706
    %v781 = vunpack.c.l.b16 %v707
    %v782 = vunpack.c.h.b16 %v707
    %v783 = vunpack.c.l.b16 %v708
    %v784 = vunpack.c.h.b16 %v708
    %v785 = vunpack.c.l.b16 %v709
    %v786 = vunpack.c.h.b16 %v709
    %v787 = vunpack.c.l.b16 %v710
    %v788 = vunpack.c.h.b16 %v710
    %v789 = vunpack.c.l.b16 %v711
    %v790 = vunpack.c.h.b16 %v711
    %v791 = vunpack.c.l.b16 %v712
    %v792 = vunpack.c.h.b16 %v712
    %v793 = vunpack.c.l.b16 %v713
    %v794 = vunpack.c.h.b16 %v713
    %v795 = vunpack.c.l.b16 %v714
    %v796 = vunpack.c.h.b16 %v714
    %v797 = vunpack.c.l.b16 %v715
    %v798 = vunpack.c.h.b16 %v715
    %v799 = vunpack.c.l.b16 %v716
    %v800 = vunpack.c.h.b16 %v716
    %v801 = vunpack.c.l.b16 %v717
    %v802 = vunpack.c.h.b16 %v717
    %v803 = vunpack.c.l.b16 %v718
    %v804 = vunpack.c.h.b16 %v718
    %v805 = vunpack.c.l.b16 %v719
    %v806 = vunpack.c.h.b16 %v719
    %v807 = vunpack.c.l.b16 %v720
    %v808 = vunpack.c.h.b16 %v720
    %v809 = vunpack.c.l.b16 %v721
    %v810 = vunpack.c.h.b16 %v721
    %v811 = vunpack.c.l.b16 %v722
    %v812 = vunpack.c.h.b16 %v722
    %v813 = vunpack.c.l.b16 %v723
    %v814 = vunpack.c.h.b16 %v723
    %v815 = vunpack.c.l.b16 %v724
    %v816 = vunpack.c.h.b16 %v724
    %v817 = vunpack.c.l.b16 %v725
    %v818 = vunpack.c.h.b16 %v725
    %v819 = vunpack.c.l.b16 %v726
    %v820 = vunpack.c.h.b16 %v726
    %v821 = vunpack.c.l.b16 %v727
    %v822 = vunpack.c.h.b16 %v727
    %v823 = vunpack.c.l.b16 %v728
    %v824 = vunpack.c.h.b16 %v728
    %v825 = vpack.c.b16 %v765, %v761
    %v826 = vpack.c.b16 %v766, %v762
    %v827 = vpack.c.b16 %v767, %v763
    %v828 = vpack.c.b16 %v768, %v764
    %v829 = vpack.c.b16 %v773, %v769
    %v830 = vpack.c.b16 %v774, %v770
    %v831 = vpack.c.b16 %v775, %v771
    %v832 = vpack.c.b16 %v776, %v772
    %v833 = vpack.c.b16 %v781, %v777
    %v834 = vpack.c.b16 %v782, %v778
    %v835 = vpack.c.b16 %v783, %v779
    %v836 = vpack.c.b16 %v784, %v780
    %v837 = vpack.c.b16 %v789, %v785
    %v838 = vpack.c.b16 %v790, %v786
    %v839 = vpack.c.b16 %v791, %v787
    %v840 = vpack.c.b16 %v792, %v788
    %v841 = vpack.c.b16 %v797, %v793
    %v842 = vpack.c.b16 %v798, %v794
    %v843 = vpack.c.b16 %v799, %v795
    %v844 = vpack.c.b16 %v800, %v796
    %v845 = vpack.c.b16 %v805, %v801
    %v846 = vpack.c.b16 %v806, %v802
    %v847 = vpack.c.b16 %v807, %v803
    %v848 = vpack.c.b16 %v808, %v804
    %v849 = vpack.c.b16 %v813, %v809
    %v850 = vpack.c.b16 %v814, %v810
    %v851 = vpack.c.b16 %v815, %v811
    %v852 = vpack.c.b16 %v816, %v812
    %v853 = vpack.c.b16 %v821, %v817
    %v854 = vpack.c.b16 %v822, %v818
    %v855 = vpack.c.b16 %v823, %v819
    %v856 = vpack.c.b16 %v824, %v820
    %889 = vmatprep.subr.bf16.mxu0 %v826
    %890 = vmatpush1.bf16.msra.mxu0 %v825
    %891 = vmatprep.subr.bf16.mxu0 %v830
    %892 = vmatpush1.bf16.msra.mxu0 %v829
    %893 = vmatprep.subr.bf16.mxu0 %v834
    %894 = vmatpush1.bf16.msra.mxu0 %v833
    %895 = vmatprep.subr.bf16.mxu0 %v838
    %896 = vmatpush1.bf16.msra.mxu0 %v837
    %897 = vmatprep.subr.bf16.mxu0 %v842
    %898 = vmatpush1.bf16.msra.mxu0 %v841
    %899 = vmatprep.subr.bf16.mxu0 %v846
    %900 = vmatpush1.bf16.msra.mxu0 %v845
    %901 = vmatprep.subr.bf16.mxu0 %v850
    %902 = vmatpush1.bf16.msra.mxu0 %v849
    %903 = vmatprep.subr.bf16.mxu0 %v854
    %904 = vmatpush1.bf16.msra.mxu0 %v853
    %905 = vmatprep.subr.bf16.mxu0 0
    %906 = vmatpush1.bf16.msra.mxu0 0
    %907 = vmatprep.subr.bf16.mxu0 0
    %908 = vmatpush1.bf16.msra.mxu0 0
    %909 = vmatprep.subr.bf16.mxu0 0
    %910 = vmatpush1.bf16.msra.mxu0 0
    %911 = vmatprep.subr.bf16.mxu0 0
    %912 = vmatpush1.bf16.msra.mxu0 0
    %913 = vmatprep.subr.bf16.mxu0 0
    %914 = vmatpush1.bf16.msra.mxu0 0
    %915 = vmatprep.subr.bf16.mxu0 0
    %916 = vmatpush1.bf16.msra.mxu0 0
    %917 = vmatprep.subr.bf16.mxu0 0
    %918 = vmatpush1.bf16.msra.mxu0 0
    %919 = vmatprep.subr.bf16.mxu0 0
    %920 = vmatpush1.bf16.msra.mxu0 0
    %921 = vmatprep.mubr.bf16.mxu0 0
    %922 = vmatmul.mubr.bf16.gmra.mrb[0].mxu0 %v696
    %v923 = vpop.f32.mrb[0].mxu0
    %v924 = vadd.f32 0.0, %v923
    %v925 = vpop.f32.mrb[0].mxu0
    %v926 = vadd.f32 0.0, %v925
    %v927 = vpop.f32.mrb[0].mxu0
    %v928 = vpop.f32.mrb[0].mxu0
    %929 = vdwg.mxu0
    %930 = vmatprep.subr.bf16.mxu0 %v828
    %931 = vmatpush1.bf16.msra.mxu0 %v827
    %932 = vmatprep.subr.bf16.mxu0 %v832
    %933 = vmatpush1.bf16.msra.mxu0 %v831
    %934 = vmatprep.subr.bf16.mxu0 %v836
    %935 = vmatpush1.bf16.msra.mxu0 %v835
    %936 = vmatprep.subr.bf16.mxu0 %v840
    %937 = vmatpush1.bf16.msra.mxu0 %v839
    %938 = vmatprep.subr.bf16.mxu0 %v844
    %939 = vmatpush1.bf16.msra.mxu0 %v843
    %940 = vmatprep.subr.bf16.mxu0 %v848
    %941 = vmatpush1.bf16.msra.mxu0 %v847
    %942 = vmatprep.subr.bf16.mxu0 %v852
    %943 = vmatpush1.bf16.msra.mxu0 %v851
    %944 = vmatprep.subr.bf16.mxu0 %v856
    %945 = vmatpush1.bf16.msra.mxu0 %v855
    %946 = vmatprep.subr.bf16.mxu0 0
    %947 = vmatpush1.bf16.msra.mxu0 0
    %948 = vmatprep.subr.bf16.mxu0 0
    %949 = vmatpush1.bf16.msra.mxu0 0
    %950 = vmatprep.subr.bf16.mxu0 0
    %951 = vmatpush1.bf16.msra.mxu0 0
    %952 = vmatprep.subr.bf16.mxu0 0
    %953 = vmatpush1.bf16.msra.mxu0 0
    %954 = vmatprep.subr.bf16.mxu0 0
    %955 = vmatpush1.bf16.msra.mxu0 0
    %956 = vmatprep.subr.bf16.mxu0 0
    %957 = vmatpush1.bf16.msra.mxu0 0
    %958 = vmatprep.subr.bf16.mxu0 0
    %959 = vmatpush1.bf16.msra.mxu0 0
    %960 = vmatprep.subr.bf16.mxu0 0
    %961 = vmatpush1.bf16.msra.mxu0 0
    %962 = vmatprep.mubr.bf16.mxu0 0
    %963 = vmatmul.mubr.bf16.gmra.mrb[0].mxu0 %v696
    %v964 = vpop.f32.mrb[0].mxu0
    %v965 = vadd.f32 0.0, %v964
    %v966 = vpop.f32.mrb[0].mxu0
    %v967 = vadd.f32 0.0, %v966
    %v968 = vpop.f32.mrb[0].mxu0
    %v969 = vpop.f32.mrb[0].mxu0
    %970 = vdwg.mxu0
    %v971 = vadd.f32 %v692, %v924
    %v972 = vadd.f32 %v693, %v926
    %v973 = vadd.f32 %v694, %v965
    %v974 = vadd.f32 %v695, %v967
    %v975 = vsub.f32 0.0, %v971
    %v976 = vmul.f32 %v975, 1.442695
    %v977 = vpow.pop %v976
    %v978 = vadd.f32 %v977, 1.0
    %v979 = vrcp.pop %v978
    %v980 = vsub.f32 0.0, %v972
    %v981 = vmul.f32 %v980, 1.442695
    %v982 = vpow.pop %v981
    %v983 = vadd.f32 %v982, 1.0
    %v984 = vrcp.pop %v983
    %v985 = vtanh.pop %v973
    %v986 = vsub.f32 0.0, %v974
    %v987 = vmul.f32 %v986, 1.442695
    %v988 = vpow.pop %v987
    %v989 = vadd.f32 %v988, 1.0
    %v990 = vrcp.pop %v989
    %v991 = vmul.f32 %v984, %v687
    %v992 = vmul.f32 %v979, %v985
    %v993 = vadd.f32 %v991, %v992
    %v994 = vtanh.pop %v993
    %v995 = vmul.f32 %v990, %v994
    %s996 = sadd.s32 %s55, 2
    %v997 = vstv %s996
    %vm998 = vcmp.gt.s32.totalorder %v54, %v997
    %v999 = vsel %vm998, 1, 0
    %1000 = vset.pattern.permute.xlu0 0
    %1001 = vperm.xlu0 %1000, %v999
    %v1002 = vpop.permute.xlu0 %1001
    %vm1003 = vcmp.eq.s32.totalorder %v1002, 1
    %v1004 = vsel %vm1003, %v995, %v686
    %v1005 = vsel %vm1003, %v993, %v687
    %v1006 = vsel %vm1003, %v995, 0.0
    %s1007 = scalar_lea.vmem [#allocation7], 16
    %1008 = vst [vmem:[%s1007] sm:$0xff] %v1006
    %s1009 = scalar_lea.vmem [#allocation2], 96
    %v1010 = vld [vmem:[%s1009] sm:$0xff]
    %v1011 = vld [vmem:[%s1009 + $0x8] sm:$0xff]
    %v1012 = vld [vmem:[%s1009 + $0x10] sm:$0xff]
    %v1013 = vld [vmem:[%s1009 + $0x18] sm:$0xff]
    %v1014 = vpack.c.bf16 %v1004, %v1004
    %v1015 = vld [vmem:[#allocation5] sm:$0xff]
    %v1016 = vld [vmem:[#allocation5 + $0x8] sm:$0xff]
    %v1017 = vld [vmem:[#allocation5 + $0x10] sm:$0xff]
    %v1018 = vld [vmem:[#allocation5 + $0x18] sm:$0xff]
    %v1019 = vld [vmem:[#allocation5 + $0x20] sm:$0xff]
    %v1020 = vld [vmem:[#allocation5 + $0x28] sm:$0xff]
    %v1021 = vld [vmem:[#allocation5 + $0x30] sm:$0xff]
    %v1022 = vld [vmem:[#allocation5 + $0x38] sm:$0xff]
    %v1023 = vld [vmem:[#allocation5 + $0x40] sm:$0xff]
    %v1024 = vld [vmem:[#allocation5 + $0x48] sm:$0xff]
    %v1025 = vld [vmem:[#allocation5 + $0x50] sm:$0xff]
    %v1026 = vld [vmem:[#allocation5 + $0x58] sm:$0xff]
    %v1027 = vld [vmem:[#allocation5 + $0x60] sm:$0xff]
    %v1028 = vld [vmem:[#allocation5 + $0x68] sm:$0xff]
    %v1029 = vld [vmem:[#allocation5 + $0x70] sm:$0xff]
    %v1030 = vld [vmem:[#allocation5 + $0x78] sm:$0xff]
    %v1031 = vld [vmem:[#allocation5 + $0x80] sm:$0xff]
    %v1032 = vld [vmem:[#allocation5 + $0x88] sm:$0xff]
    %v1033 = vld [vmem:[#allocation5 + $0x90] sm:$0xff]
    %v1034 = vld [vmem:[#allocation5 + $0x98] sm:$0xff]
    %v1035 = vld [vmem:[#allocation5 + $0xa0] sm:$0xff]
    %v1036 = vld [vmem:[#allocation5 + $0xa8] sm:$0xff]
    %v1037 = vld [vmem:[#allocation5 + $0xb0] sm:$0xff]
    %v1038 = vld [vmem:[#allocation5 + $0xb8] sm:$0xff]
    %v1039 = vld [vmem:[#allocation5 + $0xc0] sm:$0xff]
    %v1040 = vld [vmem:[#allocation5 + $0xc8] sm:$0xff]
    %v1041 = vld [vmem:[#allocation5 + $0xd0] sm:$0xff]
    %v1042 = vld [vmem:[#allocation5 + $0xd8] sm:$0xff]
    %v1043 = vld [vmem:[#allocation5 + $0xe0] sm:$0xff]
    %v1044 = vld [vmem:[#allocation5 + $0xe8] sm:$0xff]
    %v1045 = vld [vmem:[#allocation5 + $0xf0] sm:$0xff]
    %v1046 = vld [vmem:[#allocation5 + $0xf8] sm:$0xff]
    %v1079 = vunpack.c.l.b16 %v1015
    %v1080 = vunpack.c.h.b16 %v1015
    %v1081 = vunpack.c.l.b16 %v1016
    %v1082 = vunpack.c.h.b16 %v1016
    %v1083 = vunpack.c.l.b16 %v1017
    %v1084 = vunpack.c.h.b16 %v1017
    %v1085 = vunpack.c.l.b16 %v1018
    %v1086 = vunpack.c.h.b16 %v1018
    %v1087 = vunpack.c.l.b16 %v1019
    %v1088 = vunpack.c.h.b16 %v1019
    %v1089 = vunpack.c.l.b16 %v1020
    %v1090 = vunpack.c.h.b16 %v1020
    %v1091 = vunpack.c.l.b16 %v1021
    %v1092 = vunpack.c.h.b16 %v1021
    %v1093 = vunpack.c.l.b16 %v1022
    %v1094 = vunpack.c.h.b16 %v1022
    %v1095 = vunpack.c.l.b16 %v1023
    %v1096 = vunpack.c.h.b16 %v1023
    %v1097 = vunpack.c.l.b16 %v1024
    %v1098 = vunpack.c.h.b16 %v1024
    %v1099 = vunpack.c.l.b16 %v1025
    %v1100 = vunpack.c.h.b16 %v1025
    %v1101 = vunpack.c.l.b16 %v1026
    %v1102 = vunpack.c.h.b16 %v1026
    %v1103 = vunpack.c.l.b16 %v1027
    %v1104 = vunpack.c.h.b16 %v1027
    %v1105 = vunpack.c.l.b16 %v1028
    %v1106 = vunpack.c.h.b16 %v1028
    %v1107 = vunpack.c.l.b16 %v1029
    %v1108 = vunpack.c.h.b16 %v1029
    %v1109 = vunpack.c.l.b16 %v1030
    %v1110 = vunpack.c.h.b16 %v1030
    %v1111 = vunpack.c.l.b16 %v1031
    %v1112 = vunpack.c.h.b16 %v1031
    %v1113 = vunpack.c.l.b16 %v1032
    %v1114 = vunpack.c.h.b16 %v1032
    %v1115 = vunpack.c.l.b16 %v1033
    %v1116 = vunpack.c.h.b16 %v1033
    %v1117 = vunpack.c.l.b16 %v1034
    %v1118 = vunpack.c.h.b16 %v1034
    %v1119 = vunpack.c.l.b16 %v1035
    %v1120 = vunpack.c.h.b16 %v1035
    %v1121 = vunpack.c.l.b16 %v1036
    %v1122 = vunpack.c.h.b16 %v1036
    %v1123 = vunpack.c.l.b16 %v1037
    %v1124 = vunpack.c.h.b16 %v1037
    %v1125 = vunpack.c.l.b16 %v1038
    %v1126 = vunpack.c.h.b16 %v1038
    %v1127 = vunpack.c.l.b16 %v1039
    %v1128 = vunpack.c.h.b16 %v1039
    %v1129 = vunpack.c.l.b16 %v1040
    %v1130 = vunpack.c.h.b16 %v1040
    %v1131 = vunpack.c.l.b16 %v1041
    %v1132 = vunpack.c.h.b16 %v1041
    %v1133 = vunpack.c.l.b16 %v1042
    %v1134 = vunpack.c.h.b16 %v1042
    %v1135 = vunpack.c.l.b16 %v1043
    %v1136 = vunpack.c.h.b16 %v1043
    %v1137 = vunpack.c.l.b16 %v1044
    %v1138 = vunpack.c.h.b16 %v1044
    %v1139 = vunpack.c.l.b16 %v1045
    %v1140 = vunpack.c.h.b16 %v1045
    %v1141 = vunpack.c.l.b16 %v1046
    %v1142 = vunpack.c.h.b16 %v1046
    %v1143 = vpack.c.b16 %v1083, %v1079
    %v1144 = vpack.c.b16 %v1084, %v1080
    %v1145 = vpack.c.b16 %v1085, %v1081
    %v1146 = vpack.c.b16 %v1086, %v1082
    %v1147 = vpack.c.b16 %v1091, %v1087
    %v1148 = vpack.c.b16 %v1092, %v1088
    %v1149 = vpack.c.b16 %v1093, %v1089
    %v1150 = vpack.c.b16 %v1094, %v1090
    %v1151 = vpack.c.b16 %v1099, %v1095
    %v1152 = vpack.c.b16 %v1100, %v1096
    %v1153 = vpack.c.b16 %v1101, %v1097
    %v1154 = vpack.c.b16 %v1102, %v1098
    %v1155 = vpack.c.b16 %v1107, %v1103
    %v1156 = vpack.c.b16 %v1108, %v1104
    %v1157 = vpack.c.b16 %v1109, %v1105
    %v1158 = vpack.c.b16 %v1110, %v1106
    %v1159 = vpack.c.b16 %v1115, %v1111
    %v1160 = vpack.c.b16 %v1116, %v1112
    %v1161 = vpack.c.b16 %v1117, %v1113
    %v1162 = vpack.c.b16 %v1118, %v1114
    %v1163 = vpack.c.b16 %v1123, %v1119
    %v1164 = vpack.c.b16 %v1124, %v1120
    %v1165 = vpack.c.b16 %v1125, %v1121
    %v1166 = vpack.c.b16 %v1126, %v1122
    %v1167 = vpack.c.b16 %v1131, %v1127
    %v1168 = vpack.c.b16 %v1132, %v1128
    %v1169 = vpack.c.b16 %v1133, %v1129
    %v1170 = vpack.c.b16 %v1134, %v1130
    %v1171 = vpack.c.b16 %v1139, %v1135
    %v1172 = vpack.c.b16 %v1140, %v1136
    %v1173 = vpack.c.b16 %v1141, %v1137
    %v1174 = vpack.c.b16 %v1142, %v1138
    %1207 = vmatprep.subr.bf16.mxu0 %v1144
    %1208 = vmatpush1.bf16.msra.mxu0 %v1143
    %1209 = vmatprep.subr.bf16.mxu0 %v1148
    %1210 = vmatpush1.bf16.msra.mxu0 %v1147
    %1211 = vmatprep.subr.bf16.mxu0 %v1152
    %1212 = vmatpush1.bf16.msra.mxu0 %v1151
    %1213 = vmatprep.subr.bf16.mxu0 %v1156
    %1214 = vmatpush1.bf16.msra.mxu0 %v1155
    %1215 = vmatprep.subr.bf16.mxu0 %v1160
    %1216 = vmatpush1.bf16.msra.mxu0 %v1159
    %1217 = vmatprep.subr.bf16.mxu0 %v1164
    %1218 = vmatpush1.bf16.msra.mxu0 %v1163
    %1219 = vmatprep.subr.bf16.mxu0 %v1168
    %1220 = vmatpush1.bf16.msra.mxu0 %v1167
    %1221 = vmatprep.subr.bf16.mxu0 %v1172
    %1222 = vmatpush1.bf16.msra.mxu0 %v1171
    %1223 = vmatprep.subr.bf16.mxu0 0
    %1224 = vmatpush1.bf16.msra.mxu0 0
    %1225 = vmatprep.subr.bf16.mxu0 0
    %1226 = vmatpush1.bf16.msra.mxu0 0
    %1227 = vmatprep.subr.bf16.mxu0 0
    %1228 = vmatpush1.bf16.msra.mxu0 0
    %1229 = vmatprep.subr.bf16.mxu0 0
    %1230 = vmatpush1.bf16.msra.mxu0 0
    %1231 = vmatprep.subr.bf16.mxu0 0
    %1232 = vmatpush1.bf16.msra.mxu0 0
    %1233 = vmatprep.subr.bf16.mxu0 0
    %1234 = vmatpush1.bf16.msra.mxu0 0
    %1235 = vmatprep.subr.bf16.mxu0 0
    %1236 = vmatpush1.bf16.msra.mxu0 0
    %1237 = vmatprep.subr.bf16.mxu0 0
    %1238 = vmatpush1.bf16.msra.mxu0 0
    %1239 = vmatprep.mubr.bf16.mxu0 0
    %1240 = vmatmul.mubr.bf16.gmra.mrb[0].mxu0 %v1014
    %v1241 = vpop.f32.mrb[0].mxu0
    %v1242 = vadd.f32 0.0, %v1241
    %v1243 = vpop.f32.mrb[0].mxu0
    %v1244 = vadd.f32 0.0, %v1243
    %v1245 = vpop.f32.mrb[0].mxu0
    %v1246 = vpop.f32.mrb[0].mxu0
    %1247 = vdwg.mxu0
    %1248 = vmatprep.subr.bf16.mxu0 %v1146
    %1249 = vmatpush1.bf16.msra.mxu0 %v1145
    %1250 = vmatprep.subr.bf16.mxu0 %v1150
    %1251 = vmatpush1.bf16.msra.mxu0 %v1149
    %1252 = vmatprep.subr.bf16.mxu0 %v1154
    %1253 = vmatpush1.bf16.msra.mxu0 %v1153
    %1254 = vmatprep.subr.bf16.mxu0 %v1158
    %1255 = vmatpush1.bf16.msra.mxu0 %v1157
    %1256 = vmatprep.subr.bf16.mxu0 %v1162
    %1257 = vmatpush1.bf16.msra.mxu0 %v1161
    %1258 = vmatprep.subr.bf16.mxu0 %v1166
    %1259 = vmatpush1.bf16.msra.mxu0 %v1165
    %1260 = vmatprep.subr.bf16.mxu0 %v1170
    %1261 = vmatpush1.bf16.msra.mxu0 %v1169
    %1262 = vmatprep.subr.bf16.mxu0 %v1174
    %1263 = vmatpush1.bf16.msra.mxu0 %v1173
    %1264 = vmatprep.subr.bf16.mxu0 0
    %1265 = vmatpush1.bf16.msra.mxu0 0
    %1266 = vmatprep.subr.bf16.mxu0 0
    %1267 = vmatpush1.bf16.msra.mxu0 0
    %1268 = vmatprep.subr.bf16.mxu0 0
    %1269 = vmatpush1.bf16.msra.mxu0 0
    %1270 = vmatprep.subr.bf16.mxu0 0
    %1271 = vmatpush1.bf16.msra.mxu0 0
    %1272 = vmatprep.subr.bf16.mxu0 0
    %1273 = vmatpush1.bf16.msra.mxu0 0
    %1274 = vmatprep.subr.bf16.mxu0 0
    %1275 = vmatpush1.bf16.msra.mxu0 0
    %1276 = vmatprep.subr.bf16.mxu0 0
    %1277 = vmatpush1.bf16.msra.mxu0 0
    %1278 = vmatprep.subr.bf16.mxu0 0
    %1279 = vmatpush1.bf16.msra.mxu0 0
    %1280 = vmatprep.mubr.bf16.mxu0 0
    %1281 = vmatmul.mubr.bf16.gmra.mrb[0].mxu0 %v1014
    %v1282 = vpop.f32.mrb[0].mxu0
    %v1283 = vadd.f32 0.0, %v1282
    %v1284 = vpop.f32.mrb[0].mxu0
    %v1285 = vadd.f32 0.0, %v1284
    %v1286 = vpop.f32.mrb[0].mxu0
    %v1287 = vpop.f32.mrb[0].mxu0
    %1288 = vdwg.mxu0
    %v1289 = vadd.f32 %v1010, %v1242
    %v1290 = vadd.f32 %v1011, %v1244
    %v1291 = vadd.f32 %v1012, %v1283
    %v1292 = vadd.f32 %v1013, %v1285
    %v1293 = vsub.f32 0.0, %v1289
    %v1294 = vmul.f32 %v1293, 1.442695
    %v1295 = vpow.pop %v1294
    %v1296 = vadd.f32 %v1295, 1.0
    %v1297 = vrcp.pop %v1296
    %v1298 = vsub.f32 0.0, %v1290
    %v1299 = vmul.f32 %v1298, 1.442695
    %v1300 = vpow.pop %v1299
    %v1301 = vadd.f32 %v1300, 1.0
    %v1302 = vrcp.pop %v1301
    %v1303 = vtanh.pop %v1291
    %v1304 = vsub.f32 0.0, %v1292
    %v1305 = vmul.f32 %v1304, 1.442695
    %v1306 = vpow.pop %v1305
    %v1307 = vadd.f32 %v1306, 1.0
    %v1308 = vrcp.pop %v1307
    %v1309 = vmul.f32 %v1302, %v1005
    %v1310 = vmul.f32 %v1297, %v1303
    %v1311 = vadd.f32 %v1309, %v1310
    %v1312 = vtanh.pop %v1311
    %v1313 = vmul.f32 %v1308, %v1312
    %s1314 = sadd.s32 %s55, 3
    %v1315 = vstv %s1314
    %vm1316 = vcmp.gt.s32.totalorder %v54, %v1315
    %v1317 = vsel %vm1316, 1, 0
    %1318 = vset.pattern.permute.xlu0 0
    %1319 = vperm.xlu0 %1318, %v1317
    %v1320 = vpop.permute.xlu0 %1319
    %vm1321 = vcmp.eq.s32.totalorder %v1320, 1
    %v1322 = vsel %vm1321, %v1313, %v1004
    %v1323 = vsel %vm1321, %v1311, %v1005
    %v1324 = vsel %vm1321, %v1313, 0.0
    %s1325 = scalar_lea.vmem [#allocation7], 24
    %1326 = vst [vmem:[%s1325] sm:$0xff] %v1324
    %s1327 = scalar_lea.vmem [#allocation2], 128
    %v1328 = vld [vmem:[%s1327] sm:$0xff]
    %v1329 = vld [vmem:[%s1327 + $0x8] sm:$0xff]
    %v1330 = vld [vmem:[%s1327 + $0x10] sm:$0xff]
    %v1331 = vld [vmem:[%s1327 + $0x18] sm:$0xff]
    %v1332 = vpack.c.bf16 %v1322, %v1322
    %v1333 = vld [vmem:[#allocation5] sm:$0xff]
    %v1334 = vld [vmem:[#allocation5 + $0x8] sm:$0xff]
    %v1335 = vld [vmem:[#allocation5 + $0x10] sm:$0xff]
    %v1336 = vld [vmem:[#allocation5 + $0x18] sm:$0xff]
    %v1337 = vld [vmem:[#allocation5 + $0x20] sm:$0xff]
    %v1338 = vld [vmem:[#allocation5 + $0x28] sm:$0xff]
    %v1339 = vld [vmem:[#allocation5 + $0x30] sm:$0xff]
    %v1340 = vld [vmem:[#allocation5 + $0x38] sm:$0xff]
    %v1341 = vld [vmem:[#allocation5 + $0x40] sm:$0xff]
    %v1342 = vld [vmem:[#allocation5 + $0x48] sm:$0xff]
    %v1343 = vld [vmem:[#allocation5 + $0x50] sm:$0xff]
    %v1344 = vld [vmem:[#allocation5 + $0x58] sm:$0xff]
    %v1345 = vld [vmem:[#allocation5 + $0x60] sm:$0xff]
    %v1346 = vld [vmem:[#allocation5 + $0x68] sm:$0xff]
    %v1347 = vld [vmem:[#allocation5 + $0x70] sm:$0xff]
    %v1348 = vld [vmem:[#allocation5 + $0x78] sm:$0xff]
    %v1349 = vld [vmem:[#allocation5 + $0x80] sm:$0xff]
    %v1350 = vld [vmem:[#allocation5 + $0x88] sm:$0xff]
    %v1351 = vld [vmem:[#allocation5 + $0x90] sm:$0xff]
    %v1352 = vld [vmem:[#allocation5 + $0x98] sm:$0xff]
    %v1353 = vld [vmem:[#allocation5 + $0xa0] sm:$0xff]
    %v1354 = vld [vmem:[#allocation5 + $0xa8] sm:$0xff]
    %v1355 = vld [vmem:[#allocation5 + $0xb0] sm:$0xff]
    %v1356 = vld [vmem:[#allocation5 + $0xb8] sm:$0xff]
    %v1357 = vld [vmem:[#allocation5 + $0xc0] sm:$0xff]
    %v1358 = vld [vmem:[#allocation5 + $0xc8] sm:$0xff]
    %v1359 = vld [vmem:[#allocation5 + $0xd0] sm:$0xff]
    %v1360 = vld [vmem:[#allocation5 + $0xd8] sm:$0xff]
    %v1361 = vld [vmem:[#allocation5 + $0xe0] sm:$0xff]
    %v1362 = vld [vmem:[#allocation5 + $0xe8] sm:$0xff]
    %v1363 = vld [vmem:[#allocation5 + $0xf0] sm:$0xff]
    %v1364 = vld [vmem:[#allocation5 + $0xf8] sm:$0xff]
    %v1397 = vunpack.c.l.b16 %v1333
    %v1398 = vunpack.c.h.b16 %v1333
    %v1399 = vunpack.c.l.b16 %v1334
    %v1400 = vunpack.c.h.b16 %v1334
    %v1401 = vunpack.c.l.b16 %v1335
    %v1402 = vunpack.c.h.b16 %v1335
    %v1403 = vunpack.c.l.b16 %v1336
    %v1404 = vunpack.c.h.b16 %v1336
    %v1405 = vunpack.c.l.b16 %v1337
    %v1406 = vunpack.c.h.b16 %v1337
    %v1407 = vunpack.c.l.b16 %v1338
    %v1408 = vunpack.c.h.b16 %v1338
    %v1409 = vunpack.c.l.b16 %v1339
    %v1410 = vunpack.c.h.b16 %v1339
    %v1411 = vunpack.c.l.b16 %v1340
    %v1412 = vunpack.c.h.b16 %v1340
    %v1413 = vunpack.c.l.b16 %v1341
    %v1414 = vunpack.c.h.b16 %v1341
    %v1415 = vunpack.c.l.b16 %v1342
    %v1416 = vunpack.c.h.b16 %v1342
    %v1417 = vunpack.c.l.b16 %v1343
    %v1418 = vunpack.c.h.b16 %v1343
    %v1419 = vunpack.c.l.b16 %v1344
    %v1420 = vunpack.c.h.b16 %v1344
    %v1421 = vunpack.c.l.b16 %v1345
    %v1422 = vunpack.c.h.b16 %v1345
    %v1423 = vunpack.c.l.b16 %v1346
    %v1424 = vunpack.c.h.b16 %v1346
    %v1425 = vunpack.c.l.b16 %v1347
    %v1426 = vunpack.c.h.b16 %v1347
    %v1427 = vunpack.c.l.b16 %v1348
    %v1428 = vunpack.c.h.b16 %v1348
    %v1429 = vunpack.c.l.b16 %v1349
    %v1430 = vunpack.c.h.b16 %v1349
    %v1431 = vunpack.c.l.b16 %v1350
    %v1432 = vunpack.c.h.b16 %v1350
    %v1433 = vunpack.c.l.b16 %v1351
    %v1434 = vunpack.c.h.b16 %v1351
    %v1435 = vunpack.c.l.b16 %v1352
    %v1436 = vunpack.c.h.b16 %v1352
    %v1437 = vunpack.c.l.b16 %v1353
    %v1438 = vunpack.c.h.b16 %v1353
    %v1439 = vunpack.c.l.b16 %v1354
    %v1440 = vunpack.c.h.b16 %v1354
    %v1441 = vunpack.c.l.b16 %v1355
    %v1442 = vunpack.c.h.b16 %v1355
    %v1443 = vunpack.c.l.b16 %v1356
    %v1444 = vunpack.c.h.b16 %v1356
    %v1445 = vunpack.c.l.b16 %v1357
    %v1446 = vunpack.c.h.b16 %v1357
    %v1447 = vunpack.c.l.b16 %v1358
    %v1448 = vunpack.c.h.b16 %v1358
    %v1449 = vunpack.c.l.b16 %v1359
    %v1450 = vunpack.c.h.b16 %v1359
    %v1451 = vunpack.c.l.b16 %v1360
    %v1452 = vunpack.c.h.b16 %v1360
    %v1453 = vunpack.c.l.b16 %v1361
    %v1454 = vunpack.c.h.b16 %v1361
    %v1455 = vunpack.c.l.b16 %v1362
    %v1456 = vunpack.c.h.b16 %v1362
    %v1457 = vunpack.c.l.b16 %v1363
    %v1458 = vunpack.c.h.b16 %v1363
    %v1459 = vunpack.c.l.b16 %v1364
    %v1460 = vunpack.c.h.b16 %v1364
    %v1461 = vpack.c.b16 %v1401, %v1397
    %v1462 = vpack.c.b16 %v1402, %v1398
    %v1463 = vpack.c.b16 %v1403, %v1399
    %v1464 = vpack.c.b16 %v1404, %v1400
    %v1465 = vpack.c.b16 %v1409, %v1405
    %v1466 = vpack.c.b16 %v1410, %v1406
    %v1467 = vpack.c.b16 %v1411, %v1407
    %v1468 = vpack.c.b16 %v1412, %v1408
    %v1469 = vpack.c.b16 %v1417, %v1413
    %v1470 = vpack.c.b16 %v1418, %v1414
    %v1471 = vpack.c.b16 %v1419, %v1415
    %v1472 = vpack.c.b16 %v1420, %v1416
    %v1473 = vpack.c.b16 %v1425, %v1421
    %v1474 = vpack.c.b16 %v1426, %v1422
    %v1475 = vpack.c.b16 %v1427, %v1423
    %v1476 = vpack.c.b16 %v1428, %v1424
    %v1477 = vpack.c.b16 %v1433, %v1429
    %v1478 = vpack.c.b16 %v1434, %v1430
    %v1479 = vpack.c.b16 %v1435, %v1431
    %v1480 = vpack.c.b16 %v1436, %v1432
    %v1481 = vpack.c.b16 %v1441, %v1437
    %v1482 = vpack.c.b16 %v1442, %v1438
    %v1483 = vpack.c.b16 %v1443, %v1439
    %v1484 = vpack.c.b16 %v1444, %v1440
    %v1485 = vpack.c.b16 %v1449, %v1445
    %v1486 = vpack.c.b16 %v1450, %v1446
    %v1487 = vpack.c.b16 %v1451, %v1447
    %v1488 = vpack.c.b16 %v1452, %v1448
    %v1489 = vpack.c.b16 %v1457, %v1453
    %v1490 = vpack.c.b16 %v1458, %v1454
    %v1491 = vpack.c.b16 %v1459, %v1455
    %v1492 = vpack.c.b16 %v1460, %v1456
    %1525 = vmatprep.subr.bf16.mxu0 %v1462
    %1526 = vmatpush1.bf16.msra.mxu0 %v1461
    %1527 = vmatprep.subr.bf16.mxu0 %v1466
    %1528 = vmatpush1.bf16.msra.mxu0 %v1465
    %1529 = vmatprep.subr.bf16.mxu0 %v1470
    %1530 = vmatpush1.bf16.msra.mxu0 %v1469
    %1531 = vmatprep.subr.bf16.mxu0 %v1474
    %1532 = vmatpush1.bf16.msra.mxu0 %v1473
    %1533 = vmatprep.subr.bf16.mxu0 %v1478
    %1534 = vmatpush1.bf16.msra.mxu0 %v1477
    %1535 = vmatprep.subr.bf16.mxu0 %v1482
    %1536 = vmatpush1.bf16.msra.mxu0 %v1481
    %1537 = vmatprep.subr.bf16.mxu0 %v1486
    %1538 = vmatpush1.bf16.msra.mxu0 %v1485
    %1539 = vmatprep.subr.bf16.mxu0 %v1490
    %1540 = vmatpush1.bf16.msra.mxu0 %v1489
    %1541 = vmatprep.subr.bf16.mxu0 0
    %1542 = vmatpush1.bf16.msra.mxu0 0
    %1543 = vmatprep.subr.bf16.mxu0 0
    %1544 = vmatpush1.bf16.msra.mxu0 0
    %1545 = vmatprep.subr.bf16.mxu0 0
    %1546 = vmatpush1.bf16.msra.mxu0 0
    %1547 = vmatprep.subr.bf16.mxu0 0
    %1548 = vmatpush1.bf16.msra.mxu0 0
    %1549 = vmatprep.subr.bf16.mxu0 0
    %1550 = vmatpush1.bf16.msra.mxu0 0
    %1551 = vmatprep.subr.bf16.mxu0 0
    %1552 = vmatpush1.bf16.msra.mxu0 0
    %1553 = vmatprep.subr.bf16.mxu0 0
    %1554 = vmatpush1.bf16.msra.mxu0 0
    %1555 = vmatprep.subr.bf16.mxu0 0
    %1556 = vmatpush1.bf16.msra.mxu0 0
    %1557 = vmatprep.mubr.bf16.mxu0 0
    %1558 = vmatmul.mubr.bf16.gmra.mrb[0].mxu0 %v1332
    %v1559 = vpop.f32.mrb[0].mxu0
    %v1560 = vadd.f32 0.0, %v1559
    %v1561 = vpop.f32.mrb[0].mxu0
    %v1562 = vadd.f32 0.0, %v1561
    %v1563 = vpop.f32.mrb[0].mxu0
    %v1564 = vpop.f32.mrb[0].mxu0
    %1565 = vdwg.mxu0
    %1566 = vmatprep.subr.bf16.mxu0 %v1464
    %1567 = vmatpush1.bf16.msra.mxu0 %v1463
    %1568 = vmatprep.subr.bf16.mxu0 %v1468
    %1569 = vmatpush1.bf16.msra.mxu0 %v1467
    %1570 = vmatprep.subr.bf16.mxu0 %v1472
    %1571 = vmatpush1.bf16.msra.mxu0 %v1471
    %1572 = vmatprep.subr.bf16.mxu0 %v1476
    %1573 = vmatpush1.bf16.msra.mxu0 %v1475
    %1574 = vmatprep.subr.bf16.mxu0 %v1480
    %1575 = vmatpush1.bf16.msra.mxu0 %v1479
    %1576 = vmatprep.subr.bf16.mxu0 %v1484
    %1577 = vmatpush1.bf16.msra.mxu0 %v1483
    %1578 = vmatprep.subr.bf16.mxu0 %v1488
    %1579 = vmatpush1.bf16.msra.mxu0 %v1487
    %1580 = vmatprep.subr.bf16.mxu0 %v1492
    %1581 = vmatpush1.bf16.msra.mxu0 %v1491
    %1582 = vmatprep.subr.bf16.mxu0 0
    %1583 = vmatpush1.bf16.msra.mxu0 0
    %1584 = vmatprep.subr.bf16.mxu0 0
    %1585 = vmatpush1.bf16.msra.mxu0 0
    %1586 = vmatprep.subr.bf16.mxu0 0
    %1587 = vmatpush1.bf16.msra.mxu0 0
    %1588 = vmatprep.subr.bf16.mxu0 0
    %1589 = vmatpush1.bf16.msra.mxu0 0
    %1590 = vmatprep.subr.bf16.mxu0 0
    %1591 = vmatpush1.bf16.msra.mxu0 0
    %1592 = vmatprep.subr.bf16.mxu0 0
    %1593 = vmatpush1.bf16.msra.mxu0 0
    %1594 = vmatprep.subr.bf16.mxu0 0
    %1595 = vmatpush1.bf16.msra.mxu0 0
    %1596 = vmatprep.subr.bf16.mxu0 0
    %1597 = vmatpush1.bf16.msra.mxu0 0
    %1598 = vmatprep.mubr.bf16.mxu0 0
    %1599 = vmatmul.mubr.bf16.gmra.mrb[0].mxu0 %v1332
    %v1600 = vpop.f32.mrb[0].mxu0
    %v1601 = vadd.f32 0.0, %v1600
    %v1602 = vpop.f32.mrb[0].mxu0
    %v1603 = vadd.f32 0.0, %v1602
    %v1604 = vpop.f32.mrb[0].mxu0
    %v1605 = vpop.f32.mrb[0].mxu0
    %1606 = vdwg.mxu0
    %v1607 = vadd.f32 %v1328, %v1560
    %v1608 = vadd.f32 %v1329, %v1562
    %v1609 = vadd.f32 %v1330, %v1601
    %v1610 = vadd.f32 %v1331, %v1603
    %v1611 = vsub.f32 0.0, %v1607
    %v1612 = vmul.f32 %v1611, 1.442695
    %v1613 = vpow.pop %v1612
    %v1614 = vadd.f32 %v1613, 1.0
    %v1615 = vrcp.pop %v1614
    %v1616 = vsub.f32 0.0, %v1608
    %v1617 = vmul.f32 %v1616, 1.442695
    %v1618 = vpow.pop %v1617
    %v1619 = vadd.f32 %v1618, 1.0
    %v1620 = vrcp.pop %v1619
    %v1621 = vtanh.pop %v1609
    %v1622 = vsub.f32 0.0, %v1610
    %v1623 = vmul.f32 %v1622, 1.442695
    %v1624 = vpow.pop %v1623
    %v1625 = vadd.f32 %v1624, 1.0
    %v1626 = vrcp.pop %v1625
    %v1627 = vmul.f32 %v1620, %v1323
    %v1628 = vmul.f32 %v1615, %v1621
    %v1629 = vadd.f32 %v1627, %v1628
    %v1630 = vtanh.pop %v1629
    %v1631 = vmul.f32 %v1626, %v1630
    %s1632 = sadd.s32 %s55, 4
    %v1633 = vstv %s1632
    %vm1634 = vcmp.gt.s32.totalorder %v54, %v1633
    %v1635 = vsel %vm1634, 1, 0
    %1636 = vset.pattern.permute.xlu0 0
    %1637 = vperm.xlu0 %1636, %v1635
    %v1638 = vpop.permute.xlu0 %1637
    %vm1639 = vcmp.eq.s32.totalorder %v1638, 1
    %v1640 = vsel %vm1639, %v1631, %v1322
    %v1641 = vsel %vm1639, %v1629, %v1323
    %v1642 = vsel %vm1639, %v1631, 0.0
    %s1643 = scalar_lea.vmem [#allocation7], 32
    %1644 = vst [vmem:[%s1643] sm:$0xff] %v1642
    %s1645 = scalar_lea.vmem [#allocation2], 160
    %v1646 = vld [vmem:[%s1645] sm:$0xff]
    %v1647 = vld [vmem:[%s1645 + $0x8] sm:$0xff]
    %v1648 = vld [vmem:[%s1645 + $0x10] sm:$0xff]
    %v1649 = vld [vmem:[%s1645 + $0x18] sm:$0xff]
    %v1650 = vpack.c.bf16 %v1640, %v1640
    %v1651 = vld [vmem:[#allocation5] sm:$0xff]
    %v1652 = vld [vmem:[#allocation5 + $0x8] sm:$0xff]
    %v1653 = vld [vmem:[#allocation5 + $0x10] sm:$0xff]
    %v1654 = vld [vmem:[#allocation5 + $0x18] sm:$0xff]
    %v1655 = vld [vmem:[#allocation5 + $0x20] sm:$0xff]
    %v1656 = vld [vmem:[#allocation5 + $0x28] sm:$0xff]
    %v1657 = vld [vmem:[#allocation5 + $0x30] sm:$0xff]
    %v1658 = vld [vmem:[#allocation5 + $0x38] sm:$0xff]
    %v1659 = vld [vmem:[#allocation5 + $0x40] sm:$0xff]
    %v1660 = vld [vmem:[#allocation5 + $0x48] sm:$0xff]
    %v1661 = vld [vmem:[#allocation5 + $0x50] sm:$0xff]
    %v1662 = vld [vmem:[#allocation5 + $0x58] sm:$0xff]
    %v1663 = vld [vmem:[#allocation5 + $0x60] sm:$0xff]
    %v1664 = vld [vmem:[#allocation5 + $0x68] sm:$0xff]
    %v1665 = vld [vmem:[#allocation5 + $0x70] sm:$0xff]
    %v1666 = vld [vmem:[#allocation5 + $0x78] sm:$0xff]
    %v1667 = vld [vmem:[#allocation5 + $0x80] sm:$0xff]
    %v1668 = vld [vmem:[#allocation5 + $0x88] sm:$0xff]
    %v1669 = vld [vmem:[#allocation5 + $0x90] sm:$0xff]
    %v1670 = vld [vmem:[#allocation5 + $0x98] sm:$0xff]
    %v1671 = vld [vmem:[#allocation5 + $0xa0] sm:$0xff]
    %v1672 = vld [vmem:[#allocation5 + $0xa8] sm:$0xff]
    %v1673 = vld [vmem:[#allocation5 + $0xb0] sm:$0xff]
    %v1674 = vld [vmem:[#allocation5 + $0xb8] sm:$0xff]
    %v1675 = vld [vmem:[#allocation5 + $0xc0] sm:$0xff]
    %v1676 = vld [vmem:[#allocation5 + $0xc8] sm:$0xff]
    %v1677 = vld [vmem:[#allocation5 + $0xd0] sm:$0xff]
    %v1678 = vld [vmem:[#allocation5 + $0xd8] sm:$0xff]
    %v1679 = vld [vmem:[#allocation5 + $0xe0] sm:$0xff]
    %v1680 = vld [vmem:[#allocation5 + $0xe8] sm:$0xff]
    %v1681 = vld [vmem:[#allocation5 + $0xf0] sm:$0xff]
    %v1682 = vld [vmem:[#allocation5 + $0xf8] sm:$0xff]
    %v1715 = vunpack.c.l.b16 %v1651
    %v1716 = vunpack.c.h.b16 %v1651
    %v1717 = vunpack.c.l.b16 %v1652
    %v1718 = vunpack.c.h.b16 %v1652
    %v1719 = vunpack.c.l.b16 %v1653
    %v1720 = vunpack.c.h.b16 %v1653
    %v1721 = vunpack.c.l.b16 %v1654
    %v1722 = vunpack.c.h.b16 %v1654
    %v1723 = vunpack.c.l.b16 %v1655
    %v1724 = vunpack.c.h.b16 %v1655
    %v1725 = vunpack.c.l.b16 %v1656
    %v1726 = vunpack.c.h.b16 %v1656
    %v1727 = vunpack.c.l.b16 %v1657
    %v1728 = vunpack.c.h.b16 %v1657
    %v1729 = vunpack.c.l.b16 %v1658
    %v1730 = vunpack.c.h.b16 %v1658
    %v1731 = vunpack.c.l.b16 %v1659
    %v1732 = vunpack.c.h.b16 %v1659
    %v1733 = vunpack.c.l.b16 %v1660
    %v1734 = vunpack.c.h.b16 %v1660
    %v1735 = vunpack.c.l.b16 %v1661
    %v1736 = vunpack.c.h.b16 %v1661
    %v1737 = vunpack.c.l.b16 %v1662
    %v1738 = vunpack.c.h.b16 %v1662
    %v1739 = vunpack.c.l.b16 %v1663
    %v1740 = vunpack.c.h.b16 %v1663
    %v1741 = vunpack.c.l.b16 %v1664
    %v1742 = vunpack.c.h.b16 %v1664
    %v1743 = vunpack.c.l.b16 %v1665
    %v1744 = vunpack.c.h.b16 %v1665
    %v1745 = vunpack.c.l.b16 %v1666
    %v1746 = vunpack.c.h.b16 %v1666
    %v1747 = vunpack.c.l.b16 %v1667
    %v1748 = vunpack.c.h.b16 %v1667
    %v1749 = vunpack.c.l.b16 %v1668
    %v1750 = vunpack.c.h.b16 %v1668
    %v1751 = vunpack.c.l.b16 %v1669
    %v1752 = vunpack.c.h.b16 %v1669
    %v1753 = vunpack.c.l.b16 %v1670
    %v1754 = vunpack.c.h.b16 %v1670
    %v1755 = vunpack.c.l.b16 %v1671
    %v1756 = vunpack.c.h.b16 %v1671
    %v1757 = vunpack.c.l.b16 %v1672
    %v1758 = vunpack.c.h.b16 %v1672
    %v1759 = vunpack.c.l.b16 %v1673
    %v1760 = vunpack.c.h.b16 %v1673
    %v1761 = vunpack.c.l.b16 %v1674
    %v1762 = vunpack.c.h.b16 %v1674
    %v1763 = vunpack.c.l.b16 %v1675
    %v1764 = vunpack.c.h.b16 %v1675
    %v1765 = vunpack.c.l.b16 %v1676
    %v1766 = vunpack.c.h.b16 %v1676
    %v1767 = vunpack.c.l.b16 %v1677
    %v1768 = vunpack.c.h.b16 %v1677
    %v1769 = vunpack.c.l.b16 %v1678
    %v1770 = vunpack.c.h.b16 %v1678
    %v1771 = vunpack.c.l.b16 %v1679
    %v1772 = vunpack.c.h.b16 %v1679
    %v1773 = vunpack.c.l.b16 %v1680
    %v1774 = vunpack.c.h.b16 %v1680
    %v1775 = vunpack.c.l.b16 %v1681
    %v1776 = vunpack.c.h.b16 %v1681
    %v1777 = vunpack.c.l.b16 %v1682
    %v1778 = vunpack.c.h.b16 %v1682
    %v1779 = vpack.c.b16 %v1719, %v1715
    %v1780 = vpack.c.b16 %v1720, %v1716
    %v1781 = vpack.c.b16 %v1721, %v1717
    %v1782 = vpack.c.b16 %v1722, %v1718
    %v1783 = vpack.c.b16 %v1727, %v1723
    %v1784 = vpack.c.b16 %v1728, %v1724
    %v1785 = vpack.c.b16 %v1729, %v1725
    %v1786 = vpack.c.b16 %v1730, %v1726
    %v1787 = vpack.c.b16 %v1735, %v1731
    %v1788 = vpack.c.b16 %v1736, %v1732
    %v1789 = vpack.c.b16 %v1737, %v1733
    %v1790 = vpack.c.b16 %v1738, %v1734
    %v1791 = vpack.c.b16 %v1743, %v1739
    %v1792 = vpack.c.b16 %v1744, %v1740
    %v1793 = vpack.c.b16 %v1745, %v1741
    %v1794 = vpack.c.b16 %v1746, %v1742
    %v1795 = vpack.c.b16 %v1751, %v1747
    %v1796 = vpack.c.b16 %v1752, %v1748
    %v1797 = vpack.c.b16 %v1753, %v1749
    %v1798 = vpack.c.b16 %v1754, %v1750
    %v1799 = vpack.c.b16 %v1759, %v1755
    %v1800 = vpack.c.b16 %v1760, %v1756
    %v1801 = vpack.c.b16 %v1761, %v1757
    %v1802 = vpack.c.b16 %v1762, %v1758
    %v1803 = vpack.c.b16 %v1767, %v1763
    %v1804 = vpack.c.b16 %v1768, %v1764
    %v1805 = vpack.c.b16 %v1769, %v1765
    %v1806 = vpack.c.b16 %v1770, %v1766
    %v1807 = vpack.c.b16 %v1775, %v1771
    %v1808 = vpack.c.b16 %v1776, %v1772
    %v1809 = vpack.c.b16 %v1777, %v1773
    %v1810 = vpack.c.b16 %v1778, %v1774
    %1843 = vmatprep.subr.bf16.mxu0 %v1780
    %1844 = vmatpush1.bf16.msra.mxu0 %v1779
    %1845 = vmatprep.subr.bf16.mxu0 %v1784
    %1846 = vmatpush1.bf16.msra.mxu0 %v1783
    %1847 = vmatprep.subr.bf16.mxu0 %v1788
    %1848 = vmatpush1.bf16.msra.mxu0 %v1787
    %1849 = vmatprep.subr.bf16.mxu0 %v1792
    %1850 = vmatpush1.bf16.msra.mxu0 %v1791
    %1851 = vmatprep.subr.bf16.mxu0 %v1796
    %1852 = vmatpush1.bf16.msra.mxu0 %v1795
    %1853 = vmatprep.subr.bf16.mxu0 %v1800
    %1854 = vmatpush1.bf16.msra.mxu0 %v1799
    %1855 = vmatprep.subr.bf16.mxu0 %v1804
    %1856 = vmatpush1.bf16.msra.mxu0 %v1803
    %1857 = vmatprep.subr.bf16.mxu0 %v1808
    %1858 = vmatpush1.bf16.msra.mxu0 %v1807
    %1859 = vmatprep.subr.bf16.mxu0 0
    %1860 = vmatpush1.bf16.msra.mxu0 0
    %1861 = vmatprep.subr.bf16.mxu0 0
    %1862 = vmatpush1.bf16.msra.mxu0 0
    %1863 = vmatprep.subr.bf16.mxu0 0
    %1864 = vmatpush1.bf16.msra.mxu0 0
    %1865 = vmatprep.subr.bf16.mxu0 0
    %1866 = vmatpush1.bf16.msra.mxu0 0
    %1867 = vmatprep.subr.bf16.mxu0 0
    %1868 = vmatpush1.bf16.msra.mxu0 0
    %1869 = vmatprep.subr.bf16.mxu0 0
    %1870 = vmatpush1.bf16.msra.mxu0 0
    %1871 = vmatprep.subr.bf16.mxu0 0
    %1872 = vmatpush1.bf16.msra.mxu0 0
    %1873 = vmatprep.subr.bf16.mxu0 0
    %1874 = vmatpush1.bf16.msra.mxu0 0
    %1875 = vmatprep.mubr.bf16.mxu0 0
    %1876 = vmatmul.mubr.bf16.gmra.mrb[0].mxu0 %v1650
    %v1877 = vpop.f32.mrb[0].mxu0
    %v1878 = vadd.f32 0.0, %v1877
    %v1879 = vpop.f32.mrb[0].mxu0
    %v1880 = vadd.f32 0.0, %v1879
    %v1881 = vpop.f32.mrb[0].mxu0
    %v1882 = vpop.f32.mrb[0].mxu0
    %1883 = vdwg.mxu0
    %1884 = vmatprep.subr.bf16.mxu0 %v1782
    %1885 = vmatpush1.bf16.msra.mxu0 %v1781
    %1886 = vmatprep.subr.bf16.mxu0 %v1786
    %1887 = vmatpush1.bf16.msra.mxu0 %v1785
    %1888 = vmatprep.subr.bf16.mxu0 %v1790
    %1889 = vmatpush1.bf16.msra.mxu0 %v1789
    %1890 = vmatprep.subr.bf16.mxu0 %v1794
    %1891 = vmatpush1.bf16.msra.mxu0 %v1793
    %1892 = vmatprep.subr.bf16.mxu0 %v1798
    %1893 = vmatpush1.bf16.msra.mxu0 %v1797
    %1894 = vmatprep.subr.bf16.mxu0 %v1802
    %1895 = vmatpush1.bf16.msra.mxu0 %v1801
    %1896 = vmatprep.subr.bf16.mxu0 %v1806
    %1897 = vmatpush1.bf16.msra.mxu0 %v1805
    %1898 = vmatprep.subr.bf16.mxu0 %v1810
    %1899 = vmatpush1.bf16.msra.mxu0 %v1809
    %1900 = vmatprep.subr.bf16.mxu0 0
    %1901 = vmatpush1.bf16.msra.mxu0 0
    %1902 = vmatprep.subr.bf16.mxu0 0
    %1903 = vmatpush1.bf16.msra.mxu0 0
    %1904 = vmatprep.subr.bf16.mxu0 0
    %1905 = vmatpush1.bf16.msra.mxu0 0
    %1906 = vmatprep.subr.bf16.mxu0 0
    %1907 = vmatpush1.bf16.msra.mxu0 0
    %1908 = vmatprep.subr.bf16.mxu0 0
    %1909 = vmatpush1.bf16.msra.mxu0 0
    %1910 = vmatprep.subr.bf16.mxu0 0
    %1911 = vmatpush1.bf16.msra.mxu0 0
    %1912 = vmatprep.subr.bf16.mxu0 0
    %1913 = vmatpush1.bf16.msra.mxu0 0
    %1914 = vmatprep.subr.bf16.mxu0 0
    %1915 = vmatpush1.bf16.msra.mxu0 0
    %1916 = vmatprep.mubr.bf16.mxu0 0
    %1917 = vmatmul.mubr.bf16.gmra.mrb[0].mxu0 %v1650
    %v1918 = vpop.f32.mrb[0].mxu0
    %v1919 = vadd.f32 0.0, %v1918
    %v1920 = vpop.f32.mrb[0].mxu0
    %v1921 = vadd.f32 0.0, %v1920
    %v1922 = vpop.f32.mrb[0].mxu0
    %v1923 = vpop.f32.mrb[0].mxu0
    %1924 = vdwg.mxu0
    %v1925 = vadd.f32 %v1646, %v1878
    %v1926 = vadd.f32 %v1647, %v1880
    %v1927 = vadd.f32 %v1648, %v1919
    %v1928 = vadd.f32 %v1649, %v1921
    %v1929 = vsub.f32 0.0, %v1925
    %v1930 = vmul.f32 %v1929, 1.442695
    %v1931 = vpow.pop %v1930
    %v1932 = vadd.f32 %v1931, 1.0
    %v1933 = vrcp.pop %v1932
    %v1934 = vsub.f32 0.0, %v1926
    %v1935 = vmul.f32 %v1934, 1.442695
    %v1936 = vpow.pop %v1935
    %v1937 = vadd.f32 %v1936, 1.0
    %v1938 = vrcp.pop %v1937
    %v1939 = vtanh.pop %v1927
    %v1940 = vsub.f32 0.0, %v1928
    %v1941 = vmul.f32 %v1940, 1.442695
    %v1942 = vpow.pop %v1941
    %v1943 = vadd.f32 %v1942, 1.0
    %v1944 = vrcp.pop %v1943
    %v1945 = vmul.f32 %v1938, %v1641
    %v1946 = vmul.f32 %v1933, %v1939
    %v1947 = vadd.f32 %v1945, %v1946
    %v1948 = vtanh.pop %v1947
    %v1949 = vmul.f32 %v1944, %v1948
    %s1950 = sadd.s32 %s55, 5
    %v1951 = vstv %s1950
    %vm1952 = vcmp.gt.s32.totalorder %v54, %v1951
    %v1953 = vsel %vm1952, 1, 0
    %1954 = vset.pattern.permute.xlu0 0
    %1955 = vperm.xlu0 %1954, %v1953
    %v1956 = vpop.permute.xlu0 %1955
    %vm1957 = vcmp.eq.s32.totalorder %v1956, 1
    %v1958 = vsel %vm1957, %v1949, %v1640
    %v1959 = vsel %vm1957, %v1947, %v1641
    %v1960 = vsel %vm1957, %v1949, 0.0
    %s1961 = scalar_lea.vmem [#allocation7], 40
    %1962 = vst [vmem:[%s1961] sm:$0xff] %v1960
    %s1963 = scalar_lea.vmem [#allocation2], 192
    %v1964 = vld [vmem:[%s1963] sm:$0xff]
    %v1965 = vld [vmem:[%s1963 + $0x8] sm:$0xff]
    %v1966 = vld [vmem:[%s1963 + $0x10] sm:$0xff]
    %v1967 = vld [vmem:[%s1963 + $0x18] sm:$0xff]
    %v1968 = vpack.c.bf16 %v1958, %v1958
    %v1969 = vld [vmem:[#allocation5] sm:$0xff]
    %v1970 = vld [vmem:[#allocation5 + $0x8] sm:$0xff]
    %v1971 = vld [vmem:[#allocation5 + $0x10] sm:$0xff]
    %v1972 = vld [vmem:[#allocation5 + $0x18] sm:$0xff]
    %v1973 = vld [vmem:[#allocation5 + $0x20] sm:$0xff]
    %v1974 = vld [vmem:[#allocation5 + $0x28] sm:$0xff]
    %v1975 = vld [vmem:[#allocation5 + $0x30] sm:$0xff]
    %v1976 = vld [vmem:[#allocation5 + $0x38] sm:$0xff]
    %v1977 = vld [vmem:[#allocation5 + $0x40] sm:$0xff]
    %v1978 = vld [vmem:[#allocation5 + $0x48] sm:$0xff]
    %v1979 = vld [vmem:[#allocation5 + $0x50] sm:$0xff]
    %v1980 = vld [vmem:[#allocation5 + $0x58] sm:$0xff]
    %v1981 = vld [vmem:[#allocation5 + $0x60] sm:$0xff]
    %v1982 = vld [vmem:[#allocation5 + $0x68] sm:$0xff]
    %v1983 = vld [vmem:[#allocation5 + $0x70] sm:$0xff]
    %v1984 = vld [vmem:[#allocation5 + $0x78] sm:$0xff]
    %v1985 = vld [vmem:[#allocation5 + $0x80] sm:$0xff]
    %v1986 = vld [vmem:[#allocation5 + $0x88] sm:$0xff]
    %v1987 = vld [vmem:[#allocation5 + $0x90] sm:$0xff]
    %v1988 = vld [vmem:[#allocation5 + $0x98] sm:$0xff]
    %v1989 = vld [vmem:[#allocation5 + $0xa0] sm:$0xff]
    %v1990 = vld [vmem:[#allocation5 + $0xa8] sm:$0xff]
    %v1991 = vld [vmem:[#allocation5 + $0xb0] sm:$0xff]
    %v1992 = vld [vmem:[#allocation5 + $0xb8] sm:$0xff]
    %v1993 = vld [vmem:[#allocation5 + $0xc0] sm:$0xff]
    %v1994 = vld [vmem:[#allocation5 + $0xc8] sm:$0xff]
    %v1995 = vld [vmem:[#allocation5 + $0xd0] sm:$0xff]
    %v1996 = vld [vmem:[#allocation5 + $0xd8] sm:$0xff]
    %v1997 = vld [vmem:[#allocation5 + $0xe0] sm:$0xff]
    %v1998 = vld [vmem:[#allocation5 + $0xe8] sm:$0xff]
    %v1999 = vld [vmem:[#allocation5 + $0xf0] sm:$0xff]
    %v2000 = vld [vmem:[#allocation5 + $0xf8] sm:$0xff]
    %v2033 = vunpack.c.l.b16 %v1969
    %v2034 = vunpack.c.h.b16 %v1969
    %v2035 = vunpack.c.l.b16 %v1970
    %v2036 = vunpack.c.h.b16 %v1970
    %v2037 = vunpack.c.l.b16 %v1971
    %v2038 = vunpack.c.h.b16 %v1971
    %v2039 = vunpack.c.l.b16 %v1972
    %v2040 = vunpack.c.h.b16 %v1972
    %v2041 = vunpack.c.l.b16 %v1973
    %v2042 = vunpack.c.h.b16 %v1973
    %v2043 = vunpack.c.l.b16 %v1974
    %v2044 = vunpack.c.h.b16 %v1974
    %v2045 = vunpack.c.l.b16 %v1975
    %v2046 = vunpack.c.h.b16 %v1975
    %v2047 = vunpack.c.l.b16 %v1976
    %v2048 = vunpack.c.h.b16 %v1976
    %v2049 = vunpack.c.l.b16 %v1977
    %v2050 = vunpack.c.h.b16 %v1977
    %v2051 = vunpack.c.l.b16 %v1978
    %v2052 = vunpack.c.h.b16 %v1978
    %v2053 = vunpack.c.l.b16 %v1979
    %v2054 = vunpack.c.h.b16 %v1979
    %v2055 = vunpack.c.l.b16 %v1980
    %v2056 = vunpack.c.h.b16 %v1980
    %v2057 = vunpack.c.l.b16 %v1981
    %v2058 = vunpack.c.h.b16 %v1981
    %v2059 = vunpack.c.l.b16 %v1982
    %v2060 = vunpack.c.h.b16 %v1982
    %v2061 = vunpack.c.l.b16 %v1983
    %v2062 = vunpack.c.h.b16 %v1983
    %v2063 = vunpack.c.l.b16 %v1984
    %v2064 = vunpack.c.h.b16 %v1984
    %v2065 = vunpack.c.l.b16 %v1985
    %v2066 = vunpack.c.h.b16 %v1985
    %v2067 = vunpack.c.l.b16 %v1986
    %v2068 = vunpack.c.h.b16 %v1986
    %v2069 = vunpack.c.l.b16 %v1987
    %v2070 = vunpack.c.h.b16 %v1987
    %v2071 = vunpack.c.l.b16 %v1988
    %v2072 = vunpack.c.h.b16 %v1988
    %v2073 = vunpack.c.l.b16 %v1989
    %v2074 = vunpack.c.h.b16 %v1989
    %v2075 = vunpack.c.l.b16 %v1990
    %v2076 = vunpack.c.h.b16 %v1990
    %v2077 = vunpack.c.l.b16 %v1991
    %v2078 = vunpack.c.h.b16 %v1991
    %v2079 = vunpack.c.l.b16 %v1992
    %v2080 = vunpack.c.h.b16 %v1992
    %v2081 = vunpack.c.l.b16 %v1993
    %v2082 = vunpack.c.h.b16 %v1993
    %v2083 = vunpack.c.l.b16 %v1994
    %v2084 = vunpack.c.h.b16 %v1994
    %v2085 = vunpack.c.l.b16 %v1995
    %v2086 = vunpack.c.h.b16 %v1995
    %v2087 = vunpack.c.l.b16 %v1996
    %v2088 = vunpack.c.h.b16 %v1996
    %v2089 = vunpack.c.l.b16 %v1997
    %v2090 = vunpack.c.h.b16 %v1997
    %v2091 = vunpack.c.l.b16 %v1998
    %v2092 = vunpack.c.h.b16 %v1998
    %v2093 = vunpack.c.l.b16 %v1999
    %v2094 = vunpack.c.h.b16 %v1999
    %v2095 = vunpack.c.l.b16 %v2000
    %v2096 = vunpack.c.h.b16 %v2000
    %v2097 = vpack.c.b16 %v2037, %v2033
    %v2098 = vpack.c.b16 %v2038, %v2034
    %v2099 = vpack.c.b16 %v2039, %v2035
    %v2100 = vpack.c.b16 %v2040, %v2036
    %v2101 = vpack.c.b16 %v2045, %v2041
    %v2102 = vpack.c.b16 %v2046, %v2042
    %v2103 = vpack.c.b16 %v2047, %v2043
    %v2104 = vpack.c.b16 %v2048, %v2044
    %v2105 = vpack.c.b16 %v2053, %v2049
    %v2106 = vpack.c.b16 %v2054, %v2050
    %v2107 = vpack.c.b16 %v2055, %v2051
    %v2108 = vpack.c.b16 %v2056, %v2052
    %v2109 = vpack.c.b16 %v2061, %v2057
    %v2110 = vpack.c.b16 %v2062, %v2058
    %v2111 = vpack.c.b16 %v2063, %v2059
    %v2112 = vpack.c.b16 %v2064, %v2060
    %v2113 = vpack.c.b16 %v2069, %v2065
    %v2114 = vpack.c.b16 %v2070, %v2066
    %v2115 = vpack.c.b16 %v2071, %v2067
    %v2116 = vpack.c.b16 %v2072, %v2068
    %v2117 = vpack.c.b16 %v2077, %v2073
    %v2118 = vpack.c.b16 %v2078, %v2074
    %v2119 = vpack.c.b16 %v2079, %v2075
    %v2120 = vpack.c.b16 %v2080, %v2076
    %v2121 = vpack.c.b16 %v2085, %v2081
    %v2122 = vpack.c.b16 %v2086, %v2082
    %v2123 = vpack.c.b16 %v2087, %v2083
    %v2124 = vpack.c.b16 %v2088, %v2084
    %v2125 = vpack.c.b16 %v2093, %v2089
    %v2126 = vpack.c.b16 %v2094, %v2090
    %v2127 = vpack.c.b16 %v2095, %v2091
    %v2128 = vpack.c.b16 %v2096, %v2092
    %2161 = vmatprep.subr.bf16.mxu0 %v2098
    %2162 = vmatpush1.bf16.msra.mxu0 %v2097
    %2163 = vmatprep.subr.bf16.mxu0 %v2102
    %2164 = vmatpush1.bf16.msra.mxu0 %v2101
    %2165 = vmatprep.subr.bf16.mxu0 %v2106
    %2166 = vmatpush1.bf16.msra.mxu0 %v2105
    %2167 = vmatprep.subr.bf16.mxu0 %v2110
    %2168 = vmatpush1.bf16.msra.mxu0 %v2109
    %2169 = vmatprep.subr.bf16.mxu0 %v2114
    %2170 = vmatpush1.bf16.msra.mxu0 %v2113
    %2171 = vmatprep.subr.bf16.mxu0 %v2118
    %2172 = vmatpush1.bf16.msra.mxu0 %v2117
    %2173 = vmatprep.subr.bf16.mxu0 %v2122
    %2174 = vmatpush1.bf16.msra.mxu0 %v2121
    %2175 = vmatprep.subr.bf16.mxu0 %v2126
    %2176 = vmatpush1.bf16.msra.mxu0 %v2125
    %2177 = vmatprep.subr.bf16.mxu0 0
    %2178 = vmatpush1.bf16.msra.mxu0 0
    %2179 = vmatprep.subr.bf16.mxu0 0
    %2180 = vmatpush1.bf16.msra.mxu0 0
    %2181 = vmatprep.subr.bf16.mxu0 0
    %2182 = vmatpush1.bf16.msra.mxu0 0
    %2183 = vmatprep.subr.bf16.mxu0 0
    %2184 = vmatpush1.bf16.msra.mxu0 0
    %2185 = vmatprep.subr.bf16.mxu0 0
    %2186 = vmatpush1.bf16.msra.mxu0 0
    %2187 = vmatprep.subr.bf16.mxu0 0
    %2188 = vmatpush1.bf16.msra.mxu0 0
    %2189 = vmatprep.subr.bf16.mxu0 0
    %2190 = vmatpush1.bf16.msra.mxu0 0
    %2191 = vmatprep.subr.bf16.mxu0 0
    %2192 = vmatpush1.bf16.msra.mxu0 0
    %2193 = vmatprep.mubr.bf16.mxu0 0
    %2194 = vmatmul.mubr.bf16.gmra.mrb[0].mxu0 %v1968
    %v2195 = vpop.f32.mrb[0].mxu0
    %v2196 = vadd.f32 0.0, %v2195
    %v2197 = vpop.f32.mrb[0].mxu0
    %v2198 = vadd.f32 0.0, %v2197
    %v2199 = vpop.f32.mrb[0].mxu0
    %v2200 = vpop.f32.mrb[0].mxu0
    %2201 = vdwg.mxu0
    %2202 = vmatprep.subr.bf16.mxu0 %v2100
    %2203 = vmatpush1.bf16.msra.mxu0 %v2099
    %2204 = vmatprep.subr.bf16.mxu0 %v2104
    %2205 = vmatpush1.bf16.msra.mxu0 %v2103
    %2206 = vmatprep.subr.bf16.mxu0 %v2108
    %2207 = vmatpush1.bf16.msra.mxu0 %v2107
    %2208 = vmatprep.subr.bf16.mxu0 %v2112
    %2209 = vmatpush1.bf16.msra.mxu0 %v2111
    %2210 = vmatprep.subr.bf16.mxu0 %v2116
    %2211 = vmatpush1.bf16.msra.mxu0 %v2115
    %2212 = vmatprep.subr.bf16.mxu0 %v2120
    %2213 = vmatpush1.bf16.msra.mxu0 %v2119
    %2214 = vmatprep.subr.bf16.mxu0 %v2124
    %2215 = vmatpush1.bf16.msra.mxu0 %v2123
    %2216 = vmatprep.subr.bf16.mxu0 %v2128
    %2217 = vmatpush1.bf16.msra.mxu0 %v2127
    %2218 = vmatprep.subr.bf16.mxu0 0
    %2219 = vmatpush1.bf16.msra.mxu0 0
    %2220 = vmatprep.subr.bf16.mxu0 0
    %2221 = vmatpush1.bf16.msra.mxu0 0
    %2222 = vmatprep.subr.bf16.mxu0 0
    %2223 = vmatpush1.bf16.msra.mxu0 0
    %2224 = vmatprep.subr.bf16.mxu0 0
    %2225 = vmatpush1.bf16.msra.mxu0 0
    %2226 = vmatprep.subr.bf16.mxu0 0
    %2227 = vmatpush1.bf16.msra.mxu0 0
    %2228 = vmatprep.subr.bf16.mxu0 0
    %2229 = vmatpush1.bf16.msra.mxu0 0
    %2230 = vmatprep.subr.bf16.mxu0 0
    %2231 = vmatpush1.bf16.msra.mxu0 0
    %2232 = vmatprep.subr.bf16.mxu0 0
    %2233 = vmatpush1.bf16.msra.mxu0 0
    %2234 = vmatprep.mubr.bf16.mxu0 0
    %2235 = vmatmul.mubr.bf16.gmra.mrb[0].mxu0 %v1968
    %v2236 = vpop.f32.mrb[0].mxu0
    %v2237 = vadd.f32 0.0, %v2236
    %v2238 = vpop.f32.mrb[0].mxu0
    %v2239 = vadd.f32 0.0, %v2238
    %v2240 = vpop.f32.mrb[0].mxu0
    %v2241 = vpop.f32.mrb[0].mxu0
    %2242 = vdwg.mxu0
    %v2243 = vadd.f32 %v1964, %v2196
    %v2244 = vadd.f32 %v1965, %v2198
    %v2245 = vadd.f32 %v1966, %v2237
    %v2246 = vadd.f32 %v1967, %v2239
    %v2247 = vsub.f32 0.0, %v2243
    %v2248 = vmul.f32 %v2247, 1.442695
    %v2249 = vpow.pop %v2248
    %v2250 = vadd.f32 %v2249, 1.0
    %v2251 = vrcp.pop %v2250
    %v2252 = vsub.f32 0.0, %v2244
    %v2253 = vmul.f32 %v2252, 1.442695
    %v2254 = vpow.pop %v2253
    %v2255 = vadd.f32 %v2254, 1.0
    %v2256 = vrcp.pop %v2255
    %v2257 = vtanh.pop %v2245
    %v2258 = vsub.f32 0.0, %v2246
    %v2259 = vmul.f32 %v2258, 1.442695
    %v2260 = vpow.pop %v2259
    %v2261 = vadd.f32 %v2260, 1.0
    %v2262 = vrcp.pop %v2261
    %v2263 = vmul.f32 %v2256, %v1959
    %v2264 = vmul.f32 %v2251, %v2257
    %v2265 = vadd.f32 %v2263, %v2264
    %v2266 = vtanh.pop %v2265
    %v2267 = vmul.f32 %v2262, %v2266
    %s2268 = sadd.s32 %s55, 6
    %v2269 = vstv %s2268
    %vm2270 = vcmp.gt.s32.totalorder %v54, %v2269
    %v2271 = vsel %vm2270, 1, 0
    %2272 = vset.pattern.permute.xlu0 0
    %2273 = vperm.xlu0 %2272, %v2271
    %v2274 = vpop.permute.xlu0 %2273
    %vm2275 = vcmp.eq.s32.totalorder %v2274, 1
    %v2276 = vsel %vm2275, %v2267, %v1958
    %v2277 = vsel %vm2275, %v2265, %v1959
    %v2278 = vsel %vm2275, %v2267, 0.0
    %s2279 = scalar_lea.vmem [#allocation7], 48
    %2280 = vst [vmem:[%s2279] sm:$0xff] %v2278
    %s2281 = scalar_lea.vmem [#allocation2], 224
    %v2282 = vld [vmem:[%s2281] sm:$0xff]
    %v2283 = vld [vmem:[%s2281 + $0x8] sm:$0xff]
    %v2284 = vld [vmem:[%s2281 + $0x10] sm:$0xff]
    %v2285 = vld [vmem:[%s2281 + $0x18] sm:$0xff]
    %v2286 = vpack.c.bf16 %v2276, %v2276
    %v2287 = vld [vmem:[#allocation5] sm:$0xff]
    %v2288 = vld [vmem:[#allocation5 + $0x8] sm:$0xff]
    %v2289 = vld [vmem:[#allocation5 + $0x10] sm:$0xff]
    %v2290 = vld [vmem:[#allocation5 + $0x18] sm:$0xff]
    %v2291 = vld [vmem:[#allocation5 + $0x20] sm:$0xff]
    %v2292 = vld [vmem:[#allocation5 + $0x28] sm:$0xff]
    %v2293 = vld [vmem:[#allocation5 + $0x30] sm:$0xff]
    %v2294 = vld [vmem:[#allocation5 + $0x38] sm:$0xff]
    %v2295 = vld [vmem:[#allocation5 + $0x40] sm:$0xff]
    %v2296 = vld [vmem:[#allocation5 + $0x48] sm:$0xff]
    %v2297 = vld [vmem:[#allocation5 + $0x50] sm:$0xff]
    %v2298 = vld [vmem:[#allocation5 + $0x58] sm:$0xff]
    %v2299 = vld [vmem:[#allocation5 + $0x60] sm:$0xff]
    %v2300 = vld [vmem:[#allocation5 + $0x68] sm:$0xff]
    %v2301 = vld [vmem:[#allocation5 + $0x70] sm:$0xff]
    %v2302 = vld [vmem:[#allocation5 + $0x78] sm:$0xff]
    %v2303 = vld [vmem:[#allocation5 + $0x80] sm:$0xff]
    %v2304 = vld [vmem:[#allocation5 + $0x88] sm:$0xff]
    %v2305 = vld [vmem:[#allocation5 + $0x90] sm:$0xff]
    %v2306 = vld [vmem:[#allocation5 + $0x98] sm:$0xff]
    %v2307 = vld [vmem:[#allocation5 + $0xa0] sm:$0xff]
    %v2308 = vld [vmem:[#allocation5 + $0xa8] sm:$0xff]
    %v2309 = vld [vmem:[#allocation5 + $0xb0] sm:$0xff]
    %v2310 = vld [vmem:[#allocation5 + $0xb8] sm:$0xff]
    %v2311 = vld [vmem:[#allocation5 + $0xc0] sm:$0xff]
    %v2312 = vld [vmem:[#allocation5 + $0xc8] sm:$0xff]
    %v2313 = vld [vmem:[#allocation5 + $0xd0] sm:$0xff]
    %v2314 = vld [vmem:[#allocation5 + $0xd8] sm:$0xff]
    %v2315 = vld [vmem:[#allocation5 + $0xe0] sm:$0xff]
    %v2316 = vld [vmem:[#allocation5 + $0xe8] sm:$0xff]
    %v2317 = vld [vmem:[#allocation5 + $0xf0] sm:$0xff]
    %v2318 = vld [vmem:[#allocation5 + $0xf8] sm:$0xff]
    %v2351 = vunpack.c.l.b16 %v2287
    %v2352 = vunpack.c.h.b16 %v2287
    %v2353 = vunpack.c.l.b16 %v2288
    %v2354 = vunpack.c.h.b16 %v2288
    %v2355 = vunpack.c.l.b16 %v2289
    %v2356 = vunpack.c.h.b16 %v2289
    %v2357 = vunpack.c.l.b16 %v2290
    %v2358 = vunpack.c.h.b16 %v2290
    %v2359 = vunpack.c.l.b16 %v2291
    %v2360 = vunpack.c.h.b16 %v2291
    %v2361 = vunpack.c.l.b16 %v2292
    %v2362 = vunpack.c.h.b16 %v2292
    %v2363 = vunpack.c.l.b16 %v2293
    %v2364 = vunpack.c.h.b16 %v2293
    %v2365 = vunpack.c.l.b16 %v2294
    %v2366 = vunpack.c.h.b16 %v2294
    %v2367 = vunpack.c.l.b16 %v2295
    %v2368 = vunpack.c.h.b16 %v2295
    %v2369 = vunpack.c.l.b16 %v2296
    %v2370 = vunpack.c.h.b16 %v2296
    %v2371 = vunpack.c.l.b16 %v2297
    %v2372 = vunpack.c.h.b16 %v2297
    %v2373 = vunpack.c.l.b16 %v2298
    %v2374 = vunpack.c.h.b16 %v2298
    %v2375 = vunpack.c.l.b16 %v2299
    %v2376 = vunpack.c.h.b16 %v2299
    %v2377 = vunpack.c.l.b16 %v2300
    %v2378 = vunpack.c.h.b16 %v2300
    %v2379 = vunpack.c.l.b16 %v2301
    %v2380 = vunpack.c.h.b16 %v2301
    %v2381 = vunpack.c.l.b16 %v2302
    %v2382 = vunpack.c.h.b16 %v2302
    %v2383 = vunpack.c.l.b16 %v2303
    %v2384 = vunpack.c.h.b16 %v2303
    %v2385 = vunpack.c.l.b16 %v2304
    %v2386 = vunpack.c.h.b16 %v2304
    %v2387 = vunpack.c.l.b16 %v2305
    %v2388 = vunpack.c.h.b16 %v2305
    %v2389 = vunpack.c.l.b16 %v2306
    %v2390 = vunpack.c.h.b16 %v2306
    %v2391 = vunpack.c.l.b16 %v2307
    %v2392 = vunpack.c.h.b16 %v2307
    %v2393 = vunpack.c.l.b16 %v2308
    %v2394 = vunpack.c.h.b16 %v2308
    %v2395 = vunpack.c.l.b16 %v2309
    %v2396 = vunpack.c.h.b16 %v2309
    %v2397 = vunpack.c.l.b16 %v2310
    %v2398 = vunpack.c.h.b16 %v2310
    %v2399 = vunpack.c.l.b16 %v2311
    %v2400 = vunpack.c.h.b16 %v2311
    %v2401 = vunpack.c.l.b16 %v2312
    %v2402 = vunpack.c.h.b16 %v2312
    %v2403 = vunpack.c.l.b16 %v2313
    %v2404 = vunpack.c.h.b16 %v2313
    %v2405 = vunpack.c.l.b16 %v2314
    %v2406 = vunpack.c.h.b16 %v2314
    %v2407 = vunpack.c.l.b16 %v2315
    %v2408 = vunpack.c.h.b16 %v2315
    %v2409 = vunpack.c.l.b16 %v2316
    %v2410 = vunpack.c.h.b16 %v2316
    %v2411 = vunpack.c.l.b16 %v2317
    %v2412 = vunpack.c.h.b16 %v2317
    %v2413 = vunpack.c.l.b16 %v2318
    %v2414 = vunpack.c.h.b16 %v2318
    %v2415 = vpack.c.b16 %v2355, %v2351
    %v2416 = vpack.c.b16 %v2356, %v2352
    %v2417 = vpack.c.b16 %v2357, %v2353
    %v2418 = vpack.c.b16 %v2358, %v2354
    %v2419 = vpack.c.b16 %v2363, %v2359
    %v2420 = vpack.c.b16 %v2364, %v2360
    %v2421 = vpack.c.b16 %v2365, %v2361
    %v2422 = vpack.c.b16 %v2366, %v2362
    %v2423 = vpack.c.b16 %v2371, %v2367
    %v2424 = vpack.c.b16 %v2372, %v2368
    %v2425 = vpack.c.b16 %v2373, %v2369
    %v2426 = vpack.c.b16 %v2374, %v2370
    %v2427 = vpack.c.b16 %v2379, %v2375
    %v2428 = vpack.c.b16 %v2380, %v2376
    %v2429 = vpack.c.b16 %v2381, %v2377
    %v2430 = vpack.c.b16 %v2382, %v2378
    %v2431 = vpack.c.b16 %v2387, %v2383
    %v2432 = vpack.c.b16 %v2388, %v2384
    %v2433 = vpack.c.b16 %v2389, %v2385
    %v2434 = vpack.c.b16 %v2390, %v2386
    %v2435 = vpack.c.b16 %v2395, %v2391
    %v2436 = vpack.c.b16 %v2396, %v2392
    %v2437 = vpack.c.b16 %v2397, %v2393
    %v2438 = vpack.c.b16 %v2398, %v2394
    %v2439 = vpack.c.b16 %v2403, %v2399
    %v2440 = vpack.c.b16 %v2404, %v2400
    %v2441 = vpack.c.b16 %v2405, %v2401
    %v2442 = vpack.c.b16 %v2406, %v2402
    %v2443 = vpack.c.b16 %v2411, %v2407
    %v2444 = vpack.c.b16 %v2412, %v2408
    %v2445 = vpack.c.b16 %v2413, %v2409
    %v2446 = vpack.c.b16 %v2414, %v2410
    %2479 = vmatprep.subr.bf16.mxu0 %v2416
    %2480 = vmatpush1.bf16.msra.mxu0 %v2415
    %2481 = vmatprep.subr.bf16.mxu0 %v2420
    %2482 = vmatpush1.bf16.msra.mxu0 %v2419
    %2483 = vmatprep.subr.bf16.mxu0 %v2424
    %2484 = vmatpush1.bf16.msra.mxu0 %v2423
    %2485 = vmatprep.subr.bf16.mxu0 %v2428
    %2486 = vmatpush1.bf16.msra.mxu0 %v2427
    %2487 = vmatprep.subr.bf16.mxu0 %v2432
    %2488 = vmatpush1.bf16.msra.mxu0 %v2431
    %2489 = vmatprep.subr.bf16.mxu0 %v2436
    %2490 = vmatpush1.bf16.msra.mxu0 %v2435
    %2491 = vmatprep.subr.bf16.mxu0 %v2440
    %2492 = vmatpush1.bf16.msra.mxu0 %v2439
    %2493 = vmatprep.subr.bf16.mxu0 %v2444
    %2494 = vmatpush1.bf16.msra.mxu0 %v2443
    %2495 = vmatprep.subr.bf16.mxu0 0
    %2496 = vmatpush1.bf16.msra.mxu0 0
    %2497 = vmatprep.subr.bf16.mxu0 0
    %2498 = vmatpush1.bf16.msra.mxu0 0
    %2499 = vmatprep.subr.bf16.mxu0 0
    %2500 = vmatpush1.bf16.msra.mxu0 0
    %2501 = vmatprep.subr.bf16.mxu0 0
    %2502 = vmatpush1.bf16.msra.mxu0 0
    %2503 = vmatprep.subr.bf16.mxu0 0
    %2504 = vmatpush1.bf16.msra.mxu0 0
    %2505 = vmatprep.subr.bf16.mxu0 0
    %2506 = vmatpush1.bf16.msra.mxu0 0
    %2507 = vmatprep.subr.bf16.mxu0 0
    %2508 = vmatpush1.bf16.msra.mxu0 0
    %2509 = vmatprep.subr.bf16.mxu0 0
    %2510 = vmatpush1.bf16.msra.mxu0 0
    %2511 = vmatprep.mubr.bf16.mxu0 0
    %2512 = vmatmul.mubr.bf16.gmra.mrb[0].mxu0 %v2286
    %v2513 = vpop.f32.mrb[0].mxu0
    %v2514 = vadd.f32 0.0, %v2513
    %v2515 = vpop.f32.mrb[0].mxu0
    %v2516 = vadd.f32 0.0, %v2515
    %v2517 = vpop.f32.mrb[0].mxu0
    %v2518 = vpop.f32.mrb[0].mxu0
    %2519 = vdwg.mxu0
    %2520 = vmatprep.subr.bf16.mxu0 %v2418
    %2521 = vmatpush1.bf16.msra.mxu0 %v2417
    %2522 = vmatprep.subr.bf16.mxu0 %v2422
    %2523 = vmatpush1.bf16.msra.mxu0 %v2421
    %2524 = vmatprep.subr.bf16.mxu0 %v2426
    %2525 = vmatpush1.bf16.msra.mxu0 %v2425
    %2526 = vmatprep.subr.bf16.mxu0 %v2430
    %2527 = vmatpush1.bf16.msra.mxu0 %v2429
    %2528 = vmatprep.subr.bf16.mxu0 %v2434
    %2529 = vmatpush1.bf16.msra.mxu0 %v2433
    %2530 = vmatprep.subr.bf16.mxu0 %v2438
    %2531 = vmatpush1.bf16.msra.mxu0 %v2437
    %2532 = vmatprep.subr.bf16.mxu0 %v2442
    %2533 = vmatpush1.bf16.msra.mxu0 %v2441
    %2534 = vmatprep.subr.bf16.mxu0 %v2446
    %2535 = vmatpush1.bf16.msra.mxu0 %v2445
    %2536 = vmatprep.subr.bf16.mxu0 0
    %2537 = vmatpush1.bf16.msra.mxu0 0
    %2538 = vmatprep.subr.bf16.mxu0 0
    %2539 = vmatpush1.bf16.msra.mxu0 0
    %2540 = vmatprep.subr.bf16.mxu0 0
    %2541 = vmatpush1.bf16.msra.mxu0 0
    %2542 = vmatprep.subr.bf16.mxu0 0
    %2543 = vmatpush1.bf16.msra.mxu0 0
    %2544 = vmatprep.subr.bf16.mxu0 0
    %2545 = vmatpush1.bf16.msra.mxu0 0
    %2546 = vmatprep.subr.bf16.mxu0 0
    %2547 = vmatpush1.bf16.msra.mxu0 0
    %2548 = vmatprep.subr.bf16.mxu0 0
    %2549 = vmatpush1.bf16.msra.mxu0 0
    %2550 = vmatprep.subr.bf16.mxu0 0
    %2551 = vmatpush1.bf16.msra.mxu0 0
    %2552 = vmatprep.mubr.bf16.mxu0 0
    %2553 = vmatmul.mubr.bf16.gmra.mrb[0].mxu0 %v2286
    %v2554 = vpop.f32.mrb[0].mxu0
    %v2555 = vadd.f32 0.0, %v2554
    %v2556 = vpop.f32.mrb[0].mxu0
    %v2557 = vadd.f32 0.0, %v2556
    %v2558 = vpop.f32.mrb[0].mxu0
    %v2559 = vpop.f32.mrb[0].mxu0
    %2560 = vdwg.mxu0
    %v2561 = vadd.f32 %v2282, %v2514
    %v2562 = vadd.f32 %v2283, %v2516
    %v2563 = vadd.f32 %v2284, %v2555
    %v2564 = vadd.f32 %v2285, %v2557
    %v2565 = vsub.f32 0.0, %v2561
    %v2566 = vmul.f32 %v2565, 1.442695
    %v2567 = vpow.pop %v2566
    %v2568 = vadd.f32 %v2567, 1.0
    %v2569 = vrcp.pop %v2568
    %v2570 = vsub.f32 0.0, %v2562
    %v2571 = vmul.f32 %v2570, 1.442695
    %v2572 = vpow.pop %v2571
    %v2573 = vadd.f32 %v2572, 1.0
    %v2574 = vrcp.pop %v2573
    %v2575 = vtanh.pop %v2563
    %v2576 = vsub.f32 0.0, %v2564
    %v2577 = vmul.f32 %v2576, 1.442695
    %v2578 = vpow.pop %v2577
    %v2579 = vadd.f32 %v2578, 1.0
    %v2580 = vrcp.pop %v2579
    %v2581 = vmul.f32 %v2574, %v2277
    %v2582 = vmul.f32 %v2569, %v2575
    %v2583 = vadd.f32 %v2581, %v2582
    %v2584 = vtanh.pop %v2583
    %v2585 = vmul.f32 %v2580, %v2584
    %s2586 = sadd.s32 %s55, 7
    %v2587 = vstv %s2586
    %vm2588 = vcmp.gt.s32.totalorder %v54, %v2587
    %v2589 = vsel %vm2588, 1, 0
    %2590 = vset.pattern.permute.xlu0 0
    %2591 = vperm.xlu0 %2590, %v2589
    %v2592 = vpop.permute.xlu0 %2591
    %vm2593 = vcmp.eq.s32.totalorder %v2592, 1
    %v2594 = vsel %vm2593, %v2585, %v2276
    %v2595 = vsel %vm2593, %v2583, %v2277
    %v2596 = vsel %vm2593, %v2585, 0.0
    %s2597 = scalar_lea.vmem [#allocation7], 56
    %2598 = vst [vmem:[%s2597] sm:$0xff] %v2596
    %2599 = vst [vmem:[#allocation8] sm:$0xff] %v2594
    %2600 = vst [vmem:[#allocation10] sm:$0xff] %v2595
    // Predicated region
    $region26: #{tpu_custom_call.1} parent=1 // pred_check
      _
    $region27: #{tpu_custom_call.1} parent=1 // pred_check_branch
      %2602 = sbr.rel (0) target = $region29
    $region28: #{tpu_custom_call.1} parent=1 // pred_region
      %s2604 = ssub.s32 1024, 1024
      %2605 = vsyncadd [#allocation4], %s2604
      %s2606 = sshll.u32 [#allocation7], 4
      %s2607 = int_to_ptr.vmem [resolvable:$true] %s2606
      %2612 = dma.vmem_to_hbm [thread:$0]  %s2607, 1024, %s3, [#allocation4], 128, 128, 8
    $region29: #{tpu_custom_call.1} parent=1 // pred_fallthru
      _
    // Predicated region
    $region30: #{tpu_custom_call.1} parent=1 // pred_check
      _
    $region31: #{tpu_custom_call.1} parent=1 // pred_check_branch
      %2614 = sbr.rel (0) target = $region33
    $region32: #{tpu_custom_call.1} parent=1 // pred_region
      %s2616 = ssub.s32 128, 128
      %2617 = vsyncadd [#allocation9], %s2616
      %s2619 = sshll.u32 [#allocation8], 4
      %s2620 = int_to_ptr.vmem [resolvable:$true] %s2619
      %2622 = dma.vmem_to_hbm [thread:$0]  %s2620, 128, %s4, [#allocation9]
    $region33: #{tpu_custom_call.1} parent=1 // pred_fallthru
      _
    // Predicated region
    $region34: #{tpu_custom_call.1} parent=1 // pred_check
      _
    $region35: #{tpu_custom_call.1} parent=1 // pred_check_branch
      %2624 = sbr.rel (0) target = $region37
    $region36: #{tpu_custom_call.1} parent=1 // pred_region
      %s2626 = ssub.s32 128, 128
      %2627 = vsyncadd [#allocation9], %s2626
      %s2629 = sshll.u32 [#allocation10], 4
      %s2630 = int_to_ptr.vmem [resolvable:$true] %s2629
      %2632 = dma.vmem_to_hbm [thread:$0]  %s2630, 128, %s5, [#allocation9]
    $region37: #{tpu_custom_call.1} parent=1 // pred_fallthru
      _
    // Predicated region
    $region38: #{tpu_custom_call.1} parent=1 // pred_check
      _
    $region39: #{tpu_custom_call.1} parent=1 // pred_check_branch
      %2634 = sbr.rel (0) target = $region41
    $region40: #{tpu_custom_call.1} parent=1 // pred_region
      %2635 = dma.done [#allocation4], 1024
    $region41: #{tpu_custom_call.1} parent=1 // pred_fallthru
      _
    // Predicated region
    $region42: #{tpu_custom_call.1} parent=1 // pred_check
      _
    $region43: #{tpu_custom_call.1} parent=1 // pred_check_branch
      %2637 = sbr.rel (0) target = $region45
    $region44: #{tpu_custom_call.1} parent=1 // pred_region
      %2638 = dma.done [#allocation9], 128
    $region45: #{tpu_custom_call.1} parent=1 // pred_fallthru
      _
    // Predicated region
    $region46: #{tpu_custom_call.1} parent=1 // pred_check
      _
    $region47: #{tpu_custom_call.1} parent=1 // pred_check_branch
      %2640 = sbr.rel (0) target = $region49
    $region48: #{tpu_custom_call.1} parent=1 // pred_region
      %2641 = dma.done [#allocation9], 128
    $region49: #{tpu_custom_call.1} parent=1 // pred_fallthru
      _
    %2642 = vsyncpa [#allocation3], 1
    %2643 = vsyncpa [#allocation6], 1
    %2644 = vsyncpa [#allocation4], 1
    %2645 = vsyncpa [#allocation9], 1

</llo_original>
